<compile_context>
chip_gen: v7x
topology: tpu7x:2x2x1
jax: 0.10.0
libtpu: 0.0.40
codegen_flags: <defaults>
</compile_context>

<pallas_src>
import functools

import jax
import jax.numpy as jnp
from jax.experimental import pallas as pl
from jax.experimental.pallas import tpu as pltpu


def _round_up(x, m):
    return (x + m - 1) // m * m


# ----------------------------- Pallas kernels -----------------------------

def _fused_matmul_kernel(x_ref, w_ref, shift_ref, o_ref, *, relu):
    # (TM, K) @ (K, N) on the MXU (bf16 in, f32 accumulate), then a per-column
    # shift (folded conv-bias + BatchNorm, or FC bias) and optional ReLU.
    acc = jnp.dot(x_ref[...], w_ref[...], preferred_element_type=jnp.float32)
    y = acc + shift_ref[...]
    if relu:
        y = jnp.maximum(y, 0.0)
    o_ref[...] = y.astype(o_ref.dtype)


def fused_matmul(x, w, shift, *, relu, out_dtype=jnp.float32):
    """y = relu?(x @ w + shift); x:(M,K) bf16, w:(K,N) bf16, shift:(1,N) f32.

    N must be a multiple of 128 (pad weights/shift; slice result downstream).
    Tiled over M with full-K / full-N blocks; weight + shift stay resident.
    """
    M, K = x.shape
    Kw, N = w.shape
    assert K == Kw and shift.shape == (1, N) and N % 128 == 0
    # Per-step VMEM (x2 for double buffering) stays < ~10 MiB even at
    # K=3136, so this fits the 16/32/32 MiB scoped defaults on v5e/v6e/v7x.
    tm = 2048 if K <= 1024 else 512
    tm = min(tm, M)
    return pl.pallas_call(
        functools.partial(_fused_matmul_kernel, relu=relu),
        out_shape=jax.ShapeDtypeStruct((M, N), out_dtype),
        grid=(pl.cdiv(M, tm),),
        in_specs=[
            pl.BlockSpec((tm, K), lambda i: (i, 0)),
            pl.BlockSpec((K, N), lambda i: (0, 0)),
            pl.BlockSpec((1, N), lambda i: (0, 0)),
        ],
        out_specs=pl.BlockSpec((tm, N), lambda i: (i, 0)),
        compiler_params=pltpu.CompilerParams(dimension_semantics=("parallel",)),
    )(x, w, shift)


def _max4_kernel(a_ref, b_ref, c_ref, d_ref, o_ref):
    o_ref[...] = jnp.maximum(jnp.maximum(a_ref[...], b_ref[...]),
                             jnp.maximum(c_ref[...], d_ref[...]))


def maxpool2x2_nhwc(y, c):
    """MaxPool2d(2,2) over channels [:c] of y:(N,H,W,Cpad) -> (N,H//2,W//2,c).

    The four 2x2 window corners are strided NHWC slices (the channel slice
    also drops the lane padding of the conv output); the Pallas kernel is a
    pure 4-way elementwise max tiled over the batch, channels kept on lanes.
    """
    n, h, w, _ = y.shape
    ho, wo = h // 2, w // 2
    views = [y[:, dh::2, dw::2, :c].reshape(n, ho, wo * c)
             for dh in range(2) for dw in range(2)]
    tb = min(n, 32)
    out = pl.pallas_call(
        _max4_kernel,
        out_shape=jax.ShapeDtypeStruct((n, ho, wo * c), y.dtype),
        grid=(pl.cdiv(n, tb),),
        in_specs=[pl.BlockSpec((tb, ho, wo * c), lambda i: (i, 0, 0))] * 4,
        out_specs=pl.BlockSpec((tb, ho, wo * c), lambda i: (i, 0, 0)),
        compiler_params=pltpu.CompilerParams(dimension_semantics=("parallel",)),
    )(*views)
    return out.reshape(n, ho, wo, c)


# ------------------------------- JAX glue ---------------------------------

def im2col_3x3_same(x):
    """(N, H, W, C) -> (N*H*W, 9*C); patch element order is (kh, kw, cin)."""
    # TODO(synk): fuse im2col into the conv matmul kernel (per-M-tile halo
    # blocks built from static in-VMEM slices) to avoid the 9x HBM expansion.
    n, h, w, c = x.shape
    xp = jnp.pad(x, ((0, 0), (1, 1), (1, 1), (0, 0)))
    patches = [xp[:, dh:dh + h, dw:dw + w, :]
               for dh in range(3) for dw in range(3)]
    p = jnp.stack(patches, axis=3)           # (N, H, W, 9, C)
    return p.reshape(n * h * w, 9 * c)


def init_params(key):
    """PyTorch-layout parameters (same shapes/ordering as the nn.Module)."""
    ks = jax.random.split(key, 8)
    p = {}
    # conv1: Conv2d(1, 32, 3, padding=1) + BatchNorm2d(32)
    p["w1"] = jax.random.normal(ks[0], (32, 1, 3, 3), jnp.float32) * 0.1
    p["b1"] = jax.random.normal(ks[1], (32,), jnp.float32) * 0.1
    p["g1"], p["be1"] = jnp.ones((32,), jnp.float32), jnp.zeros((32,), jnp.float32)
    p["m1"], p["v1"] = jnp.zeros((32,), jnp.float32), jnp.ones((32,), jnp.float32)
    # conv2: Conv2d(32, 64, 3, padding=1) + BatchNorm2d(64)
    p["w2"] = jax.random.normal(ks[2], (64, 32, 3, 3), jnp.float32) * 0.1
    p["b2"] = jax.random.normal(ks[3], (64,), jnp.float32) * 0.1
    p["g2"], p["be2"] = jnp.ones((64,), jnp.float32), jnp.zeros((64,), jnp.float32)
    p["m2"], p["v2"] = jnp.zeros((64,), jnp.float32), jnp.ones((64,), jnp.float32)
    # fc: Linear(64*7*7, 128) -> ReLU -> Dropout -> Linear(128, 10)
    p["fc1_w"] = jax.random.normal(ks[4], (128, 64 * 7 * 7), jnp.float32) * 0.02
    p["fc1_b"] = jax.random.normal(ks[5], (128,), jnp.float32) * 0.02
    p["fc2_w"] = jax.random.normal(ks[6], (10, 128), jnp.float32) * 0.05
    p["fc2_b"] = jax.random.normal(ks[7], (10,), jnp.float32) * 0.05
    return p


def prepare_params(p, eps=1e-5):
    """One-time fold: BN->weights, layout permutes, bf16 cast, pad N to 128."""
    def conv_pack(w_oihw, b, gamma, beta, mean, var):
        cout, cin = w_oihw.shape[0], w_oihw.shape[1]
        scale = gamma / jnp.sqrt(var + eps)          # BN(eval) affine
        shift = beta + (b - mean) * scale
        # (Cout,Cin,3,3) -> (kh,kw,cin,cout) -> (9*Cin, Cout); fold BN scale
        # into each output column so the kernel epilogue is add+ReLU only.
        wmat = jnp.transpose(w_oihw, (2, 3, 1, 0)).reshape(9 * cin, cout)
        wmat = wmat * scale[None, :]
        npad = _round_up(cout, 128)
        wmat = jnp.pad(wmat, ((0, 0), (0, npad - cout))).astype(jnp.bfloat16)
        shift = jnp.pad(shift, (0, npad - cout)).reshape(1, npad)
        return wmat, shift.astype(jnp.float32)

    q = {}
    q["w1"], q["s1"] = conv_pack(p["w1"], p["b1"], p["g1"], p["be1"], p["m1"], p["v1"])
    q["w2"], q["s2"] = conv_pack(p["w2"], p["b2"], p["g2"], p["be2"], p["m2"], p["v2"])
    # fc1: PyTorch weight (128, 3136) expects NCHW-flatten columns (c,h,w);
    # permute rows to NHWC-flatten order (h,w,c) and pre-transpose to (K, N)
    # so the forward pass needs no activation or weight transpose.
    w = p["fc1_w"].reshape(128, 64, 7, 7)
    w = jnp.transpose(w, (2, 3, 1, 0)).reshape(64 * 7 * 7, 128)
    q["fc1_w"] = w.astype(jnp.bfloat16)
    q["fc1_b"] = p["fc1_b"].reshape(1, 128).astype(jnp.float32)
    # fc2: (10, 128) -> (128, 10) pre-transposed, output channels padded to 128.
    w2 = jnp.transpose(p["fc2_w"], (1, 0))
    q["fc2_w"] = jnp.pad(w2, ((0, 0), (0, 128 - 10))).astype(jnp.bfloat16)
    q["fc2_b"] = jnp.pad(p["fc2_b"], (0, 128 - 10)).reshape(1, 128).astype(jnp.float32)
    return q


def simple_cnn_forward(q, x_nchw):
    """x_nchw: (N, 1, 28, 28) float32 -> logits (N, 10) float32."""
    n = x_nchw.shape[0]
    x = jnp.transpose(x_nchw, (0, 2, 3, 1)).astype(jnp.bfloat16)   # NCHW->NHWC

    # conv1 + BN + ReLU + pool
    pat = im2col_3x3_same(x)                                        # (N*784, 9)
    y = fused_matmul(pat, q["w1"], q["s1"], relu=True,
                     out_dtype=jnp.bfloat16).reshape(n, 28, 28, 128)
    x = maxpool2x2_nhwc(y, 32)                                      # (N,14,14,32)

    # conv2 + BN + ReLU + pool
    pat = im2col_3x3_same(x)                                        # (N*196, 288)
    y = fused_matmul(pat, q["w2"], q["s2"], relu=True,
                     out_dtype=jnp.bfloat16).reshape(n, 14, 14, 128)
    x = maxpool2x2_nhwc(y, 64)                                      # (N,7,7,64)

    # fc: NHWC flatten (fc1_w rows are pre-permuted to match this order).
    x = x.reshape(n, 64 * 7 * 7)
    x = fused_matmul(x, q["fc1_w"], q["fc1_b"], relu=True,
                     out_dtype=jnp.bfloat16)                        # (N,128)
    # Dropout(0.5) is identity in eval-mode forward (no drop/scale applied).
    x = fused_matmul(x, q["fc2_w"], q["fc2_b"], relu=False,
                     out_dtype=jnp.float32)                         # (N,128)
    return x[:, :10]                                                # drop padding


if __name__ == "__main__":
    key = jax.random.PRNGKey(0)
    pkey, xkey = jax.random.split(key)
    params = prepare_params(init_params(pkey))
    # MNIST-shaped input: the fc layer hard-codes 64*7*7, so spatial must be 28.
    x = jax.random.normal(xkey, (2, 1, 28, 28), jnp.float32)
    out = jax.jit(simple_cnn_forward)(params, x)
    out = jax.block_until_ready(out)
    assert out.shape == (2, 10) and out.dtype == jnp.float32
    print("KERNEL_OK")
</pallas_src>

<mosaic_0001>
module attributes {stable_mosaic.version = 11 : i64} {
  func.func @_fused_matmul_kernel(%arg0: i32, %arg1: memref<1568x9xbf16, #tpu.memory_space<vmem>>, %arg2: memref<9x128xbf16, #tpu.memory_space<vmem>>, %arg3: memref<1x128xf32, #tpu.memory_space<vmem>>, %arg4: memref<1568x128xbf16, #tpu.memory_space<vmem>>) attributes {dimension_semantics = [#tpu.dimension_semantics<parallel>], iteration_bounds = array<i64: 1>, scalar_prefetch = 0 : i64, scratch_operands = 0 : i64, tpu.core_type = #tpu.core_type<tc>, window_params = [{transform_indices = @transform_0, window_bounds = array<i64: 1568, 9>}, {pipeline_mode = #tpu.pipeline_mode<synchronous>, transform_indices = @transform_1, window_bounds = array<i64: 9, 128>}, {pipeline_mode = #tpu.pipeline_mode<synchronous>, transform_indices = @transform_2, window_bounds = array<i64: 1, 128>}, {transform_indices = @transform_3, window_bounds = array<i64: 1568, 128>}]} {
    %c0 = arith.constant 0 : index
    %c0_0 = arith.constant 0 : index
    %0 = vector.load %arg1[%c0, %c0_0] : memref<1568x9xbf16, #tpu.memory_space<vmem>>, vector<1568x9xbf16>
    %c0_1 = arith.constant 0 : index
    %c0_2 = arith.constant 0 : index
    %1 = vector.load %arg2[%c0_1, %c0_2] : memref<9x128xbf16, #tpu.memory_space<vmem>>, vector<9x128xbf16>
    %cst = arith.constant dense<0.000000e+00> : vector<1568x128xf32>
    %2 = tpu.matmul %0, %1, %cst {dimension_numbers = #tpu.dot_dimension_numbers<[1], [0], [0], [1], [0, 0, 1, 1], [], []>} : vector<1568x9xbf16>, vector<9x128xbf16>, vector<1568x128xf32> -> vector<1568x128xf32>
    %c0_3 = arith.constant 0 : index
    %c0_4 = arith.constant 0 : index
    %3 = vector.load %arg3[%c0_3, %c0_4] : memref<1x128xf32, #tpu.memory_space<vmem>>, vector<1x128xf32>
    %4 = vector.broadcast %3 : vector<1x128xf32> to vector<1568x128xf32>
    %5 = arith.addf %2, %4 : vector<1568x128xf32>
    %cst_5 = arith.constant 0.000000e+00 : f32
    %6 = vector.broadcast %cst_5 : f32 to vector<1568x128xf32>
    %7 = arith.maximumf %5, %6 : vector<1568x128xf32>
    %8 = arith.truncf %7 : vector<1568x128xf32> to vector<1568x128xbf16>
    %c0_6 = arith.constant 0 : index
    %c0_7 = arith.constant 0 : index
    %9 = vector.load %arg4[%c0_6, %c0_7] : memref<1568x128xbf16, #tpu.memory_space<vmem>>, vector<1568x128xbf16>
    tpu.vector_store %arg4[%c0_6, %c0_7], %8 {strides = array<i32>} : memref<1568x128xbf16, #tpu.memory_space<vmem>>, vector<1568x128xbf16>,
    return
  }
  func.func @transform_0(%arg0: i32) -> (i32, i32) {
    %c0_i32 = arith.constant 0 : i32
    %c0_i32_0 = arith.constant 0 : i32
    return %arg0, %c0_i32 : i32, i32
  }
  func.func @transform_1(%arg0: i32) -> (i32, i32) {
    %c0_i32 = arith.constant 0 : i32
    %c0_i32_0 = arith.constant 0 : i32
    %c0_i32_1 = arith.constant 0 : i32
    return %c0_i32, %c0_i32_0 : i32, i32
  }
  func.func @transform_2(%arg0: i32) -> (i32, i32) {
    %c0_i32 = arith.constant 0 : i32
    %c0_i32_0 = arith.constant 0 : i32
    %c0_i32_1 = arith.constant 0 : i32
    return %c0_i32, %c0_i32_0 : i32, i32
  }
  func.func @transform_3(%arg0: i32) -> (i32, i32) {
    %c0_i32 = arith.constant 0 : i32
    %c0_i32_0 = arith.constant 0 : i32
    return %arg0, %c0_i32 : i32, i32
  }
}

module attributes {stable_mosaic.version = 11 : i64} {
  func.func @_max4_kernel(%arg0: i32, %arg1: memref<2x14x448xbf16, #tpu.memory_space<vmem>>, %arg2: memref<2x14x448xbf16, #tpu.memory_space<vmem>>, %arg3: memref<2x14x448xbf16, #tpu.memory_space<vmem>>, %arg4: memref<2x14x448xbf16, #tpu.memory_space<vmem>>, %arg5: memref<2x14x448xbf16, #tpu.memory_space<vmem>>) attributes {dimension_semantics = [#tpu.dimension_semantics<parallel>], iteration_bounds = array<i64: 1>, scalar_prefetch = 0 : i64, scratch_operands = 0 : i64, tpu.core_type = #tpu.core_type<tc>, window_params = [{transform_indices = @transform_0, window_bounds = array<i64: 2, 14, 448>}, {transform_indices = @transform_1, window_bounds = array<i64: 2, 14, 448>}, {transform_indices = @transform_2, window_bounds = array<i64: 2, 14, 448>}, {transform_indices = @transform_3, window_bounds = array<i64: 2, 14, 448>}, {transform_indices = @transform_4, window_bounds = array<i64: 2, 14, 448>}]} {
    %c0 = arith.constant 0 : index
    %c0_0 = arith.constant 0 : index
    %c0_1 = arith.constant 0 : index
    %0 = vector.load %arg1[%c0, %c0_0, %c0_1] : memref<2x14x448xbf16, #tpu.memory_space<vmem>>, vector<2x14x448xbf16>
    %c0_2 = arith.constant 0 : index
    %c0_3 = arith.constant 0 : index
    %c0_4 = arith.constant 0 : index
    %1 = vector.load %arg2[%c0_2, %c0_3, %c0_4] : memref<2x14x448xbf16, #tpu.memory_space<vmem>>, vector<2x14x448xbf16>
    %2 = arith.maximumf %0, %1 : vector<2x14x448xbf16>
    %c0_5 = arith.constant 0 : index
    %c0_6 = arith.constant 0 : index
    %c0_7 = arith.constant 0 : index
    %3 = vector.load %arg3[%c0_5, %c0_6, %c0_7] : memref<2x14x448xbf16, #tpu.memory_space<vmem>>, vector<2x14x448xbf16>
    %c0_8 = arith.constant 0 : index
    %c0_9 = arith.constant 0 : index
    %c0_10 = arith.constant 0 : index
    %4 = vector.load %arg4[%c0_8, %c0_9, %c0_10] : memref<2x14x448xbf16, #tpu.memory_space<vmem>>, vector<2x14x448xbf16>
    %5 = arith.maximumf %3, %4 : vector<2x14x448xbf16>
    %6 = arith.maximumf %2, %5 : vector<2x14x448xbf16>
    %c0_11 = arith.constant 0 : index
    %c0_12 = arith.constant 0 : index
    %c0_13 = arith.constant 0 : index
    %7 = vector.load %arg5[%c0_11, %c0_12, %c0_13] : memref<2x14x448xbf16, #tpu.memory_space<vmem>>, vector<2x14x448xbf16>
    tpu.vector_store %arg5[%c0_11, %c0_12, %c0_13], %6 {strides = array<i32>} : memref<2x14x448xbf16, #tpu.memory_space<vmem>>, vector<2x14x448xbf16>,
    return
  }
  func.func @transform_0(%arg0: i32) -> (i32, i32, i32) {
    %c0_i32 = arith.constant 0 : i32
    %c0_i32_0 = arith.constant 0 : i32
    %c0_i32_1 = arith.constant 0 : i32
    return %arg0, %c0_i32, %c0_i32_0 : i32, i32, i32
  }
  func.func @transform_1(%arg0: i32) -> (i32, i32, i32) {
    %c0_i32 = arith.constant 0 : i32
    %c0_i32_0 = arith.constant 0 : i32
    %c0_i32_1 = arith.constant 0 : i32
    return %arg0, %c0_i32, %c0_i32_0 : i32, i32, i32
  }
  func.func @transform_2(%arg0: i32) -> (i32, i32, i32) {
    %c0_i32 = arith.constant 0 : i32
    %c0_i32_0 = arith.constant 0 : i32
    %c0_i32_1 = arith.constant 0 : i32
    return %arg0, %c0_i32, %c0_i32_0 : i32, i32, i32
  }
  func.func @transform_3(%arg0: i32) -> (i32, i32, i32) {
    %c0_i32 = arith.constant 0 : i32
    %c0_i32_0 = arith.constant 0 : i32
    %c0_i32_1 = arith.constant 0 : i32
    return %arg0, %c0_i32, %c0_i32_0 : i32, i32, i32
  }
  func.func @transform_4(%arg0: i32) -> (i32, i32, i32) {
    %c0_i32 = arith.constant 0 : i32
    %c0_i32_0 = arith.constant 0 : i32
    %c0_i32_1 = arith.constant 0 : i32
    return %arg0, %c0_i32, %c0_i32_0 : i32, i32, i32
  }
}

module attributes {stable_mosaic.version = 11 : i64} {
  func.func @_fused_matmul_kernel(%arg0: i32, %arg1: memref<392x288xbf16, #tpu.memory_space<vmem>>, %arg2: memref<288x128xbf16, #tpu.memory_space<vmem>>, %arg3: memref<1x128xf32, #tpu.memory_space<vmem>>, %arg4: memref<392x128xbf16, #tpu.memory_space<vmem>>) attributes {dimension_semantics = [#tpu.dimension_semantics<parallel>], iteration_bounds = array<i64: 1>, scalar_prefetch = 0 : i64, scratch_operands = 0 : i64, tpu.core_type = #tpu.core_type<tc>, window_params = [{transform_indices = @transform_0, window_bounds = array<i64: 392, 288>}, {pipeline_mode = #tpu.pipeline_mode<synchronous>, transform_indices = @transform_1, window_bounds = array<i64: 288, 128>}, {pipeline_mode = #tpu.pipeline_mode<synchronous>, transform_indices = @transform_2, window_bounds = array<i64: 1, 128>}, {transform_indices = @transform_3, window_bounds = array<i64: 392, 128>}]} {
    %c0 = arith.constant 0 : index
    %c0_0 = arith.constant 0 : index
    %0 = vector.load %arg1[%c0, %c0_0] : memref<392x288xbf16, #tpu.memory_space<vmem>>, vector<392x288xbf16>
    %c0_1 = arith.constant 0 : index
    %c0_2 = arith.constant 0 : index
    %1 = vector.load %arg2[%c0_1, %c0_2] : memref<288x128xbf16, #tpu.memory_space<vmem>>, vector<288x128xbf16>
    %cst = arith.constant dense<0.000000e+00> : vector<392x128xf32>
    %2 = tpu.matmul %0, %1, %cst {dimension_numbers = #tpu.dot_dimension_numbers<[1], [0], [0], [1], [0, 0, 1, 1], [], []>} : vector<392x288xbf16>, vector<288x128xbf16>, vector<392x128xf32> -> vector<392x128xf32>
    %c0_3 = arith.constant 0 : index
    %c0_4 = arith.constant 0 : index
    %3 = vector.load %arg3[%c0_3, %c0_4] : memref<1x128xf32, #tpu.memory_space<vmem>>, vector<1x128xf32>
    %4 = vector.broadcast %3 : vector<1x128xf32> to vector<392x128xf32>
    %5 = arith.addf %2, %4 : vector<392x128xf32>
    %cst_5 = arith.constant 0.000000e+00 : f32
    %6 = vector.broadcast %cst_5 : f32 to vector<392x128xf32>
    %7 = arith.maximumf %5, %6 : vector<392x128xf32>
    %8 = arith.truncf %7 : vector<392x128xf32> to vector<392x128xbf16>
    %c0_6 = arith.constant 0 : index
    %c0_7 = arith.constant 0 : index
    %9 = vector.load %arg4[%c0_6, %c0_7] : memref<392x128xbf16, #tpu.memory_space<vmem>>, vector<392x128xbf16>
    tpu.vector_store %arg4[%c0_6, %c0_7], %8 {strides = array<i32>} : memref<392x128xbf16, #tpu.memory_space<vmem>>, vector<392x128xbf16>,
    return
  }
  func.func @transform_0(%arg0: i32) -> (i32, i32) {
    %c0_i32 = arith.constant 0 : i32
    %c0_i32_0 = arith.constant 0 : i32
    return %arg0, %c0_i32 : i32, i32
  }
  func.func @transform_1(%arg0: i32) -> (i32, i32) {
    %c0_i32 = arith.constant 0 : i32
    %c0_i32_0 = arith.constant 0 : i32
    %c0_i32_1 = arith.constant 0 : i32
    return %c0_i32, %c0_i32_0 : i32, i32
  }
  func.func @transform_2(%arg0: i32) -> (i32, i32) {
    %c0_i32 = arith.constant 0 : i32
    %c0_i32_0 = arith.constant 0 : i32
    %c0_i32_1 = arith.constant 0 : i32
    return %c0_i32, %c0_i32_0 : i32, i32
  }
  func.func @transform_3(%arg0: i32) -> (i32, i32) {
    %c0_i32 = arith.constant 0 : i32
    %c0_i32_0 = arith.constant 0 : i32
    return %arg0, %c0_i32 : i32, i32
  }
}

module attributes {stable_mosaic.version = 11 : i64} {
  func.func @_max4_kernel(%arg0: i32, %arg1: memref<2x7x448xbf16, #tpu.memory_space<vmem>>, %arg2: memref<2x7x448xbf16, #tpu.memory_space<vmem>>, %arg3: memref<2x7x448xbf16, #tpu.memory_space<vmem>>, %arg4: memref<2x7x448xbf16, #tpu.memory_space<vmem>>, %arg5: memref<2x7x448xbf16, #tpu.memory_space<vmem>>) attributes {dimension_semantics = [#tpu.dimension_semantics<parallel>], iteration_bounds = array<i64: 1>, scalar_prefetch = 0 : i64, scratch_operands = 0 : i64, tpu.core_type = #tpu.core_type<tc>, window_params = [{transform_indices = @transform_0, window_bounds = array<i64: 2, 7, 448>}, {transform_indices = @transform_1, window_bounds = array<i64: 2, 7, 448>}, {transform_indices = @transform_2, window_bounds = array<i64: 2, 7, 448>}, {transform_indices = @transform_3, window_bounds = array<i64: 2, 7, 448>}, {transform_indices = @transform_4, window_bounds = array<i64: 2, 7, 448>}]} {
    %c0 = arith.constant 0 : index
    %c0_0 = arith.constant 0 : index
    %c0_1 = arith.constant 0 : index
    %0 = vector.load %arg1[%c0, %c0_0, %c0_1] : memref<2x7x448xbf16, #tpu.memory_space<vmem>>, vector<2x7x448xbf16>
    %c0_2 = arith.constant 0 : index
    %c0_3 = arith.constant 0 : index
    %c0_4 = arith.constant 0 : index
    %1 = vector.load %arg2[%c0_2, %c0_3, %c0_4] : memref<2x7x448xbf16, #tpu.memory_space<vmem>>, vector<2x7x448xbf16>
    %2 = arith.maximumf %0, %1 : vector<2x7x448xbf16>
    %c0_5 = arith.constant 0 : index
    %c0_6 = arith.constant 0 : index
    %c0_7 = arith.constant 0 : index
    %3 = vector.load %arg3[%c0_5, %c0_6, %c0_7] : memref<2x7x448xbf16, #tpu.memory_space<vmem>>, vector<2x7x448xbf16>
    %c0_8 = arith.constant 0 : index
    %c0_9 = arith.constant 0 : index
    %c0_10 = arith.constant 0 : index
    %4 = vector.load %arg4[%c0_8, %c0_9, %c0_10] : memref<2x7x448xbf16, #tpu.memory_space<vmem>>, vector<2x7x448xbf16>
    %5 = arith.maximumf %3, %4 : vector<2x7x448xbf16>
    %6 = arith.maximumf %2, %5 : vector<2x7x448xbf16>
    %c0_11 = arith.constant 0 : index
    %c0_12 = arith.constant 0 : index
    %c0_13 = arith.constant 0 : index
    %7 = vector.load %arg5[%c0_11, %c0_12, %c0_13] : memref<2x7x448xbf16, #tpu.memory_space<vmem>>, vector<2x7x448xbf16>
    tpu.vector_store %arg5[%c0_11, %c0_12, %c0_13], %6 {strides = array<i32>} : memref<2x7x448xbf16, #tpu.memory_space<vmem>>, vector<2x7x448xbf16>,
    return
  }
  func.func @transform_0(%arg0: i32) -> (i32, i32, i32) {
    %c0_i32 = arith.constant 0 : i32
    %c0_i32_0 = arith.constant 0 : i32
    %c0_i32_1 = arith.constant 0 : i32
    return %arg0, %c0_i32, %c0_i32_0 : i32, i32, i32
  }
  func.func @transform_1(%arg0: i32) -> (i32, i32, i32) {
    %c0_i32 = arith.constant 0 : i32
    %c0_i32_0 = arith.constant 0 : i32
    %c0_i32_1 = arith.constant 0 : i32
    return %arg0, %c0_i32, %c0_i32_0 : i32, i32, i32
  }
  func.func @transform_2(%arg0: i32) -> (i32, i32, i32) {
    %c0_i32 = arith.constant 0 : i32
    %c0_i32_0 = arith.constant 0 : i32
    %c0_i32_1 = arith.constant 0 : i32
    return %arg0, %c0_i32, %c0_i32_0 : i32, i32, i32
  }
  func.func @transform_3(%arg0: i32) -> (i32, i32, i32) {
    %c0_i32 = arith.constant 0 : i32
    %c0_i32_0 = arith.constant 0 : i32
    %c0_i32_1 = arith.constant 0 : i32
    return %arg0, %c0_i32, %c0_i32_0 : i32, i32, i32
  }
  func.func @transform_4(%arg0: i32) -> (i32, i32, i32) {
    %c0_i32 = arith.constant 0 : i32
    %c0_i32_0 = arith.constant 0 : i32
    %c0_i32_1 = arith.constant 0 : i32
    return %arg0, %c0_i32, %c0_i32_0 : i32, i32, i32
  }
}

module attributes {stable_mosaic.version = 11 : i64} {
  func.func @_fused_matmul_kernel(%arg0: i32, %arg1: memref<2x3136xbf16, #tpu.memory_space<vmem>>, %arg2: memref<3136x128xbf16, #tpu.memory_space<vmem>>, %arg3: memref<1x128xf32, #tpu.memory_space<vmem>>, %arg4: memref<2x128xbf16, #tpu.memory_space<vmem>>) attributes {dimension_semantics = [#tpu.dimension_semantics<parallel>], iteration_bounds = array<i64: 1>, scalar_prefetch = 0 : i64, scratch_operands = 0 : i64, tpu.core_type = #tpu.core_type<tc>, window_params = [{transform_indices = @transform_0, window_bounds = array<i64: 2, 3136>}, {pipeline_mode = #tpu.pipeline_mode<synchronous>, transform_indices = @transform_1, window_bounds = array<i64: 3136, 128>}, {pipeline_mode = #tpu.pipeline_mode<synchronous>, transform_indices = @transform_2, window_bounds = array<i64: 1, 128>}, {transform_indices = @transform_3, window_bounds = array<i64: 2, 128>}]} {
    %c0 = arith.constant 0 : index
    %c0_0 = arith.constant 0 : index
    %0 = vector.load %arg1[%c0, %c0_0] : memref<2x3136xbf16, #tpu.memory_space<vmem>>, vector<2x3136xbf16>
    %c0_1 = arith.constant 0 : index
    %c0_2 = arith.constant 0 : index
    %1 = vector.load %arg2[%c0_1, %c0_2] : memref<3136x128xbf16, #tpu.memory_space<vmem>>, vector<3136x128xbf16>
    %cst = arith.constant dense<0.000000e+00> : vector<2x128xf32>
    %2 = tpu.matmul %0, %1, %cst {dimension_numbers = #tpu.dot_dimension_numbers<[1], [0], [0], [1], [0, 0, 1, 1], [], []>} : vector<2x3136xbf16>, vector<3136x128xbf16>, vector<2x128xf32> -> vector<2x128xf32>
    %c0_3 = arith.constant 0 : index
    %c0_4 = arith.constant 0 : index
    %3 = vector.load %arg3[%c0_3, %c0_4] : memref<1x128xf32, #tpu.memory_space<vmem>>, vector<1x128xf32>
    %4 = vector.broadcast %3 : vector<1x128xf32> to vector<2x128xf32>
    %5 = arith.addf %2, %4 : vector<2x128xf32>
    %cst_5 = arith.constant 0.000000e+00 : f32
    %6 = vector.broadcast %cst_5 : f32 to vector<2x128xf32>
    %7 = arith.maximumf %5, %6 : vector<2x128xf32>
    %8 = arith.truncf %7 : vector<2x128xf32> to vector<2x128xbf16>
    %c0_6 = arith.constant 0 : index
    %c0_7 = arith.constant 0 : index
    %9 = vector.load %arg4[%c0_6, %c0_7] : memref<2x128xbf16, #tpu.memory_space<vmem>>, vector<2x128xbf16>
    tpu.vector_store %arg4[%c0_6, %c0_7], %8 {strides = array<i32>} : memref<2x128xbf16, #tpu.memory_space<vmem>>, vector<2x128xbf16>,
    return
  }
  func.func @transform_0(%arg0: i32) -> (i32, i32) {
    %c0_i32 = arith.constant 0 : i32
    %c0_i32_0 = arith.constant 0 : i32
    return %arg0, %c0_i32 : i32, i32
  }
  func.func @transform_1(%arg0: i32) -> (i32, i32) {
    %c0_i32 = arith.constant 0 : i32
    %c0_i32_0 = arith.constant 0 : i32
    %c0_i32_1 = arith.constant 0 : i32
    return %c0_i32, %c0_i32_0 : i32, i32
  }
  func.func @transform_2(%arg0: i32) -> (i32, i32) {
    %c0_i32 = arith.constant 0 : i32
    %c0_i32_0 = arith.constant 0 : i32
    %c0_i32_1 = arith.constant 0 : i32
    return %c0_i32, %c0_i32_0 : i32, i32
  }
  func.func @transform_3(%arg0: i32) -> (i32, i32) {
    %c0_i32 = arith.constant 0 : i32
    %c0_i32_0 = arith.constant 0 : i32
    return %arg0, %c0_i32 : i32, i32
  }
}

module attributes {stable_mosaic.version = 11 : i64} {
  func.func @_fused_matmul_kernel(%arg0: i32, %arg1: memref<2x128xbf16, #tpu.memory_space<vmem>>, %arg2: memref<128x128xbf16, #tpu.memory_space<vmem>>, %arg3: memref<1x128xf32, #tpu.memory_space<vmem>>, %arg4: memref<2x128xf32, #tpu.memory_space<vmem>>) attributes {dimension_semantics = [#tpu.dimension_semantics<parallel>], iteration_bounds = array<i64: 1>, scalar_prefetch = 0 : i64, scratch_operands = 0 : i64, tpu.core_type = #tpu.core_type<tc>, window_params = [{transform_indices = @transform_0, window_bounds = array<i64: 2, 128>}, {pipeline_mode = #tpu.pipeline_mode<synchronous>, transform_indices = @transform_1, window_bounds = array<i64: 128, 128>}, {pipeline_mode = #tpu.pipeline_mode<synchronous>, transform_indices = @transform_2, window_bounds = array<i64: 1, 128>}, {transform_indices = @transform_3, window_bounds = array<i64: 2, 128>}]} {
    %c0 = arith.constant 0 : index
    %c0_0 = arith.constant 0 : index
    %0 = vector.load %arg1[%c0, %c0_0] : memref<2x128xbf16, #tpu.memory_space<vmem>>, vector<2x128xbf16>
    %c0_1 = arith.constant 0 : index
    %c0_2 = arith.constant 0 : index
    %1 = vector.load %arg2[%c0_1, %c0_2] : memref<128x128xbf16, #tpu.memory_space<vmem>>, vector<128x128xbf16>
    %cst = arith.constant dense<0.000000e+00> : vector<2x128xf32>
    %2 = tpu.matmul %0, %1, %cst {dimension_numbers = #tpu.dot_dimension_numbers<[1], [0], [0], [1], [0, 0, 1, 1], [], []>} : vector<2x128xbf16>, vector<128x128xbf16>, vector<2x128xf32> -> vector<2x128xf32>
    %c0_3 = arith.constant 0 : index
    %c0_4 = arith.constant 0 : index
    %3 = vector.load %arg3[%c0_3, %c0_4] : memref<1x128xf32, #tpu.memory_space<vmem>>, vector<1x128xf32>
    %4 = vector.broadcast %3 : vector<1x128xf32> to vector<2x128xf32>
    %5 = arith.addf %2, %4 : vector<2x128xf32>
    %c0_5 = arith.constant 0 : index
    %c0_6 = arith.constant 0 : index
    %6 = vector.load %arg4[%c0_5, %c0_6] : memref<2x128xf32, #tpu.memory_space<vmem>>, vector<2x128xf32>
    tpu.vector_store %arg4[%c0_5, %c0_6], %5 {strides = array<i32>} : memref<2x128xf32, #tpu.memory_space<vmem>>, vector<2x128xf32>,
    return
  }
  func.func @transform_0(%arg0: i32) -> (i32, i32) {
    %c0_i32 = arith.constant 0 : i32
    %c0_i32_0 = arith.constant 0 : i32
    return %arg0, %c0_i32 : i32, i32
  }
  func.func @transform_1(%arg0: i32) -> (i32, i32) {
    %c0_i32 = arith.constant 0 : i32
    %c0_i32_0 = arith.constant 0 : i32
    %c0_i32_1 = arith.constant 0 : i32
    return %c0_i32, %c0_i32_0 : i32, i32
  }
  func.func @transform_2(%arg0: i32) -> (i32, i32) {
    %c0_i32 = arith.constant 0 : i32
    %c0_i32_0 = arith.constant 0 : i32
    %c0_i32_1 = arith.constant 0 : i32
    return %c0_i32, %c0_i32_0 : i32, i32
  }
  func.func @transform_3(%arg0: i32) -> (i32, i32) {
    %c0_i32 = arith.constant 0 : i32
    %c0_i32_0 = arith.constant 0 : i32
    return %arg0, %c0_i32 : i32, i32
  }
}

</mosaic_0001>

<llo_original>
// kernel: simple_cnn_forward.7
$region0: #{simple_cnn_forward.7}
  #allocation0 [shape = 'u32[]', space=smem, size = 0x4, offset = 0x4, fixed_abs, tag = 'smem constant byte address 0x4 - core index']
  #allocation1 [shape = 'u32[144,128]{1,0:T(1,128)}', space=vmem, size = 0x12000, scoped, tag = 'internal scratch']
  %s0 = inlined_call_operand.vmem [shape: bf16[2,14,448], index: 0, kind: input, shape index: {}]
  %s1 = inlined_call_operand.vmem [shape: bf16[2,14,448], index: 1, kind: input, shape index: {}]
  %s2 = inlined_call_operand.vmem [shape: bf16[2,14,448], index: 2, kind: input, shape index: {}]
  %s3 = inlined_call_operand.vmem [shape: bf16[2,14,448], index: 3, kind: input, shape index: {}]
  %s4 = inlined_call_operand.vmem [shape: bf16[2,14,448], index: 4, kind: output, shape index: {}]
  %s5 = sld [smem:[#allocation0]]
  $region26: #{simple_cnn_forward.7} parent=0
    _
  %s7 = ssub.s32 1, %s5
  %s8 = scalar_select 0, %s7, %s5
  // Predicated region
  $region2: #{simple_cnn_forward.7} parent=0 // pred_check
    _
  $region3: #{simple_cnn_forward.7} parent=0 // pred_check_branch
    %10 = sbr.rel (0) target = $region5
  $region4: #{simple_cnn_forward.7} parent=0 // pred_region
    _
  $region5: #{simple_cnn_forward.7} parent=0 // pred_fallthru
    _
  // Predicated region
  $region6: #{simple_cnn_forward.7} parent=0 // pred_check
    _
  $region7: #{simple_cnn_forward.7} parent=0 // pred_check_branch
    %12 = sbr.rel (0) target = $region9
  $region8: #{simple_cnn_forward.7} parent=0 // pred_region
    _
  $region9: #{simple_cnn_forward.7} parent=0 // pred_fallthru
    _
  // Predicated region
  $region10: #{simple_cnn_forward.7} parent=0 // pred_check
    _
  $region11: #{simple_cnn_forward.7} parent=0 // pred_check_branch
    %14 = sbr.rel (0) target = $region13
  $region12: #{simple_cnn_forward.7} parent=0 // pred_region
    _
  $region13: #{simple_cnn_forward.7} parent=0 // pred_fallthru
    _
  // Predicated region
  $region14: #{simple_cnn_forward.7} parent=0 // pred_check
    _
  $region15: #{simple_cnn_forward.7} parent=0 // pred_check_branch
    %16 = sbr.rel (0) target = $region17
  $region16: #{simple_cnn_forward.7} parent=0 // pred_region
    _
  $region17: #{simple_cnn_forward.7} parent=0 // pred_fallthru
    _
  %v17 = vld [vmem:[%s0] sm:$0xff]
  %v18 = vld [vmem:[%s0 + $0x8] sm:$0xff]
  %v19 = vld [vmem:[%s0 + $0x10] sm:$0x77]
  %v20 = vld [vmem:[%s0 + $0x18] sm:$0x77]
  %v21 = vld [vmem:[%s0 + $0x20] sm:$0xff]
  %v22 = vld [vmem:[%s0 + $0x28] sm:$0xff]
  %v23 = vld [vmem:[%s0 + $0x30] sm:$0x77]
  %v24 = vld [vmem:[%s0 + $0x38] sm:$0x77]
  %v25 = vld [vmem:[%s1] sm:$0xff]
  %v26 = vld [vmem:[%s1 + $0x8] sm:$0xff]
  %v27 = vld [vmem:[%s1 + $0x10] sm:$0x77]
  %v28 = vld [vmem:[%s1 + $0x18] sm:$0x77]
  %v29 = vld [vmem:[%s1 + $0x20] sm:$0xff]
  %v30 = vld [vmem:[%s1 + $0x28] sm:$0xff]
  %v31 = vld [vmem:[%s1 + $0x30] sm:$0x77]
  %v32 = vld [vmem:[%s1 + $0x38] sm:$0x77]
  %v33 = vmax.bf16 %v17, %v25
  %v34 = vmax.bf16 %v18, %v26
  %v35 = vmax.bf16 %v19, %v27
  %v36 = vmax.bf16 %v20, %v28
  %v37 = vmax.bf16 %v21, %v29
  %v38 = vmax.bf16 %v22, %v30
  %v39 = vmax.bf16 %v23, %v31
  %v40 = vmax.bf16 %v24, %v32
  %v41 = vld [vmem:[%s2] sm:$0xff]
  %v42 = vld [vmem:[%s2 + $0x8] sm:$0xff]
  %v43 = vld [vmem:[%s2 + $0x10] sm:$0x77]
  %v44 = vld [vmem:[%s2 + $0x18] sm:$0x77]
  %v45 = vld [vmem:[%s2 + $0x20] sm:$0xff]
  %v46 = vld [vmem:[%s2 + $0x28] sm:$0xff]
  %v47 = vld [vmem:[%s2 + $0x30] sm:$0x77]
  %v48 = vld [vmem:[%s2 + $0x38] sm:$0x77]
  %v49 = vld [vmem:[%s3] sm:$0xff]
  %v50 = vld [vmem:[%s3 + $0x8] sm:$0xff]
  %v51 = vld [vmem:[%s3 + $0x10] sm:$0x77]
  %v52 = vld [vmem:[%s3 + $0x18] sm:$0x77]
  %v53 = vld [vmem:[%s3 + $0x20] sm:$0xff]
  %v54 = vld [vmem:[%s3 + $0x28] sm:$0xff]
  %v55 = vld [vmem:[%s3 + $0x30] sm:$0x77]
  %v56 = vld [vmem:[%s3 + $0x38] sm:$0x77]
  %v57 = vmax.bf16 %v41, %v49
  %v58 = vmax.bf16 %v42, %v50
  %v59 = vmax.bf16 %v43, %v51
  %v60 = vmax.bf16 %v44, %v52
  %v61 = vmax.bf16 %v45, %v53
  %v62 = vmax.bf16 %v46, %v54
  %v63 = vmax.bf16 %v47, %v55
  %v64 = vmax.bf16 %v48, %v56
  %v65 = vmax.bf16 %v33, %v57
  %v66 = vmax.bf16 %v34, %v58
  %v67 = vmax.bf16 %v35, %v59
  %v68 = vmax.bf16 %v36, %v60
  %v69 = vmax.bf16 %v37, %v61
  %v70 = vmax.bf16 %v38, %v62
  %v71 = vmax.bf16 %v39, %v63
  %v72 = vmax.bf16 %v40, %v64
  %73 = vst [vmem:[%s4] sm:$0xff] %v65
  %vm74 = vcmask 1043456
  %vm75 = vcmask 523268
  %vm76 = vmor %vm75, %vm74
  %77 = vst.msk [vmem:[%s4 + $0x8] sm:$0xff] %vm76, %v66
  %78 = vst [vmem:[%s4 + $0x10] sm:$0x77] %v67
  %vm79 = vcmask 1042432
  %vm80 = vcmask 522244
  %vm81 = vmor %vm80, %vm79
  %82 = vst.msk [vmem:[%s4 + $0x18] sm:$0x77] %vm81, %v68
  %83 = vst [vmem:[%s4 + $0x20] sm:$0xff] %v69
  %84 = vst.msk [vmem:[%s4 + $0x28] sm:$0xff] %vm76, %v70
  %85 = vst [vmem:[%s4 + $0x30] sm:$0x77] %v71
  %86 = vst.msk [vmem:[%s4 + $0x38] sm:$0x77] %vm81, %v72
  // Predicated region
  $region18: #{simple_cnn_forward.7} parent=0 // pred_check
    _
  $region19: #{simple_cnn_forward.7} parent=0 // pred_check_branch
    %88 = sbr.rel (0) target = $region21
  $region20: #{simple_cnn_forward.7} parent=0 // pred_region
    _
  $region21: #{simple_cnn_forward.7} parent=0 // pred_fallthru
    _
  // Predicated region
  $region22: #{simple_cnn_forward.7} parent=0 // pred_check
    _
  $region23: #{simple_cnn_forward.7} parent=0 // pred_check_branch
    %90 = sbr.rel (0) target = $region25
  $region24: #{simple_cnn_forward.7} parent=0 // pred_region
    _
  $region25: #{simple_cnn_forward.7} parent=0 // pred_fallthru
    _

// kernel: simple_cnn_forward.6
$region0: #{simple_cnn_forward.6}
  #allocation0 [shape = 'u32[]', space=smem, size = 0x4, offset = 0x4, fixed_abs, tag = 'smem constant byte address 0x4 - core index']
  #allocation1 [shape = 'u32[144,128]{1,0:T(1,128)}', space=vmem, size = 0x12000, scoped, tag = 'internal scratch']
  %s0 = inlined_call_operand.vmem [shape: bf16[1568,9], index: 0, kind: input, shape index: {}]
  %s1 = inlined_call_operand.hbm [shape: bf16[9,128], index: 1, kind: input, shape index: {}]
  %s2 = inlined_call_operand.hbm [shape: f32[1,128], index: 2, kind: input, shape index: {}]
  %s3 = inlined_call_operand.vmem [shape: bf16[1568,128], index: 3, kind: output, shape index: {}]
  %s4 = sld [smem:[#allocation0]]
  $region30: #{simple_cnn_forward.6} parent=0
    _
  %s6 = ssub.s32 1, %s4
  %s7 = scalar_select 0, %s6, %s4
  $region1: #{simple_cnn_forward.6} parent=0
    #allocation2 [shape = 'u8[4096]{0}', space=vmem, size = 0x1000, scoped, tag = 'input window, operand 1, single buffered']
    #allocation3 [shape = 's32[1]{0}', space=sflag, size = 0x4, scoped, tag = 'scoped memory for simple_cnn_forward.6']
    #allocation4 [shape = 'u8[512]{0}', space=vmem, size = 0x400, scoped, tag = 'input window, operand 2, single buffered']
    #allocation5 [shape = 's32[1]{0}', space=sflag, size = 0x4, scoped, tag = 'scoped memory for simple_cnn_forward.6']
    %8 = vsyncpa [#allocation3], 0
    %9 = vsyncpa [#allocation5], 0
    // Predicated region
    $region2: #{simple_cnn_forward.6} parent=1 // pred_check
      _
    $region3: #{simple_cnn_forward.6} parent=1 // pred_check_branch
      %11 = sbr.rel (0) target = $region5
    $region4: #{simple_cnn_forward.6} parent=1 // pred_region
      _
    $region5: #{simple_cnn_forward.6} parent=1 // pred_fallthru
      _
    // Predicated region
    $region6: #{simple_cnn_forward.6} parent=1 // pred_check
      _
    $region7: #{simple_cnn_forward.6} parent=1 // pred_check_branch
      %13 = sbr.rel (0) target = $region9
    $region8: #{simple_cnn_forward.6} parent=1 // pred_region
      %s15 = ssub.s32 128, 128
      %16 = vsyncadd [#allocation3], %s15
      %s17 = sshll.u32 [#allocation2], 4
      %s18 = int_to_ptr.vmem [resolvable:$true] %s17
      %23 = dma.hbm_to_vmem [thread:$0]  %s1, 128, %s18, [#allocation3], 64, 64, 4
    $region9: #{simple_cnn_forward.6} parent=1 // pred_fallthru
      _
    // Predicated region
    $region10: #{simple_cnn_forward.6} parent=1 // pred_check
      _
    $region11: #{simple_cnn_forward.6} parent=1 // pred_check_branch
      %25 = sbr.rel (0) target = $region13
    $region12: #{simple_cnn_forward.6} parent=1 // pred_region
      %s27 = ssub.s32 16, 16
      %28 = vsyncadd [#allocation5], %s27
      %s30 = sshll.u32 [#allocation4], 4
      %s31 = int_to_ptr.vmem [resolvable:$true] %s30
      %33 = dma.hbm_to_vmem [thread:$0]  %s2, 16, %s31, [#allocation5]
    $region13: #{simple_cnn_forward.6} parent=1 // pred_fallthru
      _
    // Predicated region
    $region14: #{simple_cnn_forward.6} parent=1 // pred_check
      _
    $region15: #{simple_cnn_forward.6} parent=1 // pred_check_branch
      %35 = sbr.rel (0) target = $region17
    $region16: #{simple_cnn_forward.6} parent=1 // pred_region
      %36 = dma.done [#allocation3], 128
    $region17: #{simple_cnn_forward.6} parent=1 // pred_fallthru
      _
    // Predicated region
    $region18: #{simple_cnn_forward.6} parent=1 // pred_check
      _
    $region19: #{simple_cnn_forward.6} parent=1 // pred_check_branch
      %38 = sbr.rel (0) target = $region21
    $region20: #{simple_cnn_forward.6} parent=1 // pred_region
      %39 = dma.done [#allocation5], 16
    $region21: #{simple_cnn_forward.6} parent=1 // pred_fallthru
      _
    %v41 = vld [vmem:[%s0] sm:$0xf]
    %v42 = vld [vmem:[%s0 + $0x4] sm:$0xf]
    %v43 = vld [vmem:[%s0 + $0x8] sm:$0xf]
    %v44 = vld [vmem:[%s0 + $0xc] sm:$0xf]
    %v45 = vld [vmem:[%s0 + $0x10] sm:$0xf]
    %v46 = vld [vmem:[%s0 + $0x14] sm:$0xf]
    %v47 = vld [vmem:[%s0 + $0x18] sm:$0xf]
    %v48 = vld [vmem:[%s0 + $0x1c] sm:$0xf]
    %v49 = vld [vmem:[%s0 + $0x20] sm:$0xf]
    %v50 = vld [vmem:[%s0 + $0x24] sm:$0xf]
    %v51 = vld [vmem:[%s0 + $0x28] sm:$0xf]
    %v52 = vld [vmem:[%s0 + $0x2c] sm:$0xf]
    %v53 = vld [vmem:[%s0 + $0x30] sm:$0xf]
    %v54 = vld [vmem:[%s0 + $0x34] sm:$0xf]
    %v55 = vld [vmem:[%s0 + $0x38] sm:$0xf]
    %v56 = vld [vmem:[%s0 + $0x3c] sm:$0xf]
    %v57 = vld [vmem:[%s0 + $0x40] sm:$0xf]
    %v58 = vld [vmem:[%s0 + $0x44] sm:$0xf]
    %v59 = vld [vmem:[%s0 + $0x48] sm:$0xf]
    %v60 = vld [vmem:[%s0 + $0x4c] sm:$0xf]
    %v61 = vld [vmem:[%s0 + $0x50] sm:$0xf]
    %v62 = vld [vmem:[%s0 + $0x54] sm:$0xf]
    %v63 = vld [vmem:[%s0 + $0x58] sm:$0xf]
    %v64 = vld [vmem:[%s0 + $0x5c] sm:$0xf]
    %v65 = vld [vmem:[%s0 + $0x60] sm:$0xf]
    %v66 = vld [vmem:[%s0 + $0x64] sm:$0xf]
    %v67 = vld [vmem:[%s0 + $0x68] sm:$0xf]
    %v68 = vld [vmem:[%s0 + $0x6c] sm:$0xf]
    %v69 = vld [vmem:[%s0 + $0x70] sm:$0xf]
    %v70 = vld [vmem:[%s0 + $0x74] sm:$0xf]
    %v71 = vld [vmem:[%s0 + $0x78] sm:$0xf]
    %v72 = vld [vmem:[%s0 + $0x7c] sm:$0xf]
    %v73 = vld [vmem:[%s0 + $0x80] sm:$0xf]
    %v74 = vld [vmem:[%s0 + $0x84] sm:$0xf]
    %v75 = vld [vmem:[%s0 + $0x88] sm:$0xf]
    %v76 = vld [vmem:[%s0 + $0x8c] sm:$0xf]
    %v77 = vld [vmem:[%s0 + $0x90] sm:$0xf]
    %v78 = vld [vmem:[%s0 + $0x94] sm:$0xf]
    %v79 = vld [vmem:[%s0 + $0x98] sm:$0xf]
    %v80 = vld [vmem:[%s0 + $0x9c] sm:$0xf]
    %v81 = vld [vmem:[%s0 + $0xa0] sm:$0xf]
    %v82 = vld [vmem:[%s0 + $0xa4] sm:$0xf]
    %v83 = vld [vmem:[%s0 + $0xa8] sm:$0xf]
    %v84 = vld [vmem:[%s0 + $0xac] sm:$0xf]
    %v85 = vld [vmem:[%s0 + $0xb0] sm:$0xf]
    %v86 = vld [vmem:[%s0 + $0xb4] sm:$0xf]
    %v87 = vld [vmem:[%s0 + $0xb8] sm:$0xf]
    %v88 = vld [vmem:[%s0 + $0xbc] sm:$0xf]
    %v89 = vld [vmem:[%s0 + $0xc0] sm:$0xf]
    %v90 = vld [vmem:[%s0 + $0xc4] sm:$0xf]
    %v91 = vld [vmem:[%s0 + $0xc8] sm:$0xf]
    %v92 = vld [vmem:[%s0 + $0xcc] sm:$0xf]
    %v93 = vld [vmem:[%s0 + $0xd0] sm:$0xf]
    %v94 = vld [vmem:[%s0 + $0xd4] sm:$0xf]
    %v95 = vld [vmem:[%s0 + $0xd8] sm:$0xf]
    %v96 = vld [vmem:[%s0 + $0xdc] sm:$0xf]
    %v97 = vld [vmem:[%s0 + $0xe0] sm:$0xf]
    %v98 = vld [vmem:[%s0 + $0xe4] sm:$0xf]
    %v99 = vld [vmem:[%s0 + $0xe8] sm:$0xf]
    %v100 = vld [vmem:[%s0 + $0xec] sm:$0xf]
    %v101 = vld [vmem:[%s0 + $0xf0] sm:$0xf]
    %v102 = vld [vmem:[%s0 + $0xf4] sm:$0xf]
    %v103 = vld [vmem:[%s0 + $0xf8] sm:$0xf]
    %v104 = vld [vmem:[%s0 + $0xfc] sm:$0xf]
    %v105 = vld [vmem:[%s0 + $0x100] sm:$0xf]
    %v106 = vld [vmem:[%s0 + $0x104] sm:$0xf]
    %v107 = vld [vmem:[%s0 + $0x108] sm:$0xf]
    %v108 = vld [vmem:[%s0 + $0x10c] sm:$0xf]
    %v109 = vld [vmem:[%s0 + $0x110] sm:$0xf]
    %v110 = vld [vmem:[%s0 + $0x114] sm:$0xf]
    %v111 = vld [vmem:[%s0 + $0x118] sm:$0xf]
    %v112 = vld [vmem:[%s0 + $0x11c] sm:$0xf]
    %v113 = vld [vmem:[%s0 + $0x120] sm:$0xf]
    %v114 = vld [vmem:[%s0 + $0x124] sm:$0xf]
    %v115 = vld [vmem:[%s0 + $0x128] sm:$0xf]
    %v116 = vld [vmem:[%s0 + $0x12c] sm:$0xf]
    %v117 = vld [vmem:[%s0 + $0x130] sm:$0xf]
    %v118 = vld [vmem:[%s0 + $0x134] sm:$0xf]
    %v119 = vld [vmem:[%s0 + $0x138] sm:$0xf]
    %v120 = vld [vmem:[%s0 + $0x13c] sm:$0xf]
    %v121 = vld [vmem:[%s0 + $0x140] sm:$0xf]
    %v122 = vld [vmem:[%s0 + $0x144] sm:$0xf]
    %v123 = vld [vmem:[%s0 + $0x148] sm:$0xf]
    %v124 = vld [vmem:[%s0 + $0x14c] sm:$0xf]
    %v125 = vld [vmem:[%s0 + $0x150] sm:$0xf]
    %v126 = vld [vmem:[%s0 + $0x154] sm:$0xf]
    %v127 = vld [vmem:[%s0 + $0x158] sm:$0xf]
    %v128 = vld [vmem:[%s0 + $0x15c] sm:$0xf]
    %v129 = vld [vmem:[%s0 + $0x160] sm:$0xf]
    %v130 = vld [vmem:[%s0 + $0x164] sm:$0xf]
    %v131 = vld [vmem:[%s0 + $0x168] sm:$0xf]
    %v132 = vld [vmem:[%s0 + $0x16c] sm:$0xf]
    %v133 = vld [vmem:[%s0 + $0x170] sm:$0xf]
    %v134 = vld [vmem:[%s0 + $0x174] sm:$0xf]
    %v135 = vld [vmem:[%s0 + $0x178] sm:$0xf]
    %v136 = vld [vmem:[%s0 + $0x17c] sm:$0xf]
    %v137 = vld [vmem:[%s0 + $0x180] sm:$0xf]
    %v138 = vld [vmem:[%s0 + $0x184] sm:$0xf]
    %v139 = vld [vmem:[%s0 + $0x188] sm:$0xf]
    %v140 = vld [vmem:[%s0 + $0x18c] sm:$0xf]
    %v141 = vld [vmem:[%s0 + $0x190] sm:$0xf]
    %v142 = vld [vmem:[%s0 + $0x194] sm:$0xf]
    %v143 = vld [vmem:[%s0 + $0x198] sm:$0xf]
    %v144 = vld [vmem:[%s0 + $0x19c] sm:$0xf]
    %v145 = vld [vmem:[%s0 + $0x1a0] sm:$0xf]
    %v146 = vld [vmem:[%s0 + $0x1a4] sm:$0xf]
    %v147 = vld [vmem:[%s0 + $0x1a8] sm:$0xf]
    %v148 = vld [vmem:[%s0 + $0x1ac] sm:$0xf]
    %v149 = vld [vmem:[%s0 + $0x1b0] sm:$0xf]
    %v150 = vld [vmem:[%s0 + $0x1b4] sm:$0xf]
    %v151 = vld [vmem:[%s0 + $0x1b8] sm:$0xf]
    %v152 = vld [vmem:[%s0 + $0x1bc] sm:$0xf]
    %v153 = vld [vmem:[%s0 + $0x1c0] sm:$0xf]
    %v154 = vld [vmem:[%s0 + $0x1c4] sm:$0xf]
    %v155 = vld [vmem:[%s0 + $0x1c8] sm:$0xf]
    %v156 = vld [vmem:[%s0 + $0x1cc] sm:$0xf]
    %v157 = vld [vmem:[%s0 + $0x1d0] sm:$0xf]
    %v158 = vld [vmem:[%s0 + $0x1d4] sm:$0xf]
    %v159 = vld [vmem:[%s0 + $0x1d8] sm:$0xf]
    %v160 = vld [vmem:[%s0 + $0x1dc] sm:$0xf]
    %v161 = vld [vmem:[%s0 + $0x1e0] sm:$0xf]
    %v162 = vld [vmem:[%s0 + $0x1e4] sm:$0xf]
    %v163 = vld [vmem:[%s0 + $0x1e8] sm:$0xf]
    %v164 = vld [vmem:[%s0 + $0x1ec] sm:$0xf]
    %v165 = vld [vmem:[%s0 + $0x1f0] sm:$0xf]
    %v166 = vld [vmem:[%s0 + $0x1f4] sm:$0xf]
    %v167 = vld [vmem:[%s0 + $0x1f8] sm:$0xf]
    %v168 = vld [vmem:[%s0 + $0x1fc] sm:$0xf]
    %v169 = vld [vmem:[%s0 + $0x200] sm:$0xf]
    %v170 = vld [vmem:[%s0 + $0x204] sm:$0xf]
    %v171 = vld [vmem:[%s0 + $0x208] sm:$0xf]
    %v172 = vld [vmem:[%s0 + $0x20c] sm:$0xf]
    %v173 = vld [vmem:[%s0 + $0x210] sm:$0xf]
    %v174 = vld [vmem:[%s0 + $0x214] sm:$0xf]
    %v175 = vld [vmem:[%s0 + $0x218] sm:$0xf]
    %v176 = vld [vmem:[%s0 + $0x21c] sm:$0xf]
    %v177 = vld [vmem:[%s0 + $0x220] sm:$0xf]
    %v178 = vld [vmem:[%s0 + $0x224] sm:$0xf]
    %v179 = vld [vmem:[%s0 + $0x228] sm:$0xf]
    %v180 = vld [vmem:[%s0 + $0x22c] sm:$0xf]
    %v181 = vld [vmem:[%s0 + $0x230] sm:$0xf]
    %v182 = vld [vmem:[%s0 + $0x234] sm:$0xf]
    %v183 = vld [vmem:[%s0 + $0x238] sm:$0xf]
    %v184 = vld [vmem:[%s0 + $0x23c] sm:$0xf]
    %v185 = vld [vmem:[%s0 + $0x240] sm:$0xf]
    %v186 = vld [vmem:[%s0 + $0x244] sm:$0xf]
    %v187 = vld [vmem:[%s0 + $0x248] sm:$0xf]
    %v188 = vld [vmem:[%s0 + $0x24c] sm:$0xf]
    %v189 = vld [vmem:[%s0 + $0x250] sm:$0xf]
    %v190 = vld [vmem:[%s0 + $0x254] sm:$0xf]
    %v191 = vld [vmem:[%s0 + $0x258] sm:$0xf]
    %v192 = vld [vmem:[%s0 + $0x25c] sm:$0xf]
    %v193 = vld [vmem:[%s0 + $0x260] sm:$0xf]
    %v194 = vld [vmem:[%s0 + $0x264] sm:$0xf]
    %v195 = vld [vmem:[%s0 + $0x268] sm:$0xf]
    %v196 = vld [vmem:[%s0 + $0x26c] sm:$0xf]
    %v197 = vld [vmem:[%s0 + $0x270] sm:$0xf]
    %v198 = vld [vmem:[%s0 + $0x274] sm:$0xf]
    %v199 = vld [vmem:[%s0 + $0x278] sm:$0xf]
    %v200 = vld [vmem:[%s0 + $0x27c] sm:$0xf]
    %v201 = vld [vmem:[%s0 + $0x280] sm:$0xf]
    %v202 = vld [vmem:[%s0 + $0x284] sm:$0xf]
    %v203 = vld [vmem:[%s0 + $0x288] sm:$0xf]
    %v204 = vld [vmem:[%s0 + $0x28c] sm:$0xf]
    %v205 = vld [vmem:[%s0 + $0x290] sm:$0xf]
    %v206 = vld [vmem:[%s0 + $0x294] sm:$0xf]
    %v207 = vld [vmem:[%s0 + $0x298] sm:$0xf]
    %v208 = vld [vmem:[%s0 + $0x29c] sm:$0xf]
    %v209 = vld [vmem:[%s0 + $0x2a0] sm:$0xf]
    %v210 = vld [vmem:[%s0 + $0x2a4] sm:$0xf]
    %v211 = vld [vmem:[%s0 + $0x2a8] sm:$0xf]
    %v212 = vld [vmem:[%s0 + $0x2ac] sm:$0xf]
    %v213 = vld [vmem:[%s0 + $0x2b0] sm:$0xf]
    %v214 = vld [vmem:[%s0 + $0x2b4] sm:$0xf]
    %v215 = vld [vmem:[%s0 + $0x2b8] sm:$0xf]
    %v216 = vld [vmem:[%s0 + $0x2bc] sm:$0xf]
    %v217 = vld [vmem:[%s0 + $0x2c0] sm:$0xf]
    %v218 = vld [vmem:[%s0 + $0x2c4] sm:$0xf]
    %v219 = vld [vmem:[%s0 + $0x2c8] sm:$0xf]
    %v220 = vld [vmem:[%s0 + $0x2cc] sm:$0xf]
    %v221 = vld [vmem:[%s0 + $0x2d0] sm:$0xf]
    %v222 = vld [vmem:[%s0 + $0x2d4] sm:$0xf]
    %v223 = vld [vmem:[%s0 + $0x2d8] sm:$0xf]
    %v224 = vld [vmem:[%s0 + $0x2dc] sm:$0xf]
    %v225 = vld [vmem:[%s0 + $0x2e0] sm:$0xf]
    %v226 = vld [vmem:[%s0 + $0x2e4] sm:$0xf]
    %v227 = vld [vmem:[%s0 + $0x2e8] sm:$0xf]
    %v228 = vld [vmem:[%s0 + $0x2ec] sm:$0xf]
    %v229 = vld [vmem:[%s0 + $0x2f0] sm:$0xf]
    %v230 = vld [vmem:[%s0 + $0x2f4] sm:$0xf]
    %v231 = vld [vmem:[%s0 + $0x2f8] sm:$0xf]
    %v232 = vld [vmem:[%s0 + $0x2fc] sm:$0xf]
    %v233 = vld [vmem:[%s0 + $0x300] sm:$0xf]
    %v234 = vld [vmem:[%s0 + $0x304] sm:$0xf]
    %v235 = vld [vmem:[%s0 + $0x308] sm:$0xf]
    %v236 = vld [vmem:[%s0 + $0x30c] sm:$0xf]
    %v237 = vld [vmem:[#allocation2] sm:$0xf]
    %v238 = vld [vmem:[#allocation2 + $0x4] sm:$0x1]
    %v239 = vld [vmem:[#allocation4] sm:$0x1]
    %v241 = vlaneseq
    %v242 = vshrl.u32 %v241, 7
    %v243 = vsub.s32 0, %v242
    %v244 = vrot.slane %v239, %v243
    %v442 = vunpack.c.l.b16 %v41
    %v443 = vunpack.c.l.b16 %v42
    %v444 = vunpack.c.l.b16 %v43
    %v445 = vunpack.c.l.b16 %v44
    %v446 = vunpack.c.l.b16 %v45
    %v447 = vunpack.c.l.b16 %v46
    %v448 = vunpack.c.l.b16 %v47
    %v449 = vunpack.c.l.b16 %v48
    %v450 = vunpack.c.l.b16 %v49
    %v451 = vunpack.c.l.b16 %v50
    %v452 = vunpack.c.l.b16 %v51
    %v453 = vunpack.c.l.b16 %v52
    %v454 = vunpack.c.l.b16 %v53
    %v455 = vunpack.c.l.b16 %v54
    %v456 = vunpack.c.l.b16 %v55
    %v457 = vunpack.c.l.b16 %v56
    %v458 = vunpack.c.l.b16 %v57
    %v459 = vunpack.c.l.b16 %v58
    %v460 = vunpack.c.l.b16 %v59
    %v461 = vunpack.c.l.b16 %v60
    %v462 = vunpack.c.l.b16 %v61
    %v463 = vunpack.c.l.b16 %v62
    %v464 = vunpack.c.l.b16 %v63
    %v465 = vunpack.c.l.b16 %v64
    %v466 = vunpack.c.l.b16 %v65
    %v467 = vunpack.c.l.b16 %v66
    %v468 = vunpack.c.l.b16 %v67
    %v469 = vunpack.c.l.b16 %v68
    %v470 = vunpack.c.l.b16 %v69
    %v471 = vunpack.c.l.b16 %v70
    %v472 = vunpack.c.l.b16 %v71
    %v473 = vunpack.c.l.b16 %v72
    %v474 = vunpack.c.l.b16 %v73
    %v475 = vunpack.c.l.b16 %v74
    %v476 = vunpack.c.l.b16 %v75
    %v477 = vunpack.c.l.b16 %v76
    %v478 = vunpack.c.l.b16 %v77
    %v479 = vunpack.c.l.b16 %v78
    %v480 = vunpack.c.l.b16 %v79
    %v481 = vunpack.c.l.b16 %v80
    %v482 = vunpack.c.l.b16 %v81
    %v483 = vunpack.c.l.b16 %v82
    %v484 = vunpack.c.l.b16 %v83
    %v485 = vunpack.c.l.b16 %v84
    %v486 = vunpack.c.l.b16 %v85
    %v487 = vunpack.c.l.b16 %v86
    %v488 = vunpack.c.l.b16 %v87
    %v489 = vunpack.c.l.b16 %v88
    %v490 = vunpack.c.l.b16 %v89
    %v491 = vunpack.c.l.b16 %v90
    %v492 = vunpack.c.l.b16 %v91
    %v493 = vunpack.c.l.b16 %v92
    %v494 = vunpack.c.l.b16 %v93
    %v495 = vunpack.c.l.b16 %v94
    %v496 = vunpack.c.l.b16 %v95
    %v497 = vunpack.c.l.b16 %v96
    %v498 = vunpack.c.l.b16 %v97
    %v499 = vunpack.c.l.b16 %v98
    %v500 = vunpack.c.l.b16 %v99
    %v501 = vunpack.c.l.b16 %v100
    %v502 = vunpack.c.l.b16 %v101
    %v503 = vunpack.c.l.b16 %v102
    %v504 = vunpack.c.l.b16 %v103
    %v505 = vunpack.c.l.b16 %v104
    %v506 = vunpack.c.l.b16 %v105
    %v507 = vunpack.c.l.b16 %v106
    %v508 = vunpack.c.l.b16 %v107
    %v509 = vunpack.c.l.b16 %v108
    %v510 = vunpack.c.l.b16 %v109
    %v511 = vunpack.c.l.b16 %v110
    %v512 = vunpack.c.l.b16 %v111
    %v513 = vunpack.c.l.b16 %v112
    %v514 = vunpack.c.l.b16 %v113
    %v515 = vunpack.c.l.b16 %v114
    %v516 = vunpack.c.l.b16 %v115
    %v517 = vunpack.c.l.b16 %v116
    %v518 = vunpack.c.l.b16 %v117
    %v519 = vunpack.c.l.b16 %v118
    %v520 = vunpack.c.l.b16 %v119
    %v521 = vunpack.c.l.b16 %v120
    %v522 = vunpack.c.l.b16 %v121
    %v523 = vunpack.c.l.b16 %v122
    %v524 = vunpack.c.l.b16 %v123
    %v525 = vunpack.c.l.b16 %v124
    %v526 = vunpack.c.l.b16 %v125
    %v527 = vunpack.c.l.b16 %v126
    %v528 = vunpack.c.l.b16 %v127
    %v529 = vunpack.c.l.b16 %v128
    %v530 = vunpack.c.l.b16 %v129
    %v531 = vunpack.c.l.b16 %v130
    %v532 = vunpack.c.l.b16 %v131
    %v533 = vunpack.c.l.b16 %v132
    %v534 = vunpack.c.l.b16 %v133
    %v535 = vunpack.c.l.b16 %v134
    %v536 = vunpack.c.l.b16 %v135
    %v537 = vunpack.c.l.b16 %v136
    %v538 = vunpack.c.l.b16 %v137
    %v539 = vunpack.c.l.b16 %v138
    %v540 = vunpack.c.l.b16 %v139
    %v541 = vunpack.c.l.b16 %v140
    %v542 = vunpack.c.l.b16 %v141
    %v543 = vunpack.c.l.b16 %v142
    %v544 = vunpack.c.l.b16 %v143
    %v545 = vunpack.c.l.b16 %v144
    %v546 = vunpack.c.l.b16 %v145
    %v547 = vunpack.c.l.b16 %v146
    %v548 = vunpack.c.l.b16 %v147
    %v549 = vunpack.c.l.b16 %v148
    %v550 = vunpack.c.l.b16 %v149
    %v551 = vunpack.c.l.b16 %v150
    %v552 = vunpack.c.l.b16 %v151
    %v553 = vunpack.c.l.b16 %v152
    %v554 = vunpack.c.l.b16 %v153
    %v555 = vunpack.c.l.b16 %v154
    %v556 = vunpack.c.l.b16 %v155
    %v557 = vunpack.c.l.b16 %v156
    %v558 = vunpack.c.l.b16 %v157
    %v559 = vunpack.c.l.b16 %v158
    %v560 = vunpack.c.l.b16 %v159
    %v561 = vunpack.c.l.b16 %v160
    %v562 = vunpack.c.l.b16 %v161
    %v563 = vunpack.c.l.b16 %v162
    %v564 = vunpack.c.l.b16 %v163
    %v565 = vunpack.c.l.b16 %v164
    %v566 = vunpack.c.l.b16 %v165
    %v567 = vunpack.c.l.b16 %v166
    %v568 = vunpack.c.l.b16 %v167
    %v569 = vunpack.c.l.b16 %v168
    %v570 = vunpack.c.l.b16 %v169
    %v571 = vunpack.c.l.b16 %v170
    %v572 = vunpack.c.l.b16 %v171
    %v573 = vunpack.c.l.b16 %v172
    %v574 = vunpack.c.l.b16 %v173
    %v575 = vunpack.c.l.b16 %v174
    %v576 = vunpack.c.l.b16 %v175
    %v577 = vunpack.c.l.b16 %v176
    %v578 = vunpack.c.l.b16 %v177
    %v579 = vunpack.c.l.b16 %v178
    %v580 = vunpack.c.l.b16 %v179
    %v581 = vunpack.c.l.b16 %v180
    %v582 = vunpack.c.l.b16 %v181
    %v583 = vunpack.c.l.b16 %v182
    %v584 = vunpack.c.l.b16 %v183
    %v585 = vunpack.c.l.b16 %v184
    %v586 = vunpack.c.l.b16 %v185
    %v587 = vunpack.c.l.b16 %v186
    %v588 = vunpack.c.l.b16 %v187
    %v589 = vunpack.c.l.b16 %v188
    %v590 = vunpack.c.l.b16 %v189
    %v591 = vunpack.c.l.b16 %v190
    %v592 = vunpack.c.l.b16 %v191
    %v593 = vunpack.c.l.b16 %v192
    %v594 = vunpack.c.l.b16 %v193
    %v595 = vunpack.c.l.b16 %v194
    %v596 = vunpack.c.l.b16 %v195
    %v597 = vunpack.c.l.b16 %v196
    %v598 = vunpack.c.l.b16 %v197
    %v599 = vunpack.c.l.b16 %v198
    %v600 = vunpack.c.l.b16 %v199
    %v601 = vunpack.c.l.b16 %v200
    %v602 = vunpack.c.l.b16 %v201
    %v603 = vunpack.c.l.b16 %v202
    %v604 = vunpack.c.l.b16 %v203
    %v605 = vunpack.c.l.b16 %v204
    %v606 = vunpack.c.l.b16 %v205
    %v607 = vunpack.c.l.b16 %v206
    %v608 = vunpack.c.l.b16 %v207
    %v609 = vunpack.c.l.b16 %v208
    %v610 = vunpack.c.l.b16 %v209
    %v611 = vunpack.c.l.b16 %v210
    %v612 = vunpack.c.l.b16 %v211
    %v613 = vunpack.c.l.b16 %v212
    %v614 = vunpack.c.l.b16 %v213
    %v615 = vunpack.c.l.b16 %v214
    %v616 = vunpack.c.l.b16 %v215
    %v617 = vunpack.c.l.b16 %v216
    %v618 = vunpack.c.l.b16 %v217
    %v619 = vunpack.c.l.b16 %v218
    %v620 = vunpack.c.l.b16 %v219
    %v621 = vunpack.c.l.b16 %v220
    %v622 = vunpack.c.l.b16 %v221
    %v623 = vunpack.c.l.b16 %v222
    %v624 = vunpack.c.l.b16 %v223
    %v625 = vunpack.c.l.b16 %v224
    %v626 = vunpack.c.l.b16 %v225
    %v627 = vunpack.c.l.b16 %v226
    %v628 = vunpack.c.l.b16 %v227
    %v629 = vunpack.c.l.b16 %v228
    %v630 = vunpack.c.l.b16 %v229
    %v631 = vunpack.c.l.b16 %v230
    %v632 = vunpack.c.l.b16 %v231
    %v633 = vunpack.c.l.b16 %v232
    %v634 = vunpack.c.l.b16 %v233
    %v635 = vunpack.c.l.b16 %v234
    %v636 = vunpack.c.l.b16 %v235
    %v637 = vunpack.c.l.b16 %v236
    %v638 = vpack.c.b16 %v443, %v442
    %v639 = vpack.c.b16 %v445, %v444
    %v640 = vpack.c.b16 %v447, %v446
    %v641 = vpack.c.b16 %v449, %v448
    %v642 = vpack.c.b16 %v451, %v450
    %v643 = vpack.c.b16 %v453, %v452
    %v644 = vpack.c.b16 %v455, %v454
    %v645 = vpack.c.b16 %v457, %v456
    %v646 = vpack.c.b16 %v459, %v458
    %v647 = vpack.c.b16 %v461, %v460
    %v648 = vpack.c.b16 %v463, %v462
    %v649 = vpack.c.b16 %v465, %v464
    %v650 = vpack.c.b16 %v467, %v466
    %v651 = vpack.c.b16 %v469, %v468
    %v652 = vpack.c.b16 %v471, %v470
    %v653 = vpack.c.b16 %v473, %v472
    %v654 = vpack.c.b16 %v475, %v474
    %v655 = vpack.c.b16 %v477, %v476
    %v656 = vpack.c.b16 %v479, %v478
    %v657 = vpack.c.b16 %v481, %v480
    %v658 = vpack.c.b16 %v483, %v482
    %v659 = vpack.c.b16 %v485, %v484
    %v660 = vpack.c.b16 %v487, %v486
    %v661 = vpack.c.b16 %v489, %v488
    %v662 = vpack.c.b16 %v491, %v490
    %v663 = vpack.c.b16 %v493, %v492
    %v664 = vpack.c.b16 %v495, %v494
    %v665 = vpack.c.b16 %v497, %v496
    %v666 = vpack.c.b16 %v499, %v498
    %v667 = vpack.c.b16 %v501, %v500
    %v668 = vpack.c.b16 %v503, %v502
    %v669 = vpack.c.b16 %v505, %v504
    %v670 = vpack.c.b16 %v507, %v506
    %v671 = vpack.c.b16 %v509, %v508
    %v672 = vpack.c.b16 %v511, %v510
    %v673 = vpack.c.b16 %v513, %v512
    %v674 = vpack.c.b16 %v515, %v514
    %v675 = vpack.c.b16 %v517, %v516
    %v676 = vpack.c.b16 %v519, %v518
    %v677 = vpack.c.b16 %v521, %v520
    %v678 = vpack.c.b16 %v523, %v522
    %v679 = vpack.c.b16 %v525, %v524
    %v680 = vpack.c.b16 %v527, %v526
    %v681 = vpack.c.b16 %v529, %v528
    %v682 = vpack.c.b16 %v531, %v530
    %v683 = vpack.c.b16 %v533, %v532
    %v684 = vpack.c.b16 %v535, %v534
    %v685 = vpack.c.b16 %v537, %v536
    %v686 = vpack.c.b16 %v539, %v538
    %v687 = vpack.c.b16 %v541, %v540
    %v688 = vpack.c.b16 %v543, %v542
    %v689 = vpack.c.b16 %v545, %v544
    %v690 = vpack.c.b16 %v547, %v546
    %v691 = vpack.c.b16 %v549, %v548
    %v692 = vpack.c.b16 %v551, %v550
    %v693 = vpack.c.b16 %v553, %v552
    %v694 = vpack.c.b16 %v555, %v554
    %v695 = vpack.c.b16 %v557, %v556
    %v696 = vpack.c.b16 %v559, %v558
    %v697 = vpack.c.b16 %v561, %v560
    %v698 = vpack.c.b16 %v563, %v562
    %v699 = vpack.c.b16 %v565, %v564
    %v700 = vpack.c.b16 %v567, %v566
    %v701 = vpack.c.b16 %v569, %v568
    %v702 = vpack.c.b16 %v571, %v570
    %v703 = vpack.c.b16 %v573, %v572
    %v704 = vpack.c.b16 %v575, %v574
    %v705 = vpack.c.b16 %v577, %v576
    %v706 = vpack.c.b16 %v579, %v578
    %v707 = vpack.c.b16 %v581, %v580
    %v708 = vpack.c.b16 %v583, %v582
    %v709 = vpack.c.b16 %v585, %v584
    %v710 = vpack.c.b16 %v587, %v586
    %v711 = vpack.c.b16 %v589, %v588
    %v712 = vpack.c.b16 %v591, %v590
    %v713 = vpack.c.b16 %v593, %v592
    %v714 = vpack.c.b16 %v595, %v594
    %v715 = vpack.c.b16 %v597, %v596
    %v716 = vpack.c.b16 %v599, %v598
    %v717 = vpack.c.b16 %v601, %v600
    %v718 = vpack.c.b16 %v603, %v602
    %v719 = vpack.c.b16 %v605, %v604
    %v720 = vpack.c.b16 %v607, %v606
    %v721 = vpack.c.b16 %v609, %v608
    %v722 = vpack.c.b16 %v611, %v610
    %v723 = vpack.c.b16 %v613, %v612
    %v724 = vpack.c.b16 %v615, %v614
    %v725 = vpack.c.b16 %v617, %v616
    %v726 = vpack.c.b16 %v619, %v618
    %v727 = vpack.c.b16 %v621, %v620
    %v728 = vpack.c.b16 %v623, %v622
    %v729 = vpack.c.b16 %v625, %v624
    %v730 = vpack.c.b16 %v627, %v626
    %v731 = vpack.c.b16 %v629, %v628
    %v732 = vpack.c.b16 %v631, %v630
    %v733 = vpack.c.b16 %v633, %v632
    %v734 = vpack.c.b16 %v635, %v634
    %v735 = vpack.c.b16 %v637, %v636
    %v738 = vunpack.c.l.b16 %v237
    %v739 = vunpack.c.l.b16 %v238
    %v740 = vpack.c.b16 %v739, %v738
    %vm741 = vcmask 72704
    %v743 = vsel %vm741, %v638, 0
    %v746 = vsel %vm741, %v639, 0
    %v749 = vsel %vm741, %v640, 0
    %v752 = vsel %vm741, %v641, 0
    %v755 = vsel %vm741, %v642, 0
    %v758 = vsel %vm741, %v643, 0
    %v761 = vsel %vm741, %v644, 0
    %v764 = vsel %vm741, %v645, 0
    %v767 = vsel %vm741, %v646, 0
    %v770 = vsel %vm741, %v647, 0
    %v773 = vsel %vm741, %v648, 0
    %v776 = vsel %vm741, %v649, 0
    %v779 = vsel %vm741, %v650, 0
    %v782 = vsel %vm741, %v651, 0
    %v785 = vsel %vm741, %v652, 0
    %v788 = vsel %vm741, %v653, 0
    %v791 = vsel %vm741, %v654, 0
    %v794 = vsel %vm741, %v655, 0
    %v797 = vsel %vm741, %v656, 0
    %v800 = vsel %vm741, %v657, 0
    %v803 = vsel %vm741, %v658, 0
    %v806 = vsel %vm741, %v659, 0
    %v809 = vsel %vm741, %v660, 0
    %v812 = vsel %vm741, %v661, 0
    %v815 = vsel %vm741, %v662, 0
    %v818 = vsel %vm741, %v663, 0
    %v821 = vsel %vm741, %v664, 0
    %v824 = vsel %vm741, %v665, 0
    %v827 = vsel %vm741, %v666, 0
    %v830 = vsel %vm741, %v667, 0
    %v833 = vsel %vm741, %v668, 0
    %v836 = vsel %vm741, %v669, 0
    %v839 = vsel %vm741, %v670, 0
    %v842 = vsel %vm741, %v671, 0
    %v845 = vsel %vm741, %v672, 0
    %v848 = vsel %vm741, %v673, 0
    %v851 = vsel %vm741, %v674, 0
    %v854 = vsel %vm741, %v675, 0
    %v857 = vsel %vm741, %v676, 0
    %v860 = vsel %vm741, %v677, 0
    %v863 = vsel %vm741, %v678, 0
    %v866 = vsel %vm741, %v679, 0
    %v869 = vsel %vm741, %v680, 0
    %v872 = vsel %vm741, %v681, 0
    %v875 = vsel %vm741, %v682, 0
    %v878 = vsel %vm741, %v683, 0
    %v881 = vsel %vm741, %v684, 0
    %v884 = vsel %vm741, %v685, 0
    %v887 = vsel %vm741, %v686, 0
    %v890 = vsel %vm741, %v687, 0
    %v893 = vsel %vm741, %v688, 0
    %v896 = vsel %vm741, %v689, 0
    %v899 = vsel %vm741, %v690, 0
    %v902 = vsel %vm741, %v691, 0
    %v905 = vsel %vm741, %v692, 0
    %v908 = vsel %vm741, %v693, 0
    %v911 = vsel %vm741, %v694, 0
    %v914 = vsel %vm741, %v695, 0
    %v917 = vsel %vm741, %v696, 0
    %v920 = vsel %vm741, %v697, 0
    %v923 = vsel %vm741, %v698, 0
    %v926 = vsel %vm741, %v699, 0
    %v929 = vsel %vm741, %v700, 0
    %v932 = vsel %vm741, %v701, 0
    %v935 = vsel %vm741, %v702, 0
    %v938 = vsel %vm741, %v703, 0
    %v941 = vsel %vm741, %v704, 0
    %v944 = vsel %vm741, %v705, 0
    %v947 = vsel %vm741, %v706, 0
    %v950 = vsel %vm741, %v707, 0
    %v953 = vsel %vm741, %v708, 0
    %v956 = vsel %vm741, %v709, 0
    %v959 = vsel %vm741, %v710, 0
    %v962 = vsel %vm741, %v711, 0
    %v965 = vsel %vm741, %v712, 0
    %v968 = vsel %vm741, %v713, 0
    %v971 = vsel %vm741, %v714, 0
    %v974 = vsel %vm741, %v715, 0
    %v977 = vsel %vm741, %v716, 0
    %v980 = vsel %vm741, %v717, 0
    %v983 = vsel %vm741, %v718, 0
    %v986 = vsel %vm741, %v719, 0
    %v989 = vsel %vm741, %v720, 0
    %v992 = vsel %vm741, %v721, 0
    %v995 = vsel %vm741, %v722, 0
    %v998 = vsel %vm741, %v723, 0
    %v1001 = vsel %vm741, %v724, 0
    %v1004 = vsel %vm741, %v725, 0
    %v1007 = vsel %vm741, %v726, 0
    %v1010 = vsel %vm741, %v727, 0
    %v1013 = vsel %vm741, %v728, 0
    %v1016 = vsel %vm741, %v729, 0
    %v1019 = vsel %vm741, %v730, 0
    %v1022 = vsel %vm741, %v731, 0
    %v1025 = vsel %vm741, %v732, 0
    %v1028 = vsel %vm741, %v733, 0
    %v1031 = vsel %vm741, %v734, 0
    %v1034 = vsel %vm741, %v735, 0
    %vm1036 = vcmask 1043456
    %vm1037 = vcmask 1044480
    %v1038 = vsel %vm1036, 4294967295, 65535
    %v1039 = vsel %vm1037, %v1038, 0
    %v1041 = vand.u32 %v740, %v1039
    %1043 = vmatprep.subr.bf16.mxu0 0
    %1044 = vmatpush1.bf16.msra.mxu0 %v1041
    %1045 = vmatprep.subr.bf16.mxu0 0
    %1046 = vmatpush1.bf16.msra.mxu0 0
    %1047 = vmatprep.subr.bf16.mxu0 0
    %1048 = vmatpush1.bf16.msra.mxu0 0
    %1049 = vmatprep.subr.bf16.mxu0 0
    %1050 = vmatpush1.bf16.msra.mxu0 0
    %1051 = vmatprep.subr.bf16.mxu0 0
    %1052 = vmatpush1.bf16.msra.mxu0 0
    %1053 = vmatprep.subr.bf16.mxu0 0
    %1054 = vmatpush1.bf16.msra.mxu0 0
    %1055 = vmatprep.subr.bf16.mxu0 0
    %1056 = vmatpush1.bf16.msra.mxu0 0
    %1057 = vmatprep.subr.bf16.mxu0 0
    %1058 = vmatpush1.bf16.msra.mxu0 0
    %1059 = vmatprep.subr.bf16.mxu0 0
    %1060 = vmatpush1.bf16.msra.mxu0 0
    %1061 = vmatprep.subr.bf16.mxu0 0
    %1062 = vmatpush1.bf16.msra.mxu0 0
    %1063 = vmatprep.subr.bf16.mxu0 0
    %1064 = vmatpush1.bf16.msra.mxu0 0
    %1065 = vmatprep.subr.bf16.mxu0 0
    %1066 = vmatpush1.bf16.msra.mxu0 0
    %1067 = vmatprep.subr.bf16.mxu0 0
    %1068 = vmatpush1.bf16.msra.mxu0 0
    %1069 = vmatprep.subr.bf16.mxu0 0
    %1070 = vmatpush1.bf16.msra.mxu0 0
    %1071 = vmatprep.subr.bf16.mxu0 0
    %1072 = vmatpush1.bf16.msra.mxu0 0
    %1073 = vmatprep.subr.bf16.mxu0 0
    %1074 = vmatpush1.bf16.msra.mxu0 0
    %1075 = vmatprep.mubr.bf16.mxu0 0
    %1076 = vmatmul.mubr.bf16.gmra.mrb[0].mxu0 %v743
    %v1077 = vpop.f32.mrb[0].mxu0
    %v1078 = vadd.f32 %v244, %v1077
    %v1079 = vpop.f32.mrb[0].mxu0
    %v1080 = vpop.f32.mrb[0].mxu0
    %v1081 = vadd.f32 %v244, %v1080
    %v1082 = vpop.f32.mrb[0].mxu0
    %1083 = vmatprep.mubr.bf16.mxu0 0
    %1084 = vmatmul.mubr.bf16.gmra.mrb[0].mxu0 %v746
    %v1085 = vpop.f32.mrb[0].mxu0
    %v1086 = vadd.f32 %v244, %v1085
    %v1087 = vpop.f32.mrb[0].mxu0
    %v1088 = vpop.f32.mrb[0].mxu0
    %v1089 = vadd.f32 %v244, %v1088
    %v1090 = vpop.f32.mrb[0].mxu0
    %1091 = vmatprep.mubr.bf16.mxu0 0
    %1092 = vmatmul.mubr.bf16.gmra.mrb[0].mxu0 %v749
    %v1093 = vpop.f32.mrb[0].mxu0
    %v1094 = vadd.f32 %v244, %v1093
    %v1095 = vpop.f32.mrb[0].mxu0
    %v1096 = vpop.f32.mrb[0].mxu0
    %v1097 = vadd.f32 %v244, %v1096
    %v1098 = vpop.f32.mrb[0].mxu0
    %1099 = vmatprep.mubr.bf16.mxu0 0
    %1100 = vmatmul.mubr.bf16.gmra.mrb[0].mxu0 %v752
    %v1101 = vpop.f32.mrb[0].mxu0
    %v1102 = vadd.f32 %v244, %v1101
    %v1103 = vpop.f32.mrb[0].mxu0
    %v1104 = vpop.f32.mrb[0].mxu0
    %v1105 = vadd.f32 %v244, %v1104
    %v1106 = vpop.f32.mrb[0].mxu0
    %1107 = vmatprep.mubr.bf16.mxu0 0
    %1108 = vmatmul.mubr.bf16.gmra.mrb[0].mxu0 %v755
    %v1109 = vpop.f32.mrb[0].mxu0
    %v1110 = vadd.f32 %v244, %v1109
    %v1111 = vpop.f32.mrb[0].mxu0
    %v1112 = vpop.f32.mrb[0].mxu0
    %v1113 = vadd.f32 %v244, %v1112
    %v1114 = vpop.f32.mrb[0].mxu0
    %1115 = vmatprep.mubr.bf16.mxu0 0
    %1116 = vmatmul.mubr.bf16.gmra.mrb[0].mxu0 %v758
    %v1117 = vpop.f32.mrb[0].mxu0
    %v1118 = vadd.f32 %v244, %v1117
    %v1119 = vpop.f32.mrb[0].mxu0
    %v1120 = vpop.f32.mrb[0].mxu0
    %v1121 = vadd.f32 %v244, %v1120
    %v1122 = vpop.f32.mrb[0].mxu0
    %1123 = vmatprep.mubr.bf16.mxu0 0
    %1124 = vmatmul.mubr.bf16.gmra.mrb[0].mxu0 %v761
    %v1125 = vpop.f32.mrb[0].mxu0
    %v1126 = vadd.f32 %v244, %v1125
    %v1127 = vpop.f32.mrb[0].mxu0
    %v1128 = vpop.f32.mrb[0].mxu0
    %v1129 = vadd.f32 %v244, %v1128
    %v1130 = vpop.f32.mrb[0].mxu0
    %1131 = vmatprep.mubr.bf16.mxu0 0
    %1132 = vmatmul.mubr.bf16.gmra.mrb[0].mxu0 %v764
    %v1133 = vpop.f32.mrb[0].mxu0
    %v1134 = vadd.f32 %v244, %v1133
    %v1135 = vpop.f32.mrb[0].mxu0
    %v1136 = vpop.f32.mrb[0].mxu0
    %v1137 = vadd.f32 %v244, %v1136
    %v1138 = vpop.f32.mrb[0].mxu0
    %1139 = vmatprep.mubr.bf16.mxu0 0
    %1140 = vmatmul.mubr.bf16.gmra.mrb[0].mxu0 %v767
    %v1141 = vpop.f32.mrb[0].mxu0
    %v1142 = vadd.f32 %v244, %v1141
    %v1143 = vpop.f32.mrb[0].mxu0
    %v1144 = vpop.f32.mrb[0].mxu0
    %v1145 = vadd.f32 %v244, %v1144
    %v1146 = vpop.f32.mrb[0].mxu0
    %1147 = vmatprep.mubr.bf16.mxu0 0
    %1148 = vmatmul.mubr.bf16.gmra.mrb[0].mxu0 %v770
    %v1149 = vpop.f32.mrb[0].mxu0
    %v1150 = vadd.f32 %v244, %v1149
    %v1151 = vpop.f32.mrb[0].mxu0
    %v1152 = vpop.f32.mrb[0].mxu0
    %v1153 = vadd.f32 %v244, %v1152
    %v1154 = vpop.f32.mrb[0].mxu0
    %1155 = vmatprep.mubr.bf16.mxu0 0
    %1156 = vmatmul.mubr.bf16.gmra.mrb[0].mxu0 %v773
    %v1157 = vpop.f32.mrb[0].mxu0
    %v1158 = vadd.f32 %v244, %v1157
    %v1159 = vpop.f32.mrb[0].mxu0
    %v1160 = vpop.f32.mrb[0].mxu0
    %v1161 = vadd.f32 %v244, %v1160
    %v1162 = vpop.f32.mrb[0].mxu0
    %1163 = vmatprep.mubr.bf16.mxu0 0
    %1164 = vmatmul.mubr.bf16.gmra.mrb[0].mxu0 %v776
    %v1165 = vpop.f32.mrb[0].mxu0
    %v1166 = vadd.f32 %v244, %v1165
    %v1167 = vpop.f32.mrb[0].mxu0
    %v1168 = vpop.f32.mrb[0].mxu0
    %v1169 = vadd.f32 %v244, %v1168
    %v1170 = vpop.f32.mrb[0].mxu0
    %1171 = vmatprep.mubr.bf16.mxu0 0
    %1172 = vmatmul.mubr.bf16.gmra.mrb[0].mxu0 %v779
    %v1173 = vpop.f32.mrb[0].mxu0
    %v1174 = vadd.f32 %v244, %v1173
    %v1175 = vpop.f32.mrb[0].mxu0
    %v1176 = vpop.f32.mrb[0].mxu0
    %v1177 = vadd.f32 %v244, %v1176
    %v1178 = vpop.f32.mrb[0].mxu0
    %1179 = vmatprep.mubr.bf16.mxu0 0
    %1180 = vmatmul.mubr.bf16.gmra.mrb[0].mxu0 %v782
    %v1181 = vpop.f32.mrb[0].mxu0
    %v1182 = vadd.f32 %v244, %v1181
    %v1183 = vpop.f32.mrb[0].mxu0
    %v1184 = vpop.f32.mrb[0].mxu0
    %v1185 = vadd.f32 %v244, %v1184
    %v1186 = vpop.f32.mrb[0].mxu0
    %1187 = vmatprep.mubr.bf16.mxu0 0
    %1188 = vmatmul.mubr.bf16.gmra.mrb[0].mxu0 %v785
    %v1189 = vpop.f32.mrb[0].mxu0
    %v1190 = vadd.f32 %v244, %v1189
    %v1191 = vpop.f32.mrb[0].mxu0
    %v1192 = vpop.f32.mrb[0].mxu0
    %v1193 = vadd.f32 %v244, %v1192
    %v1194 = vpop.f32.mrb[0].mxu0
    %1195 = vmatprep.mubr.bf16.mxu0 0
    %1196 = vmatmul.mubr.bf16.gmra.mrb[0].mxu0 %v788
    %v1197 = vpop.f32.mrb[0].mxu0
    %v1198 = vadd.f32 %v244, %v1197
    %v1199 = vpop.f32.mrb[0].mxu0
    %v1200 = vpop.f32.mrb[0].mxu0
    %v1201 = vadd.f32 %v244, %v1200
    %v1202 = vpop.f32.mrb[0].mxu0
    %1203 = vmatprep.mubr.bf16.mxu0 0
    %1204 = vmatmul.mubr.bf16.gmra.mrb[0].mxu0 %v791
    %v1205 = vpop.f32.mrb[0].mxu0
    %v1206 = vadd.f32 %v244, %v1205
    %v1207 = vpop.f32.mrb[0].mxu0
    %v1208 = vpop.f32.mrb[0].mxu0
    %v1209 = vadd.f32 %v244, %v1208
    %v1210 = vpop.f32.mrb[0].mxu0
    %1211 = vmatprep.mubr.bf16.mxu0 0
    %1212 = vmatmul.mubr.bf16.gmra.mrb[0].mxu0 %v794
    %v1213 = vpop.f32.mrb[0].mxu0
    %v1214 = vadd.f32 %v244, %v1213
    %v1215 = vpop.f32.mrb[0].mxu0
    %v1216 = vpop.f32.mrb[0].mxu0
    %v1217 = vadd.f32 %v244, %v1216
    %v1218 = vpop.f32.mrb[0].mxu0
    %1219 = vmatprep.mubr.bf16.mxu0 0
    %1220 = vmatmul.mubr.bf16.gmra.mrb[0].mxu0 %v797
    %v1221 = vpop.f32.mrb[0].mxu0
    %v1222 = vadd.f32 %v244, %v1221
    %v1223 = vpop.f32.mrb[0].mxu0
    %v1224 = vpop.f32.mrb[0].mxu0
    %v1225 = vadd.f32 %v244, %v1224
    %v1226 = vpop.f32.mrb[0].mxu0
    %1227 = vmatprep.mubr.bf16.mxu0 0
    %1228 = vmatmul.mubr.bf16.gmra.mrb[0].mxu0 %v800
    %v1229 = vpop.f32.mrb[0].mxu0
    %v1230 = vadd.f32 %v244, %v1229
    %v1231 = vpop.f32.mrb[0].mxu0
    %v1232 = vpop.f32.mrb[0].mxu0
    %v1233 = vadd.f32 %v244, %v1232
    %v1234 = vpop.f32.mrb[0].mxu0
    %1235 = vmatprep.mubr.bf16.mxu0 0
    %1236 = vmatmul.mubr.bf16.gmra.mrb[0].mxu0 %v803
    %v1237 = vpop.f32.mrb[0].mxu0
    %v1238 = vadd.f32 %v244, %v1237
    %v1239 = vpop.f32.mrb[0].mxu0
    %v1240 = vpop.f32.mrb[0].mxu0
    %v1241 = vadd.f32 %v244, %v1240
    %v1242 = vpop.f32.mrb[0].mxu0
    %1243 = vmatprep.mubr.bf16.mxu0 0
    %1244 = vmatmul.mubr.bf16.gmra.mrb[0].mxu0 %v806
    %v1245 = vpop.f32.mrb[0].mxu0
    %v1246 = vadd.f32 %v244, %v1245
    %v1247 = vpop.f32.mrb[0].mxu0
    %v1248 = vpop.f32.mrb[0].mxu0
    %v1249 = vadd.f32 %v244, %v1248
    %v1250 = vpop.f32.mrb[0].mxu0
    %1251 = vmatprep.mubr.bf16.mxu0 0
    %1252 = vmatmul.mubr.bf16.gmra.mrb[0].mxu0 %v809
    %v1253 = vpop.f32.mrb[0].mxu0
    %v1254 = vadd.f32 %v244, %v1253
    %v1255 = vpop.f32.mrb[0].mxu0
    %v1256 = vpop.f32.mrb[0].mxu0
    %v1257 = vadd.f32 %v244, %v1256
    %v1258 = vpop.f32.mrb[0].mxu0
    %1259 = vmatprep.mubr.bf16.mxu0 0
    %1260 = vmatmul.mubr.bf16.gmra.mrb[0].mxu0 %v812
    %v1261 = vpop.f32.mrb[0].mxu0
    %v1262 = vadd.f32 %v244, %v1261
    %v1263 = vpop.f32.mrb[0].mxu0
    %v1264 = vpop.f32.mrb[0].mxu0
    %v1265 = vadd.f32 %v244, %v1264
    %v1266 = vpop.f32.mrb[0].mxu0
    %1267 = vmatprep.mubr.bf16.mxu0 0
    %1268 = vmatmul.mubr.bf16.gmra.mrb[0].mxu0 %v815
    %v1269 = vpop.f32.mrb[0].mxu0
    %v1270 = vadd.f32 %v244, %v1269
    %v1271 = vpop.f32.mrb[0].mxu0
    %v1272 = vpop.f32.mrb[0].mxu0
    %v1273 = vadd.f32 %v244, %v1272
    %v1274 = vpop.f32.mrb[0].mxu0
    %1275 = vmatprep.mubr.bf16.mxu0 0
    %1276 = vmatmul.mubr.bf16.gmra.mrb[0].mxu0 %v818
    %v1277 = vpop.f32.mrb[0].mxu0
    %v1278 = vadd.f32 %v244, %v1277
    %v1279 = vpop.f32.mrb[0].mxu0
    %v1280 = vpop.f32.mrb[0].mxu0
    %v1281 = vadd.f32 %v244, %v1280
    %v1282 = vpop.f32.mrb[0].mxu0
    %1283 = vmatprep.mubr.bf16.mxu0 0
    %1284 = vmatmul.mubr.bf16.gmra.mrb[0].mxu0 %v821
    %v1285 = vpop.f32.mrb[0].mxu0
    %v1286 = vadd.f32 %v244, %v1285
    %v1287 = vpop.f32.mrb[0].mxu0
    %v1288 = vpop.f32.mrb[0].mxu0
    %v1289 = vadd.f32 %v244, %v1288
    %v1290 = vpop.f32.mrb[0].mxu0
    %1291 = vmatprep.mubr.bf16.mxu0 0
    %1292 = vmatmul.mubr.bf16.gmra.mrb[0].mxu0 %v824
    %v1293 = vpop.f32.mrb[0].mxu0
    %v1294 = vadd.f32 %v244, %v1293
    %v1295 = vpop.f32.mrb[0].mxu0
    %v1296 = vpop.f32.mrb[0].mxu0
    %v1297 = vadd.f32 %v244, %v1296
    %v1298 = vpop.f32.mrb[0].mxu0
    %1299 = vmatprep.mubr.bf16.mxu0 0
    %1300 = vmatmul.mubr.bf16.gmra.mrb[0].mxu0 %v827
    %v1301 = vpop.f32.mrb[0].mxu0
    %v1302 = vadd.f32 %v244, %v1301
    %v1303 = vpop.f32.mrb[0].mxu0
    %v1304 = vpop.f32.mrb[0].mxu0
    %v1305 = vadd.f32 %v244, %v1304
    %v1306 = vpop.f32.mrb[0].mxu0
    %1307 = vmatprep.mubr.bf16.mxu0 0
    %1308 = vmatmul.mubr.bf16.gmra.mrb[0].mxu0 %v830
    %v1309 = vpop.f32.mrb[0].mxu0
    %v1310 = vadd.f32 %v244, %v1309
    %v1311 = vpop.f32.mrb[0].mxu0
    %v1312 = vpop.f32.mrb[0].mxu0
    %v1313 = vadd.f32 %v244, %v1312
    %v1314 = vpop.f32.mrb[0].mxu0
    %1315 = vmatprep.mubr.bf16.mxu0 0
    %1316 = vmatmul.mubr.bf16.gmra.mrb[0].mxu0 %v833
    %v1317 = vpop.f32.mrb[0].mxu0
    %v1318 = vadd.f32 %v244, %v1317
    %v1319 = vpop.f32.mrb[0].mxu0
    %v1320 = vpop.f32.mrb[0].mxu0
    %v1321 = vadd.f32 %v244, %v1320
    %v1322 = vpop.f32.mrb[0].mxu0
    %1323 = vmatprep.mubr.bf16.mxu0 0
    %1324 = vmatmul.mubr.bf16.gmra.mrb[0].mxu0 %v836
    %v1325 = vpop.f32.mrb[0].mxu0
    %v1326 = vadd.f32 %v244, %v1325
    %v1327 = vpop.f32.mrb[0].mxu0
    %v1328 = vpop.f32.mrb[0].mxu0
    %v1329 = vadd.f32 %v244, %v1328
    %v1330 = vpop.f32.mrb[0].mxu0
    %1331 = vmatprep.mubr.bf16.mxu0 0
    %1332 = vmatmul.mubr.bf16.gmra.mrb[0].mxu0 %v839
    %v1333 = vpop.f32.mrb[0].mxu0
    %v1334 = vadd.f32 %v244, %v1333
    %v1335 = vpop.f32.mrb[0].mxu0
    %v1336 = vpop.f32.mrb[0].mxu0
    %v1337 = vadd.f32 %v244, %v1336
    %v1338 = vpop.f32.mrb[0].mxu0
    %1339 = vmatprep.mubr.bf16.mxu0 0
    %1340 = vmatmul.mubr.bf16.gmra.mrb[0].mxu0 %v842
    %v1341 = vpop.f32.mrb[0].mxu0
    %v1342 = vadd.f32 %v244, %v1341
    %v1343 = vpop.f32.mrb[0].mxu0
    %v1344 = vpop.f32.mrb[0].mxu0
    %v1345 = vadd.f32 %v244, %v1344
    %v1346 = vpop.f32.mrb[0].mxu0
    %1347 = vmatprep.mubr.bf16.mxu0 0
    %1348 = vmatmul.mubr.bf16.gmra.mrb[0].mxu0 %v845
    %v1349 = vpop.f32.mrb[0].mxu0
    %v1350 = vadd.f32 %v244, %v1349
    %v1351 = vpop.f32.mrb[0].mxu0
    %v1352 = vpop.f32.mrb[0].mxu0
    %v1353 = vadd.f32 %v244, %v1352
    %v1354 = vpop.f32.mrb[0].mxu0
    %1355 = vmatprep.mubr.bf16.mxu0 0
    %1356 = vmatmul.mubr.bf16.gmra.mrb[0].mxu0 %v848
    %v1357 = vpop.f32.mrb[0].mxu0
    %v1358 = vadd.f32 %v244, %v1357
    %v1359 = vpop.f32.mrb[0].mxu0
    %v1360 = vpop.f32.mrb[0].mxu0
    %v1361 = vadd.f32 %v244, %v1360
    %v1362 = vpop.f32.mrb[0].mxu0
    %1363 = vmatprep.mubr.bf16.mxu0 0
    %1364 = vmatmul.mubr.bf16.gmra.mrb[0].mxu0 %v851
    %v1365 = vpop.f32.mrb[0].mxu0
    %v1366 = vadd.f32 %v244, %v1365
    %v1367 = vpop.f32.mrb[0].mxu0
    %v1368 = vpop.f32.mrb[0].mxu0
    %v1369 = vadd.f32 %v244, %v1368
    %v1370 = vpop.f32.mrb[0].mxu0
    %1371 = vmatprep.mubr.bf16.mxu0 0
    %1372 = vmatmul.mubr.bf16.gmra.mrb[0].mxu0 %v854
    %v1373 = vpop.f32.mrb[0].mxu0
    %v1374 = vadd.f32 %v244, %v1373
    %v1375 = vpop.f32.mrb[0].mxu0
    %v1376 = vpop.f32.mrb[0].mxu0
    %v1377 = vadd.f32 %v244, %v1376
    %v1378 = vpop.f32.mrb[0].mxu0
    %1379 = vmatprep.mubr.bf16.mxu0 0
    %1380 = vmatmul.mubr.bf16.gmra.mrb[0].mxu0 %v857
    %v1381 = vpop.f32.mrb[0].mxu0
    %v1382 = vadd.f32 %v244, %v1381
    %v1383 = vpop.f32.mrb[0].mxu0
    %v1384 = vpop.f32.mrb[0].mxu0
    %v1385 = vadd.f32 %v244, %v1384
    %v1386 = vpop.f32.mrb[0].mxu0
    %1387 = vmatprep.mubr.bf16.mxu0 0
    %1388 = vmatmul.mubr.bf16.gmra.mrb[0].mxu0 %v860
    %v1389 = vpop.f32.mrb[0].mxu0
    %v1390 = vadd.f32 %v244, %v1389
    %v1391 = vpop.f32.mrb[0].mxu0
    %v1392 = vpop.f32.mrb[0].mxu0
    %v1393 = vadd.f32 %v244, %v1392
    %v1394 = vpop.f32.mrb[0].mxu0
    %1395 = vmatprep.mubr.bf16.mxu0 0
    %1396 = vmatmul.mubr.bf16.gmra.mrb[0].mxu0 %v863
    %v1397 = vpop.f32.mrb[0].mxu0
    %v1398 = vadd.f32 %v244, %v1397
    %v1399 = vpop.f32.mrb[0].mxu0
    %v1400 = vpop.f32.mrb[0].mxu0
    %v1401 = vadd.f32 %v244, %v1400
    %v1402 = vpop.f32.mrb[0].mxu0
    %1403 = vmatprep.mubr.bf16.mxu0 0
    %1404 = vmatmul.mubr.bf16.gmra.mrb[0].mxu0 %v866
    %v1405 = vpop.f32.mrb[0].mxu0
    %v1406 = vadd.f32 %v244, %v1405
    %v1407 = vpop.f32.mrb[0].mxu0
    %v1408 = vpop.f32.mrb[0].mxu0
    %v1409 = vadd.f32 %v244, %v1408
    %v1410 = vpop.f32.mrb[0].mxu0
    %1411 = vmatprep.mubr.bf16.mxu0 0
    %1412 = vmatmul.mubr.bf16.gmra.mrb[0].mxu0 %v869
    %v1413 = vpop.f32.mrb[0].mxu0
    %v1414 = vadd.f32 %v244, %v1413
    %v1415 = vpop.f32.mrb[0].mxu0
    %v1416 = vpop.f32.mrb[0].mxu0
    %v1417 = vadd.f32 %v244, %v1416
    %v1418 = vpop.f32.mrb[0].mxu0
    %1419 = vmatprep.mubr.bf16.mxu0 0
    %1420 = vmatmul.mubr.bf16.gmra.mrb[0].mxu0 %v872
    %v1421 = vpop.f32.mrb[0].mxu0
    %v1422 = vadd.f32 %v244, %v1421
    %v1423 = vpop.f32.mrb[0].mxu0
    %v1424 = vpop.f32.mrb[0].mxu0
    %v1425 = vadd.f32 %v244, %v1424
    %v1426 = vpop.f32.mrb[0].mxu0
    %1427 = vmatprep.mubr.bf16.mxu0 0
    %1428 = vmatmul.mubr.bf16.gmra.mrb[0].mxu0 %v875
    %v1429 = vpop.f32.mrb[0].mxu0
    %v1430 = vadd.f32 %v244, %v1429
    %v1431 = vpop.f32.mrb[0].mxu0
    %v1432 = vpop.f32.mrb[0].mxu0
    %v1433 = vadd.f32 %v244, %v1432
    %v1434 = vpop.f32.mrb[0].mxu0
    %1435 = vmatprep.mubr.bf16.mxu0 0
    %1436 = vmatmul.mubr.bf16.gmra.mrb[0].mxu0 %v878
    %v1437 = vpop.f32.mrb[0].mxu0
    %v1438 = vadd.f32 %v244, %v1437
    %v1439 = vpop.f32.mrb[0].mxu0
    %v1440 = vpop.f32.mrb[0].mxu0
    %v1441 = vadd.f32 %v244, %v1440
    %v1442 = vpop.f32.mrb[0].mxu0
    %1443 = vmatprep.mubr.bf16.mxu0 0
    %1444 = vmatmul.mubr.bf16.gmra.mrb[0].mxu0 %v881
    %v1445 = vpop.f32.mrb[0].mxu0
    %v1446 = vadd.f32 %v244, %v1445
    %v1447 = vpop.f32.mrb[0].mxu0
    %v1448 = vpop.f32.mrb[0].mxu0
    %v1449 = vadd.f32 %v244, %v1448
    %v1450 = vpop.f32.mrb[0].mxu0
    %1451 = vmatprep.mubr.bf16.mxu0 0
    %1452 = vmatmul.mubr.bf16.gmra.mrb[0].mxu0 %v884
    %v1453 = vpop.f32.mrb[0].mxu0
    %v1454 = vadd.f32 %v244, %v1453
    %v1455 = vpop.f32.mrb[0].mxu0
    %v1456 = vpop.f32.mrb[0].mxu0
    %v1457 = vadd.f32 %v244, %v1456
    %v1458 = vpop.f32.mrb[0].mxu0
    %1459 = vmatprep.mubr.bf16.mxu0 0
    %1460 = vmatmul.mubr.bf16.gmra.mrb[0].mxu0 %v887
    %v1461 = vpop.f32.mrb[0].mxu0
    %v1462 = vadd.f32 %v244, %v1461
    %v1463 = vpop.f32.mrb[0].mxu0
    %v1464 = vpop.f32.mrb[0].mxu0
    %v1465 = vadd.f32 %v244, %v1464
    %v1466 = vpop.f32.mrb[0].mxu0
    %1467 = vmatprep.mubr.bf16.mxu0 0
    %1468 = vmatmul.mubr.bf16.gmra.mrb[0].mxu0 %v890
    %v1469 = vpop.f32.mrb[0].mxu0
    %v1470 = vadd.f32 %v244, %v1469
    %v1471 = vpop.f32.mrb[0].mxu0
    %v1472 = vpop.f32.mrb[0].mxu0
    %v1473 = vadd.f32 %v244, %v1472
    %v1474 = vpop.f32.mrb[0].mxu0
    %1475 = vmatprep.mubr.bf16.mxu0 0
    %1476 = vmatmul.mubr.bf16.gmra.mrb[0].mxu0 %v893
    %v1477 = vpop.f32.mrb[0].mxu0
    %v1478 = vadd.f32 %v244, %v1477
    %v1479 = vpop.f32.mrb[0].mxu0
    %v1480 = vpop.f32.mrb[0].mxu0
    %v1481 = vadd.f32 %v244, %v1480
    %v1482 = vpop.f32.mrb[0].mxu0
    %1483 = vmatprep.mubr.bf16.mxu0 0
    %1484 = vmatmul.mubr.bf16.gmra.mrb[0].mxu0 %v896
    %v1485 = vpop.f32.mrb[0].mxu0
    %v1486 = vadd.f32 %v244, %v1485
    %v1487 = vpop.f32.mrb[0].mxu0
    %v1488 = vpop.f32.mrb[0].mxu0
    %v1489 = vadd.f32 %v244, %v1488
    %v1490 = vpop.f32.mrb[0].mxu0
    %1491 = vmatprep.mubr.bf16.mxu0 0
    %1492 = vmatmul.mubr.bf16.gmra.mrb[0].mxu0 %v899
    %v1493 = vpop.f32.mrb[0].mxu0
    %v1494 = vadd.f32 %v244, %v1493
    %v1495 = vpop.f32.mrb[0].mxu0
    %v1496 = vpop.f32.mrb[0].mxu0
    %v1497 = vadd.f32 %v244, %v1496
    %v1498 = vpop.f32.mrb[0].mxu0
    %1499 = vmatprep.mubr.bf16.mxu0 0
    %1500 = vmatmul.mubr.bf16.gmra.mrb[0].mxu0 %v902
    %v1501 = vpop.f32.mrb[0].mxu0
    %v1502 = vadd.f32 %v244, %v1501
    %v1503 = vpop.f32.mrb[0].mxu0
    %v1504 = vpop.f32.mrb[0].mxu0
    %v1505 = vadd.f32 %v244, %v1504
    %v1506 = vpop.f32.mrb[0].mxu0
    %1507 = vmatprep.mubr.bf16.mxu0 0
    %1508 = vmatmul.mubr.bf16.gmra.mrb[0].mxu0 %v905
    %v1509 = vpop.f32.mrb[0].mxu0
    %v1510 = vadd.f32 %v244, %v1509
    %v1511 = vpop.f32.mrb[0].mxu0
    %v1512 = vpop.f32.mrb[0].mxu0
    %v1513 = vadd.f32 %v244, %v1512
    %v1514 = vpop.f32.mrb[0].mxu0
    %1515 = vmatprep.mubr.bf16.mxu0 0
    %1516 = vmatmul.mubr.bf16.gmra.mrb[0].mxu0 %v908
    %v1517 = vpop.f32.mrb[0].mxu0
    %v1518 = vadd.f32 %v244, %v1517
    %v1519 = vpop.f32.mrb[0].mxu0
    %v1520 = vpop.f32.mrb[0].mxu0
    %v1521 = vadd.f32 %v244, %v1520
    %v1522 = vpop.f32.mrb[0].mxu0
    %1523 = vmatprep.mubr.bf16.mxu0 0
    %1524 = vmatmul.mubr.bf16.gmra.mrb[0].mxu0 %v911
    %v1525 = vpop.f32.mrb[0].mxu0
    %v1526 = vadd.f32 %v244, %v1525
    %v1527 = vpop.f32.mrb[0].mxu0
    %v1528 = vpop.f32.mrb[0].mxu0
    %v1529 = vadd.f32 %v244, %v1528
    %v1530 = vpop.f32.mrb[0].mxu0
    %1531 = vmatprep.mubr.bf16.mxu0 0
    %1532 = vmatmul.mubr.bf16.gmra.mrb[0].mxu0 %v914
    %v1533 = vpop.f32.mrb[0].mxu0
    %v1534 = vadd.f32 %v244, %v1533
    %v1535 = vpop.f32.mrb[0].mxu0
    %v1536 = vpop.f32.mrb[0].mxu0
    %v1537 = vadd.f32 %v244, %v1536
    %v1538 = vpop.f32.mrb[0].mxu0
    %1539 = vmatprep.mubr.bf16.mxu0 0
    %1540 = vmatmul.mubr.bf16.gmra.mrb[0].mxu0 %v917
    %v1541 = vpop.f32.mrb[0].mxu0
    %v1542 = vadd.f32 %v244, %v1541
    %v1543 = vpop.f32.mrb[0].mxu0
    %v1544 = vpop.f32.mrb[0].mxu0
    %v1545 = vadd.f32 %v244, %v1544
    %v1546 = vpop.f32.mrb[0].mxu0
    %1547 = vmatprep.mubr.bf16.mxu0 0
    %1548 = vmatmul.mubr.bf16.gmra.mrb[0].mxu0 %v920
    %v1549 = vpop.f32.mrb[0].mxu0
    %v1550 = vadd.f32 %v244, %v1549
    %v1551 = vpop.f32.mrb[0].mxu0
    %v1552 = vpop.f32.mrb[0].mxu0
    %v1553 = vadd.f32 %v244, %v1552
    %v1554 = vpop.f32.mrb[0].mxu0
    %1555 = vmatprep.mubr.bf16.mxu0 0
    %1556 = vmatmul.mubr.bf16.gmra.mrb[0].mxu0 %v923
    %v1557 = vpop.f32.mrb[0].mxu0
    %v1558 = vadd.f32 %v244, %v1557
    %v1559 = vpop.f32.mrb[0].mxu0
    %v1560 = vpop.f32.mrb[0].mxu0
    %v1561 = vadd.f32 %v244, %v1560
    %v1562 = vpop.f32.mrb[0].mxu0
    %1563 = vmatprep.mubr.bf16.mxu0 0
    %1564 = vmatmul.mubr.bf16.gmra.mrb[0].mxu0 %v926
    %v1565 = vpop.f32.mrb[0].mxu0
    %v1566 = vadd.f32 %v244, %v1565
    %v1567 = vpop.f32.mrb[0].mxu0
    %v1568 = vpop.f32.mrb[0].mxu0
    %v1569 = vadd.f32 %v244, %v1568
    %v1570 = vpop.f32.mrb[0].mxu0
    %1571 = vmatprep.mubr.bf16.mxu0 0
    %1572 = vmatmul.mubr.bf16.gmra.mrb[0].mxu0 %v929
    %v1573 = vpop.f32.mrb[0].mxu0
    %v1574 = vadd.f32 %v244, %v1573
    %v1575 = vpop.f32.mrb[0].mxu0
    %v1576 = vpop.f32.mrb[0].mxu0
    %v1577 = vadd.f32 %v244, %v1576
    %v1578 = vpop.f32.mrb[0].mxu0
    %1579 = vmatprep.mubr.bf16.mxu0 0
    %1580 = vmatmul.mubr.bf16.gmra.mrb[0].mxu0 %v932
    %v1581 = vpop.f32.mrb[0].mxu0
    %v1582 = vadd.f32 %v244, %v1581
    %v1583 = vpop.f32.mrb[0].mxu0
    %v1584 = vpop.f32.mrb[0].mxu0
    %v1585 = vadd.f32 %v244, %v1584
    %v1586 = vpop.f32.mrb[0].mxu0
    %1587 = vmatprep.mubr.bf16.mxu0 0
    %1588 = vmatmul.mubr.bf16.gmra.mrb[0].mxu0 %v935
    %v1589 = vpop.f32.mrb[0].mxu0
    %v1590 = vadd.f32 %v244, %v1589
    %v1591 = vpop.f32.mrb[0].mxu0
    %v1592 = vpop.f32.mrb[0].mxu0
    %v1593 = vadd.f32 %v244, %v1592
    %v1594 = vpop.f32.mrb[0].mxu0
    %1595 = vmatprep.mubr.bf16.mxu0 0
    %1596 = vmatmul.mubr.bf16.gmra.mrb[0].mxu0 %v938
    %v1597 = vpop.f32.mrb[0].mxu0
    %v1598 = vadd.f32 %v244, %v1597
    %v1599 = vpop.f32.mrb[0].mxu0
    %v1600 = vpop.f32.mrb[0].mxu0
    %v1601 = vadd.f32 %v244, %v1600
    %v1602 = vpop.f32.mrb[0].mxu0
    %1603 = vmatprep.mubr.bf16.mxu0 0
    %1604 = vmatmul.mubr.bf16.gmra.mrb[0].mxu0 %v941
    %v1605 = vpop.f32.mrb[0].mxu0
    %v1606 = vadd.f32 %v244, %v1605
    %v1607 = vpop.f32.mrb[0].mxu0
    %v1608 = vpop.f32.mrb[0].mxu0
    %v1609 = vadd.f32 %v244, %v1608
    %v1610 = vpop.f32.mrb[0].mxu0
    %1611 = vmatprep.mubr.bf16.mxu0 0
    %1612 = vmatmul.mubr.bf16.gmra.mrb[0].mxu0 %v944
    %v1613 = vpop.f32.mrb[0].mxu0
    %v1614 = vadd.f32 %v244, %v1613
    %v1615 = vpop.f32.mrb[0].mxu0
    %v1616 = vpop.f32.mrb[0].mxu0
    %v1617 = vadd.f32 %v244, %v1616
    %v1618 = vpop.f32.mrb[0].mxu0
    %1619 = vmatprep.mubr.bf16.mxu0 0
    %1620 = vmatmul.mubr.bf16.gmra.mrb[0].mxu0 %v947
    %v1621 = vpop.f32.mrb[0].mxu0
    %v1622 = vadd.f32 %v244, %v1621
    %v1623 = vpop.f32.mrb[0].mxu0
    %v1624 = vpop.f32.mrb[0].mxu0
    %v1625 = vadd.f32 %v244, %v1624
    %v1626 = vpop.f32.mrb[0].mxu0
    %1627 = vmatprep.mubr.bf16.mxu0 0
    %1628 = vmatmul.mubr.bf16.gmra.mrb[0].mxu0 %v950
    %v1629 = vpop.f32.mrb[0].mxu0
    %v1630 = vadd.f32 %v244, %v1629
    %v1631 = vpop.f32.mrb[0].mxu0
    %v1632 = vpop.f32.mrb[0].mxu0
    %v1633 = vadd.f32 %v244, %v1632
    %v1634 = vpop.f32.mrb[0].mxu0
    %1635 = vmatprep.mubr.bf16.mxu0 0
    %1636 = vmatmul.mubr.bf16.gmra.mrb[0].mxu0 %v953
    %v1637 = vpop.f32.mrb[0].mxu0
    %v1638 = vadd.f32 %v244, %v1637
    %v1639 = vpop.f32.mrb[0].mxu0
    %v1640 = vpop.f32.mrb[0].mxu0
    %v1641 = vadd.f32 %v244, %v1640
    %v1642 = vpop.f32.mrb[0].mxu0
    %1643 = vmatprep.mubr.bf16.mxu0 0
    %1644 = vmatmul.mubr.bf16.gmra.mrb[0].mxu0 %v956
    %v1645 = vpop.f32.mrb[0].mxu0
    %v1646 = vadd.f32 %v244, %v1645
    %v1647 = vpop.f32.mrb[0].mxu0
    %v1648 = vpop.f32.mrb[0].mxu0
    %v1649 = vadd.f32 %v244, %v1648
    %v1650 = vpop.f32.mrb[0].mxu0
    %1651 = vmatprep.mubr.bf16.mxu0 0
    %1652 = vmatmul.mubr.bf16.gmra.mrb[0].mxu0 %v959
    %v1653 = vpop.f32.mrb[0].mxu0
    %v1654 = vadd.f32 %v244, %v1653
    %v1655 = vpop.f32.mrb[0].mxu0
    %v1656 = vpop.f32.mrb[0].mxu0
    %v1657 = vadd.f32 %v244, %v1656
    %v1658 = vpop.f32.mrb[0].mxu0
    %1659 = vmatprep.mubr.bf16.mxu0 0
    %1660 = vmatmul.mubr.bf16.gmra.mrb[0].mxu0 %v962
    %v1661 = vpop.f32.mrb[0].mxu0
    %v1662 = vadd.f32 %v244, %v1661
    %v1663 = vpop.f32.mrb[0].mxu0
    %v1664 = vpop.f32.mrb[0].mxu0
    %v1665 = vadd.f32 %v244, %v1664
    %v1666 = vpop.f32.mrb[0].mxu0
    %1667 = vmatprep.mubr.bf16.mxu0 0
    %1668 = vmatmul.mubr.bf16.gmra.mrb[0].mxu0 %v965
    %v1669 = vpop.f32.mrb[0].mxu0
    %v1670 = vadd.f32 %v244, %v1669
    %v1671 = vpop.f32.mrb[0].mxu0
    %v1672 = vpop.f32.mrb[0].mxu0
    %v1673 = vadd.f32 %v244, %v1672
    %v1674 = vpop.f32.mrb[0].mxu0
    %1675 = vmatprep.mubr.bf16.mxu0 0
    %1676 = vmatmul.mubr.bf16.gmra.mrb[0].mxu0 %v968
    %v1677 = vpop.f32.mrb[0].mxu0
    %v1678 = vadd.f32 %v244, %v1677
    %v1679 = vpop.f32.mrb[0].mxu0
    %v1680 = vpop.f32.mrb[0].mxu0
    %v1681 = vadd.f32 %v244, %v1680
    %v1682 = vpop.f32.mrb[0].mxu0
    %1683 = vmatprep.mubr.bf16.mxu0 0
    %1684 = vmatmul.mubr.bf16.gmra.mrb[0].mxu0 %v971
    %v1685 = vpop.f32.mrb[0].mxu0
    %v1686 = vadd.f32 %v244, %v1685
    %v1687 = vpop.f32.mrb[0].mxu0
    %v1688 = vpop.f32.mrb[0].mxu0
    %v1689 = vadd.f32 %v244, %v1688
    %v1690 = vpop.f32.mrb[0].mxu0
    %1691 = vmatprep.mubr.bf16.mxu0 0
    %1692 = vmatmul.mubr.bf16.gmra.mrb[0].mxu0 %v974
    %v1693 = vpop.f32.mrb[0].mxu0
    %v1694 = vadd.f32 %v244, %v1693
    %v1695 = vpop.f32.mrb[0].mxu0
    %v1696 = vpop.f32.mrb[0].mxu0
    %v1697 = vadd.f32 %v244, %v1696
    %v1698 = vpop.f32.mrb[0].mxu0
    %1699 = vmatprep.mubr.bf16.mxu0 0
    %1700 = vmatmul.mubr.bf16.gmra.mrb[0].mxu0 %v977
    %v1701 = vpop.f32.mrb[0].mxu0
    %v1702 = vadd.f32 %v244, %v1701
    %v1703 = vpop.f32.mrb[0].mxu0
    %v1704 = vpop.f32.mrb[0].mxu0
    %v1705 = vadd.f32 %v244, %v1704
    %v1706 = vpop.f32.mrb[0].mxu0
    %1707 = vmatprep.mubr.bf16.mxu0 0
    %1708 = vmatmul.mubr.bf16.gmra.mrb[0].mxu0 %v980
    %v1709 = vpop.f32.mrb[0].mxu0
    %v1710 = vadd.f32 %v244, %v1709
    %v1711 = vpop.f32.mrb[0].mxu0
    %v1712 = vpop.f32.mrb[0].mxu0
    %v1713 = vadd.f32 %v244, %v1712
    %v1714 = vpop.f32.mrb[0].mxu0
    %1715 = vmatprep.mubr.bf16.mxu0 0
    %1716 = vmatmul.mubr.bf16.gmra.mrb[0].mxu0 %v983
    %v1717 = vpop.f32.mrb[0].mxu0
    %v1718 = vadd.f32 %v244, %v1717
    %v1719 = vpop.f32.mrb[0].mxu0
    %v1720 = vpop.f32.mrb[0].mxu0
    %v1721 = vadd.f32 %v244, %v1720
    %v1722 = vpop.f32.mrb[0].mxu0
    %1723 = vmatprep.mubr.bf16.mxu0 0
    %1724 = vmatmul.mubr.bf16.gmra.mrb[0].mxu0 %v986
    %v1725 = vpop.f32.mrb[0].mxu0
    %v1726 = vadd.f32 %v244, %v1725
    %v1727 = vpop.f32.mrb[0].mxu0
    %v1728 = vpop.f32.mrb[0].mxu0
    %v1729 = vadd.f32 %v244, %v1728
    %v1730 = vpop.f32.mrb[0].mxu0
    %1731 = vmatprep.mubr.bf16.mxu0 0
    %1732 = vmatmul.mubr.bf16.gmra.mrb[0].mxu0 %v989
    %v1733 = vpop.f32.mrb[0].mxu0
    %v1734 = vadd.f32 %v244, %v1733
    %v1735 = vpop.f32.mrb[0].mxu0
    %v1736 = vpop.f32.mrb[0].mxu0
    %v1737 = vadd.f32 %v244, %v1736
    %v1738 = vpop.f32.mrb[0].mxu0
    %1739 = vmatprep.mubr.bf16.mxu0 0
    %1740 = vmatmul.mubr.bf16.gmra.mrb[0].mxu0 %v992
    %v1741 = vpop.f32.mrb[0].mxu0
    %v1742 = vadd.f32 %v244, %v1741
    %v1743 = vpop.f32.mrb[0].mxu0
    %v1744 = vpop.f32.mrb[0].mxu0
    %v1745 = vadd.f32 %v244, %v1744
    %v1746 = vpop.f32.mrb[0].mxu0
    %1747 = vmatprep.mubr.bf16.mxu0 0
    %1748 = vmatmul.mubr.bf16.gmra.mrb[0].mxu0 %v995
    %v1749 = vpop.f32.mrb[0].mxu0
    %v1750 = vadd.f32 %v244, %v1749
    %v1751 = vpop.f32.mrb[0].mxu0
    %v1752 = vpop.f32.mrb[0].mxu0
    %v1753 = vadd.f32 %v244, %v1752
    %v1754 = vpop.f32.mrb[0].mxu0
    %1755 = vmatprep.mubr.bf16.mxu0 0
    %1756 = vmatmul.mubr.bf16.gmra.mrb[0].mxu0 %v998
    %v1757 = vpop.f32.mrb[0].mxu0
    %v1758 = vadd.f32 %v244, %v1757
    %v1759 = vpop.f32.mrb[0].mxu0
    %v1760 = vpop.f32.mrb[0].mxu0
    %v1761 = vadd.f32 %v244, %v1760
    %v1762 = vpop.f32.mrb[0].mxu0
    %1763 = vmatprep.mubr.bf16.mxu0 0
    %1764 = vmatmul.mubr.bf16.gmra.mrb[0].mxu0 %v1001
    %v1765 = vpop.f32.mrb[0].mxu0
    %v1766 = vadd.f32 %v244, %v1765
    %v1767 = vpop.f32.mrb[0].mxu0
    %v1768 = vpop.f32.mrb[0].mxu0
    %v1769 = vadd.f32 %v244, %v1768
    %v1770 = vpop.f32.mrb[0].mxu0
    %1771 = vmatprep.mubr.bf16.mxu0 0
    %1772 = vmatmul.mubr.bf16.gmra.mrb[0].mxu0 %v1004
    %v1773 = vpop.f32.mrb[0].mxu0
    %v1774 = vadd.f32 %v244, %v1773
    %v1775 = vpop.f32.mrb[0].mxu0
    %v1776 = vpop.f32.mrb[0].mxu0
    %v1777 = vadd.f32 %v244, %v1776
    %v1778 = vpop.f32.mrb[0].mxu0
    %1779 = vmatprep.mubr.bf16.mxu0 0
    %1780 = vmatmul.mubr.bf16.gmra.mrb[0].mxu0 %v1007
    %v1781 = vpop.f32.mrb[0].mxu0
    %v1782 = vadd.f32 %v244, %v1781
    %v1783 = vpop.f32.mrb[0].mxu0
    %v1784 = vpop.f32.mrb[0].mxu0
    %v1785 = vadd.f32 %v244, %v1784
    %v1786 = vpop.f32.mrb[0].mxu0
    %1787 = vmatprep.mubr.bf16.mxu0 0
    %1788 = vmatmul.mubr.bf16.gmra.mrb[0].mxu0 %v1010
    %v1789 = vpop.f32.mrb[0].mxu0
    %v1790 = vadd.f32 %v244, %v1789
    %v1791 = vpop.f32.mrb[0].mxu0
    %v1792 = vpop.f32.mrb[0].mxu0
    %v1793 = vadd.f32 %v244, %v1792
    %v1794 = vpop.f32.mrb[0].mxu0
    %1795 = vmatprep.mubr.bf16.mxu0 0
    %1796 = vmatmul.mubr.bf16.gmra.mrb[0].mxu0 %v1013
    %v1797 = vpop.f32.mrb[0].mxu0
    %v1798 = vadd.f32 %v244, %v1797
    %v1799 = vpop.f32.mrb[0].mxu0
    %v1800 = vpop.f32.mrb[0].mxu0
    %v1801 = vadd.f32 %v244, %v1800
    %v1802 = vpop.f32.mrb[0].mxu0
    %1803 = vmatprep.mubr.bf16.mxu0 0
    %1804 = vmatmul.mubr.bf16.gmra.mrb[0].mxu0 %v1016
    %v1805 = vpop.f32.mrb[0].mxu0
    %v1806 = vadd.f32 %v244, %v1805
    %v1807 = vpop.f32.mrb[0].mxu0
    %v1808 = vpop.f32.mrb[0].mxu0
    %v1809 = vadd.f32 %v244, %v1808
    %v1810 = vpop.f32.mrb[0].mxu0
    %1811 = vmatprep.mubr.bf16.mxu0 0
    %1812 = vmatmul.mubr.bf16.gmra.mrb[0].mxu0 %v1019
    %v1813 = vpop.f32.mrb[0].mxu0
    %v1814 = vadd.f32 %v244, %v1813
    %v1815 = vpop.f32.mrb[0].mxu0
    %v1816 = vpop.f32.mrb[0].mxu0
    %v1817 = vadd.f32 %v244, %v1816
    %v1818 = vpop.f32.mrb[0].mxu0
    %1819 = vmatprep.mubr.bf16.mxu0 0
    %1820 = vmatmul.mubr.bf16.gmra.mrb[0].mxu0 %v1022
    %v1821 = vpop.f32.mrb[0].mxu0
    %v1822 = vadd.f32 %v244, %v1821
    %v1823 = vpop.f32.mrb[0].mxu0
    %v1824 = vpop.f32.mrb[0].mxu0
    %v1825 = vadd.f32 %v244, %v1824
    %v1826 = vpop.f32.mrb[0].mxu0
    %1827 = vmatprep.mubr.bf16.mxu0 0
    %1828 = vmatmul.mubr.bf16.gmra.mrb[0].mxu0 %v1025
    %v1829 = vpop.f32.mrb[0].mxu0
    %v1830 = vadd.f32 %v244, %v1829
    %v1831 = vpop.f32.mrb[0].mxu0
    %v1832 = vpop.f32.mrb[0].mxu0
    %v1833 = vadd.f32 %v244, %v1832
    %v1834 = vpop.f32.mrb[0].mxu0
    %1835 = vmatprep.mubr.bf16.mxu0 0
    %1836 = vmatmul.mubr.bf16.gmra.mrb[0].mxu0 %v1028
    %v1837 = vpop.f32.mrb[0].mxu0
    %v1838 = vadd.f32 %v244, %v1837
    %v1839 = vpop.f32.mrb[0].mxu0
    %v1840 = vpop.f32.mrb[0].mxu0
    %v1841 = vadd.f32 %v244, %v1840
    %v1842 = vpop.f32.mrb[0].mxu0
    %1843 = vmatprep.mubr.bf16.mxu0 0
    %1844 = vmatmul.mubr.bf16.gmra.mrb[0].mxu0 %v1031
    %v1845 = vpop.f32.mrb[0].mxu0
    %v1846 = vadd.f32 %v244, %v1845
    %v1847 = vpop.f32.mrb[0].mxu0
    %v1848 = vpop.f32.mrb[0].mxu0
    %v1849 = vadd.f32 %v244, %v1848
    %v1850 = vpop.f32.mrb[0].mxu0
    %1851 = vmatprep.mubr.bf16.mxu0 0
    %1852 = vmatmul.mubr.bf16.gmra.mrb[0].mxu0 %v1034
    %v1853 = vpop.f32.mrb[0].mxu0
    %v1854 = vadd.f32 %v244, %v1853
    %v1855 = vpop.f32.mrb[0].mxu0
    %v1856 = vpop.f32.mrb[0].mxu0
    %v1857 = vadd.f32 %v244, %v1856
    %v1858 = vpop.f32.mrb[0].mxu0
    %1859 = vdwg.mxu0
    %v1860 = vmax.f32 %v1078, 0.0
    %v1861 = vmax.f32 %v1081, 0.0
    %v1862 = vmax.f32 %v1086, 0.0
    %v1863 = vmax.f32 %v1089, 0.0
    %v1864 = vmax.f32 %v1094, 0.0
    %v1865 = vmax.f32 %v1097, 0.0
    %v1866 = vmax.f32 %v1102, 0.0
    %v1867 = vmax.f32 %v1105, 0.0
    %v1868 = vmax.f32 %v1110, 0.0
    %v1869 = vmax.f32 %v1113, 0.0
    %v1870 = vmax.f32 %v1118, 0.0
    %v1871 = vmax.f32 %v1121, 0.0
    %v1872 = vmax.f32 %v1126, 0.0
    %v1873 = vmax.f32 %v1129, 0.0
    %v1874 = vmax.f32 %v1134, 0.0
    %v1875 = vmax.f32 %v1137, 0.0
    %v1876 = vmax.f32 %v1142, 0.0
    %v1877 = vmax.f32 %v1145, 0.0
    %v1878 = vmax.f32 %v1150, 0.0
    %v1879 = vmax.f32 %v1153, 0.0
    %v1880 = vmax.f32 %v1158, 0.0
    %v1881 = vmax.f32 %v1161, 0.0
    %v1882 = vmax.f32 %v1166, 0.0
    %v1883 = vmax.f32 %v1169, 0.0
    %v1884 = vmax.f32 %v1174, 0.0
    %v1885 = vmax.f32 %v1177, 0.0
    %v1886 = vmax.f32 %v1182, 0.0
    %v1887 = vmax.f32 %v1185, 0.0
    %v1888 = vmax.f32 %v1190, 0.0
    %v1889 = vmax.f32 %v1193, 0.0
    %v1890 = vmax.f32 %v1198, 0.0
    %v1891 = vmax.f32 %v1201, 0.0
    %v1892 = vmax.f32 %v1206, 0.0
    %v1893 = vmax.f32 %v1209, 0.0
    %v1894 = vmax.f32 %v1214, 0.0
    %v1895 = vmax.f32 %v1217, 0.0
    %v1896 = vmax.f32 %v1222, 0.0
    %v1897 = vmax.f32 %v1225, 0.0
    %v1898 = vmax.f32 %v1230, 0.0
    %v1899 = vmax.f32 %v1233, 0.0
    %v1900 = vmax.f32 %v1238, 0.0
    %v1901 = vmax.f32 %v1241, 0.0
    %v1902 = vmax.f32 %v1246, 0.0
    %v1903 = vmax.f32 %v1249, 0.0
    %v1904 = vmax.f32 %v1254, 0.0
    %v1905 = vmax.f32 %v1257, 0.0
    %v1906 = vmax.f32 %v1262, 0.0
    %v1907 = vmax.f32 %v1265, 0.0
    %v1908 = vmax.f32 %v1270, 0.0
    %v1909 = vmax.f32 %v1273, 0.0
    %v1910 = vmax.f32 %v1278, 0.0
    %v1911 = vmax.f32 %v1281, 0.0
    %v1912 = vmax.f32 %v1286, 0.0
    %v1913 = vmax.f32 %v1289, 0.0
    %v1914 = vmax.f32 %v1294, 0.0
    %v1915 = vmax.f32 %v1297, 0.0
    %v1916 = vmax.f32 %v1302, 0.0
    %v1917 = vmax.f32 %v1305, 0.0
    %v1918 = vmax.f32 %v1310, 0.0
    %v1919 = vmax.f32 %v1313, 0.0
    %v1920 = vmax.f32 %v1318, 0.0
    %v1921 = vmax.f32 %v1321, 0.0
    %v1922 = vmax.f32 %v1326, 0.0
    %v1923 = vmax.f32 %v1329, 0.0
    %v1924 = vmax.f32 %v1334, 0.0
    %v1925 = vmax.f32 %v1337, 0.0
    %v1926 = vmax.f32 %v1342, 0.0
    %v1927 = vmax.f32 %v1345, 0.0
    %v1928 = vmax.f32 %v1350, 0.0
    %v1929 = vmax.f32 %v1353, 0.0
    %v1930 = vmax.f32 %v1358, 0.0
    %v1931 = vmax.f32 %v1361, 0.0
    %v1932 = vmax.f32 %v1366, 0.0
    %v1933 = vmax.f32 %v1369, 0.0
    %v1934 = vmax.f32 %v1374, 0.0
    %v1935 = vmax.f32 %v1377, 0.0
    %v1936 = vmax.f32 %v1382, 0.0
    %v1937 = vmax.f32 %v1385, 0.0
    %v1938 = vmax.f32 %v1390, 0.0
    %v1939 = vmax.f32 %v1393, 0.0
    %v1940 = vmax.f32 %v1398, 0.0
    %v1941 = vmax.f32 %v1401, 0.0
    %v1942 = vmax.f32 %v1406, 0.0
    %v1943 = vmax.f32 %v1409, 0.0
    %v1944 = vmax.f32 %v1414, 0.0
    %v1945 = vmax.f32 %v1417, 0.0
    %v1946 = vmax.f32 %v1422, 0.0
    %v1947 = vmax.f32 %v1425, 0.0
    %v1948 = vmax.f32 %v1430, 0.0
    %v1949 = vmax.f32 %v1433, 0.0
    %v1950 = vmax.f32 %v1438, 0.0
    %v1951 = vmax.f32 %v1441, 0.0
    %v1952 = vmax.f32 %v1446, 0.0
    %v1953 = vmax.f32 %v1449, 0.0
    %v1954 = vmax.f32 %v1454, 0.0
    %v1955 = vmax.f32 %v1457, 0.0
    %v1956 = vmax.f32 %v1462, 0.0
    %v1957 = vmax.f32 %v1465, 0.0
    %v1958 = vmax.f32 %v1470, 0.0
    %v1959 = vmax.f32 %v1473, 0.0
    %v1960 = vmax.f32 %v1478, 0.0
    %v1961 = vmax.f32 %v1481, 0.0
    %v1962 = vmax.f32 %v1486, 0.0
    %v1963 = vmax.f32 %v1489, 0.0
    %v1964 = vmax.f32 %v1494, 0.0
    %v1965 = vmax.f32 %v1497, 0.0
    %v1966 = vmax.f32 %v1502, 0.0
    %v1967 = vmax.f32 %v1505, 0.0
    %v1968 = vmax.f32 %v1510, 0.0
    %v1969 = vmax.f32 %v1513, 0.0
    %v1970 = vmax.f32 %v1518, 0.0
    %v1971 = vmax.f32 %v1521, 0.0
    %v1972 = vmax.f32 %v1526, 0.0
    %v1973 = vmax.f32 %v1529, 0.0
    %v1974 = vmax.f32 %v1534, 0.0
    %v1975 = vmax.f32 %v1537, 0.0
    %v1976 = vmax.f32 %v1542, 0.0
    %v1977 = vmax.f32 %v1545, 0.0
    %v1978 = vmax.f32 %v1550, 0.0
    %v1979 = vmax.f32 %v1553, 0.0
    %v1980 = vmax.f32 %v1558, 0.0
    %v1981 = vmax.f32 %v1561, 0.0
    %v1982 = vmax.f32 %v1566, 0.0
    %v1983 = vmax.f32 %v1569, 0.0
    %v1984 = vmax.f32 %v1574, 0.0
    %v1985 = vmax.f32 %v1577, 0.0
    %v1986 = vmax.f32 %v1582, 0.0
    %v1987 = vmax.f32 %v1585, 0.0
    %v1988 = vmax.f32 %v1590, 0.0
    %v1989 = vmax.f32 %v1593, 0.0
    %v1990 = vmax.f32 %v1598, 0.0
    %v1991 = vmax.f32 %v1601, 0.0
    %v1992 = vmax.f32 %v1606, 0.0
    %v1993 = vmax.f32 %v1609, 0.0
    %v1994 = vmax.f32 %v1614, 0.0
    %v1995 = vmax.f32 %v1617, 0.0
    %v1996 = vmax.f32 %v1622, 0.0
    %v1997 = vmax.f32 %v1625, 0.0
    %v1998 = vmax.f32 %v1630, 0.0
    %v1999 = vmax.f32 %v1633, 0.0
    %v2000 = vmax.f32 %v1638, 0.0
    %v2001 = vmax.f32 %v1641, 0.0
    %v2002 = vmax.f32 %v1646, 0.0
    %v2003 = vmax.f32 %v1649, 0.0
    %v2004 = vmax.f32 %v1654, 0.0
    %v2005 = vmax.f32 %v1657, 0.0
    %v2006 = vmax.f32 %v1662, 0.0
    %v2007 = vmax.f32 %v1665, 0.0
    %v2008 = vmax.f32 %v1670, 0.0
    %v2009 = vmax.f32 %v1673, 0.0
    %v2010 = vmax.f32 %v1678, 0.0
    %v2011 = vmax.f32 %v1681, 0.0
    %v2012 = vmax.f32 %v1686, 0.0
    %v2013 = vmax.f32 %v1689, 0.0
    %v2014 = vmax.f32 %v1694, 0.0
    %v2015 = vmax.f32 %v1697, 0.0
    %v2016 = vmax.f32 %v1702, 0.0
    %v2017 = vmax.f32 %v1705, 0.0
    %v2018 = vmax.f32 %v1710, 0.0
    %v2019 = vmax.f32 %v1713, 0.0
    %v2020 = vmax.f32 %v1718, 0.0
    %v2021 = vmax.f32 %v1721, 0.0
    %v2022 = vmax.f32 %v1726, 0.0
    %v2023 = vmax.f32 %v1729, 0.0
    %v2024 = vmax.f32 %v1734, 0.0
    %v2025 = vmax.f32 %v1737, 0.0
    %v2026 = vmax.f32 %v1742, 0.0
    %v2027 = vmax.f32 %v1745, 0.0
    %v2028 = vmax.f32 %v1750, 0.0
    %v2029 = vmax.f32 %v1753, 0.0
    %v2030 = vmax.f32 %v1758, 0.0
    %v2031 = vmax.f32 %v1761, 0.0
    %v2032 = vmax.f32 %v1766, 0.0
    %v2033 = vmax.f32 %v1769, 0.0
    %v2034 = vmax.f32 %v1774, 0.0
    %v2035 = vmax.f32 %v1777, 0.0
    %v2036 = vmax.f32 %v1782, 0.0
    %v2037 = vmax.f32 %v1785, 0.0
    %v2038 = vmax.f32 %v1790, 0.0
    %v2039 = vmax.f32 %v1793, 0.0
    %v2040 = vmax.f32 %v1798, 0.0
    %v2041 = vmax.f32 %v1801, 0.0
    %v2042 = vmax.f32 %v1806, 0.0
    %v2043 = vmax.f32 %v1809, 0.0
    %v2044 = vmax.f32 %v1814, 0.0
    %v2045 = vmax.f32 %v1817, 0.0
    %v2046 = vmax.f32 %v1822, 0.0
    %v2047 = vmax.f32 %v1825, 0.0
    %v2048 = vmax.f32 %v1830, 0.0
    %v2049 = vmax.f32 %v1833, 0.0
    %v2050 = vmax.f32 %v1838, 0.0
    %v2051 = vmax.f32 %v1841, 0.0
    %v2052 = vmax.f32 %v1846, 0.0
    %v2053 = vmax.f32 %v1849, 0.0
    %v2054 = vmax.f32 %v1854, 0.0
    %v2055 = vmax.f32 %v1857, 0.0
    %v2056 = vpack.c.bf16 %v1861, %v1860
    %v2057 = vpack.c.bf16 %v1863, %v1862
    %v2058 = vpack.c.bf16 %v1865, %v1864
    %v2059 = vpack.c.bf16 %v1867, %v1866
    %v2060 = vpack.c.bf16 %v1869, %v1868
    %v2061 = vpack.c.bf16 %v1871, %v1870
    %v2062 = vpack.c.bf16 %v1873, %v1872
    %v2063 = vpack.c.bf16 %v1875, %v1874
    %v2064 = vpack.c.bf16 %v1877, %v1876
    %v2065 = vpack.c.bf16 %v1879, %v1878
    %v2066 = vpack.c.bf16 %v1881, %v1880
    %v2067 = vpack.c.bf16 %v1883, %v1882
    %v2068 = vpack.c.bf16 %v1885, %v1884
    %v2069 = vpack.c.bf16 %v1887, %v1886
    %v2070 = vpack.c.bf16 %v1889, %v1888
    %v2071 = vpack.c.bf16 %v1891, %v1890
    %v2072 = vpack.c.bf16 %v1893, %v1892
    %v2073 = vpack.c.bf16 %v1895, %v1894
    %v2074 = vpack.c.bf16 %v1897, %v1896
    %v2075 = vpack.c.bf16 %v1899, %v1898
    %v2076 = vpack.c.bf16 %v1901, %v1900
    %v2077 = vpack.c.bf16 %v1903, %v1902
    %v2078 = vpack.c.bf16 %v1905, %v1904
    %v2079 = vpack.c.bf16 %v1907, %v1906
    %v2080 = vpack.c.bf16 %v1909, %v1908
    %v2081 = vpack.c.bf16 %v1911, %v1910
    %v2082 = vpack.c.bf16 %v1913, %v1912
    %v2083 = vpack.c.bf16 %v1915, %v1914
    %v2084 = vpack.c.bf16 %v1917, %v1916
    %v2085 = vpack.c.bf16 %v1919, %v1918
    %v2086 = vpack.c.bf16 %v1921, %v1920
    %v2087 = vpack.c.bf16 %v1923, %v1922
    %v2088 = vpack.c.bf16 %v1925, %v1924
    %v2089 = vpack.c.bf16 %v1927, %v1926
    %v2090 = vpack.c.bf16 %v1929, %v1928
    %v2091 = vpack.c.bf16 %v1931, %v1930
    %v2092 = vpack.c.bf16 %v1933, %v1932
    %v2093 = vpack.c.bf16 %v1935, %v1934
    %v2094 = vpack.c.bf16 %v1937, %v1936
    %v2095 = vpack.c.bf16 %v1939, %v1938
    %v2096 = vpack.c.bf16 %v1941, %v1940
    %v2097 = vpack.c.bf16 %v1943, %v1942
    %v2098 = vpack.c.bf16 %v1945, %v1944
    %v2099 = vpack.c.bf16 %v1947, %v1946
    %v2100 = vpack.c.bf16 %v1949, %v1948
    %v2101 = vpack.c.bf16 %v1951, %v1950
    %v2102 = vpack.c.bf16 %v1953, %v1952
    %v2103 = vpack.c.bf16 %v1955, %v1954
    %v2104 = vpack.c.bf16 %v1957, %v1956
    %v2105 = vpack.c.bf16 %v1959, %v1958
    %v2106 = vpack.c.bf16 %v1961, %v1960
    %v2107 = vpack.c.bf16 %v1963, %v1962
    %v2108 = vpack.c.bf16 %v1965, %v1964
    %v2109 = vpack.c.bf16 %v1967, %v1966
    %v2110 = vpack.c.bf16 %v1969, %v1968
    %v2111 = vpack.c.bf16 %v1971, %v1970
    %v2112 = vpack.c.bf16 %v1973, %v1972
    %v2113 = vpack.c.bf16 %v1975, %v1974
    %v2114 = vpack.c.bf16 %v1977, %v1976
    %v2115 = vpack.c.bf16 %v1979, %v1978
    %v2116 = vpack.c.bf16 %v1981, %v1980
    %v2117 = vpack.c.bf16 %v1983, %v1982
    %v2118 = vpack.c.bf16 %v1985, %v1984
    %v2119 = vpack.c.bf16 %v1987, %v1986
    %v2120 = vpack.c.bf16 %v1989, %v1988
    %v2121 = vpack.c.bf16 %v1991, %v1990
    %v2122 = vpack.c.bf16 %v1993, %v1992
    %v2123 = vpack.c.bf16 %v1995, %v1994
    %v2124 = vpack.c.bf16 %v1997, %v1996
    %v2125 = vpack.c.bf16 %v1999, %v1998
    %v2126 = vpack.c.bf16 %v2001, %v2000
    %v2127 = vpack.c.bf16 %v2003, %v2002
    %v2128 = vpack.c.bf16 %v2005, %v2004
    %v2129 = vpack.c.bf16 %v2007, %v2006
    %v2130 = vpack.c.bf16 %v2009, %v2008
    %v2131 = vpack.c.bf16 %v2011, %v2010
    %v2132 = vpack.c.bf16 %v2013, %v2012
    %v2133 = vpack.c.bf16 %v2015, %v2014
    %v2134 = vpack.c.bf16 %v2017, %v2016
    %v2135 = vpack.c.bf16 %v2019, %v2018
    %v2136 = vpack.c.bf16 %v2021, %v2020
    %v2137 = vpack.c.bf16 %v2023, %v2022
    %v2138 = vpack.c.bf16 %v2025, %v2024
    %v2139 = vpack.c.bf16 %v2027, %v2026
    %v2140 = vpack.c.bf16 %v2029, %v2028
    %v2141 = vpack.c.bf16 %v2031, %v2030
    %v2142 = vpack.c.bf16 %v2033, %v2032
    %v2143 = vpack.c.bf16 %v2035, %v2034
    %v2144 = vpack.c.bf16 %v2037, %v2036
    %v2145 = vpack.c.bf16 %v2039, %v2038
    %v2146 = vpack.c.bf16 %v2041, %v2040
    %v2147 = vpack.c.bf16 %v2043, %v2042
    %v2148 = vpack.c.bf16 %v2045, %v2044
    %v2149 = vpack.c.bf16 %v2047, %v2046
    %v2150 = vpack.c.bf16 %v2049, %v2048
    %v2151 = vpack.c.bf16 %v2051, %v2050
    %v2152 = vpack.c.bf16 %v2053, %v2052
    %v2153 = vpack.c.bf16 %v2055, %v2054
    %v2252 = vunpack.c.l.b16 %v2056
    %v2253 = vunpack.c.h.b16 %v2056
    %v2254 = vunpack.c.l.b16 %v2057
    %v2255 = vunpack.c.h.b16 %v2057
    %v2256 = vunpack.c.l.b16 %v2058
    %v2257 = vunpack.c.h.b16 %v2058
    %v2258 = vunpack.c.l.b16 %v2059
    %v2259 = vunpack.c.h.b16 %v2059
    %v2260 = vunpack.c.l.b16 %v2060
    %v2261 = vunpack.c.h.b16 %v2060
    %v2262 = vunpack.c.l.b16 %v2061
    %v2263 = vunpack.c.h.b16 %v2061
    %v2264 = vunpack.c.l.b16 %v2062
    %v2265 = vunpack.c.h.b16 %v2062
    %v2266 = vunpack.c.l.b16 %v2063
    %v2267 = vunpack.c.h.b16 %v2063
    %v2268 = vunpack.c.l.b16 %v2064
    %v2269 = vunpack.c.h.b16 %v2064
    %v2270 = vunpack.c.l.b16 %v2065
    %v2271 = vunpack.c.h.b16 %v2065
    %v2272 = vunpack.c.l.b16 %v2066
    %v2273 = vunpack.c.h.b16 %v2066
    %v2274 = vunpack.c.l.b16 %v2067
    %v2275 = vunpack.c.h.b16 %v2067
    %v2276 = vunpack.c.l.b16 %v2068
    %v2277 = vunpack.c.h.b16 %v2068
    %v2278 = vunpack.c.l.b16 %v2069
    %v2279 = vunpack.c.h.b16 %v2069
    %v2280 = vunpack.c.l.b16 %v2070
    %v2281 = vunpack.c.h.b16 %v2070
    %v2282 = vunpack.c.l.b16 %v2071
    %v2283 = vunpack.c.h.b16 %v2071
    %v2284 = vunpack.c.l.b16 %v2072
    %v2285 = vunpack.c.h.b16 %v2072
    %v2286 = vunpack.c.l.b16 %v2073
    %v2287 = vunpack.c.h.b16 %v2073
    %v2288 = vunpack.c.l.b16 %v2074
    %v2289 = vunpack.c.h.b16 %v2074
    %v2290 = vunpack.c.l.b16 %v2075
    %v2291 = vunpack.c.h.b16 %v2075
    %v2292 = vunpack.c.l.b16 %v2076
    %v2293 = vunpack.c.h.b16 %v2076
    %v2294 = vunpack.c.l.b16 %v2077
    %v2295 = vunpack.c.h.b16 %v2077
    %v2296 = vunpack.c.l.b16 %v2078
    %v2297 = vunpack.c.h.b16 %v2078
    %v2298 = vunpack.c.l.b16 %v2079
    %v2299 = vunpack.c.h.b16 %v2079
    %v2300 = vunpack.c.l.b16 %v2080
    %v2301 = vunpack.c.h.b16 %v2080
    %v2302 = vunpack.c.l.b16 %v2081
    %v2303 = vunpack.c.h.b16 %v2081
    %v2304 = vunpack.c.l.b16 %v2082
    %v2305 = vunpack.c.h.b16 %v2082
    %v2306 = vunpack.c.l.b16 %v2083
    %v2307 = vunpack.c.h.b16 %v2083
    %v2308 = vunpack.c.l.b16 %v2084
    %v2309 = vunpack.c.h.b16 %v2084
    %v2310 = vunpack.c.l.b16 %v2085
    %v2311 = vunpack.c.h.b16 %v2085
    %v2312 = vunpack.c.l.b16 %v2086
    %v2313 = vunpack.c.h.b16 %v2086
    %v2314 = vunpack.c.l.b16 %v2087
    %v2315 = vunpack.c.h.b16 %v2087
    %v2316 = vunpack.c.l.b16 %v2088
    %v2317 = vunpack.c.h.b16 %v2088
    %v2318 = vunpack.c.l.b16 %v2089
    %v2319 = vunpack.c.h.b16 %v2089
    %v2320 = vunpack.c.l.b16 %v2090
    %v2321 = vunpack.c.h.b16 %v2090
    %v2322 = vunpack.c.l.b16 %v2091
    %v2323 = vunpack.c.h.b16 %v2091
    %v2324 = vunpack.c.l.b16 %v2092
    %v2325 = vunpack.c.h.b16 %v2092
    %v2326 = vunpack.c.l.b16 %v2093
    %v2327 = vunpack.c.h.b16 %v2093
    %v2328 = vunpack.c.l.b16 %v2094
    %v2329 = vunpack.c.h.b16 %v2094
    %v2330 = vunpack.c.l.b16 %v2095
    %v2331 = vunpack.c.h.b16 %v2095
    %v2332 = vunpack.c.l.b16 %v2096
    %v2333 = vunpack.c.h.b16 %v2096
    %v2334 = vunpack.c.l.b16 %v2097
    %v2335 = vunpack.c.h.b16 %v2097
    %v2336 = vunpack.c.l.b16 %v2098
    %v2337 = vunpack.c.h.b16 %v2098
    %v2338 = vunpack.c.l.b16 %v2099
    %v2339 = vunpack.c.h.b16 %v2099
    %v2340 = vunpack.c.l.b16 %v2100
    %v2341 = vunpack.c.h.b16 %v2100
    %v2342 = vunpack.c.l.b16 %v2101
    %v2343 = vunpack.c.h.b16 %v2101
    %v2344 = vunpack.c.l.b16 %v2102
    %v2345 = vunpack.c.h.b16 %v2102
    %v2346 = vunpack.c.l.b16 %v2103
    %v2347 = vunpack.c.h.b16 %v2103
    %v2348 = vunpack.c.l.b16 %v2104
    %v2349 = vunpack.c.h.b16 %v2104
    %v2350 = vunpack.c.l.b16 %v2105
    %v2351 = vunpack.c.h.b16 %v2105
    %v2352 = vunpack.c.l.b16 %v2106
    %v2353 = vunpack.c.h.b16 %v2106
    %v2354 = vunpack.c.l.b16 %v2107
    %v2355 = vunpack.c.h.b16 %v2107
    %v2356 = vunpack.c.l.b16 %v2108
    %v2357 = vunpack.c.h.b16 %v2108
    %v2358 = vunpack.c.l.b16 %v2109
    %v2359 = vunpack.c.h.b16 %v2109
    %v2360 = vunpack.c.l.b16 %v2110
    %v2361 = vunpack.c.h.b16 %v2110
    %v2362 = vunpack.c.l.b16 %v2111
    %v2363 = vunpack.c.h.b16 %v2111
    %v2364 = vunpack.c.l.b16 %v2112
    %v2365 = vunpack.c.h.b16 %v2112
    %v2366 = vunpack.c.l.b16 %v2113
    %v2367 = vunpack.c.h.b16 %v2113
    %v2368 = vunpack.c.l.b16 %v2114
    %v2369 = vunpack.c.h.b16 %v2114
    %v2370 = vunpack.c.l.b16 %v2115
    %v2371 = vunpack.c.h.b16 %v2115
    %v2372 = vunpack.c.l.b16 %v2116
    %v2373 = vunpack.c.h.b16 %v2116
    %v2374 = vunpack.c.l.b16 %v2117
    %v2375 = vunpack.c.h.b16 %v2117
    %v2376 = vunpack.c.l.b16 %v2118
    %v2377 = vunpack.c.h.b16 %v2118
    %v2378 = vunpack.c.l.b16 %v2119
    %v2379 = vunpack.c.h.b16 %v2119
    %v2380 = vunpack.c.l.b16 %v2120
    %v2381 = vunpack.c.h.b16 %v2120
    %v2382 = vunpack.c.l.b16 %v2121
    %v2383 = vunpack.c.h.b16 %v2121
    %v2384 = vunpack.c.l.b16 %v2122
    %v2385 = vunpack.c.h.b16 %v2122
    %v2386 = vunpack.c.l.b16 %v2123
    %v2387 = vunpack.c.h.b16 %v2123
    %v2388 = vunpack.c.l.b16 %v2124
    %v2389 = vunpack.c.h.b16 %v2124
    %v2390 = vunpack.c.l.b16 %v2125
    %v2391 = vunpack.c.h.b16 %v2125
    %v2392 = vunpack.c.l.b16 %v2126
    %v2393 = vunpack.c.h.b16 %v2126
    %v2394 = vunpack.c.l.b16 %v2127
    %v2395 = vunpack.c.h.b16 %v2127
    %v2396 = vunpack.c.l.b16 %v2128
    %v2397 = vunpack.c.h.b16 %v2128
    %v2398 = vunpack.c.l.b16 %v2129
    %v2399 = vunpack.c.h.b16 %v2129
    %v2400 = vunpack.c.l.b16 %v2130
    %v2401 = vunpack.c.h.b16 %v2130
    %v2402 = vunpack.c.l.b16 %v2131
    %v2403 = vunpack.c.h.b16 %v2131
    %v2404 = vunpack.c.l.b16 %v2132
    %v2405 = vunpack.c.h.b16 %v2132
    %v2406 = vunpack.c.l.b16 %v2133
    %v2407 = vunpack.c.h.b16 %v2133
    %v2408 = vunpack.c.l.b16 %v2134
    %v2409 = vunpack.c.h.b16 %v2134
    %v2410 = vunpack.c.l.b16 %v2135
    %v2411 = vunpack.c.h.b16 %v2135
    %v2412 = vunpack.c.l.b16 %v2136
    %v2413 = vunpack.c.h.b16 %v2136
    %v2414 = vunpack.c.l.b16 %v2137
    %v2415 = vunpack.c.h.b16 %v2137
    %v2416 = vunpack.c.l.b16 %v2138
    %v2417 = vunpack.c.h.b16 %v2138
    %v2418 = vunpack.c.l.b16 %v2139
    %v2419 = vunpack.c.h.b16 %v2139
    %v2420 = vunpack.c.l.b16 %v2140
    %v2421 = vunpack.c.h.b16 %v2140
    %v2422 = vunpack.c.l.b16 %v2141
    %v2423 = vunpack.c.h.b16 %v2141
    %v2424 = vunpack.c.l.b16 %v2142
    %v2425 = vunpack.c.h.b16 %v2142
    %v2426 = vunpack.c.l.b16 %v2143
    %v2427 = vunpack.c.h.b16 %v2143
    %v2428 = vunpack.c.l.b16 %v2144
    %v2429 = vunpack.c.h.b16 %v2144
    %v2430 = vunpack.c.l.b16 %v2145
    %v2431 = vunpack.c.h.b16 %v2145
    %v2432 = vunpack.c.l.b16 %v2146
    %v2433 = vunpack.c.h.b16 %v2146
    %v2434 = vunpack.c.l.b16 %v2147
    %v2435 = vunpack.c.h.b16 %v2147
    %v2436 = vunpack.c.l.b16 %v2148
    %v2437 = vunpack.c.h.b16 %v2148
    %v2438 = vunpack.c.l.b16 %v2149
    %v2439 = vunpack.c.h.b16 %v2149
    %v2440 = vunpack.c.l.b16 %v2150
    %v2441 = vunpack.c.h.b16 %v2150
    %v2442 = vunpack.c.l.b16 %v2151
    %v2443 = vunpack.c.h.b16 %v2151
    %v2444 = vunpack.c.l.b16 %v2152
    %v2445 = vunpack.c.h.b16 %v2152
    %v2446 = vunpack.c.l.b16 %v2153
    %v2447 = vunpack.c.h.b16 %v2153
    %v2448 = vpack.c.b16 %v2252, %v2252
    %v2449 = vpack.c.b16 %v2253, %v2253
    %v2450 = vpack.c.b16 %v2254, %v2254
    %v2451 = vpack.c.b16 %v2255, %v2255
    %v2452 = vpack.c.b16 %v2256, %v2256
    %v2453 = vpack.c.b16 %v2257, %v2257
    %v2454 = vpack.c.b16 %v2258, %v2258
    %v2455 = vpack.c.b16 %v2259, %v2259
    %v2456 = vpack.c.b16 %v2260, %v2260
    %v2457 = vpack.c.b16 %v2261, %v2261
    %v2458 = vpack.c.b16 %v2262, %v2262
    %v2459 = vpack.c.b16 %v2263, %v2263
    %v2460 = vpack.c.b16 %v2264, %v2264
    %v2461 = vpack.c.b16 %v2265, %v2265
    %v2462 = vpack.c.b16 %v2266, %v2266
    %v2463 = vpack.c.b16 %v2267, %v2267
    %v2464 = vpack.c.b16 %v2268, %v2268
    %v2465 = vpack.c.b16 %v2269, %v2269
    %v2466 = vpack.c.b16 %v2270, %v2270
    %v2467 = vpack.c.b16 %v2271, %v2271
    %v2468 = vpack.c.b16 %v2272, %v2272
    %v2469 = vpack.c.b16 %v2273, %v2273
    %v2470 = vpack.c.b16 %v2274, %v2274
    %v2471 = vpack.c.b16 %v2275, %v2275
    %v2472 = vpack.c.b16 %v2276, %v2276
    %v2473 = vpack.c.b16 %v2277, %v2277
    %v2474 = vpack.c.b16 %v2278, %v2278
    %v2475 = vpack.c.b16 %v2279, %v2279
    %v2476 = vpack.c.b16 %v2280, %v2280
    %v2477 = vpack.c.b16 %v2281, %v2281
    %v2478 = vpack.c.b16 %v2282, %v2282
    %v2479 = vpack.c.b16 %v2283, %v2283
    %v2480 = vpack.c.b16 %v2284, %v2284
    %v2481 = vpack.c.b16 %v2285, %v2285
    %v2482 = vpack.c.b16 %v2286, %v2286
    %v2483 = vpack.c.b16 %v2287, %v2287
    %v2484 = vpack.c.b16 %v2288, %v2288
    %v2485 = vpack.c.b16 %v2289, %v2289
    %v2486 = vpack.c.b16 %v2290, %v2290
    %v2487 = vpack.c.b16 %v2291, %v2291
    %v2488 = vpack.c.b16 %v2292, %v2292
    %v2489 = vpack.c.b16 %v2293, %v2293
    %v2490 = vpack.c.b16 %v2294, %v2294
    %v2491 = vpack.c.b16 %v2295, %v2295
    %v2492 = vpack.c.b16 %v2296, %v2296
    %v2493 = vpack.c.b16 %v2297, %v2297
    %v2494 = vpack.c.b16 %v2298, %v2298
    %v2495 = vpack.c.b16 %v2299, %v2299
    %v2496 = vpack.c.b16 %v2300, %v2300
    %v2497 = vpack.c.b16 %v2301, %v2301
    %v2498 = vpack.c.b16 %v2302, %v2302
    %v2499 = vpack.c.b16 %v2303, %v2303
    %v2500 = vpack.c.b16 %v2304, %v2304
    %v2501 = vpack.c.b16 %v2305, %v2305
    %v2502 = vpack.c.b16 %v2306, %v2306
    %v2503 = vpack.c.b16 %v2307, %v2307
    %v2504 = vpack.c.b16 %v2308, %v2308
    %v2505 = vpack.c.b16 %v2309, %v2309
    %v2506 = vpack.c.b16 %v2310, %v2310
    %v2507 = vpack.c.b16 %v2311, %v2311
    %v2508 = vpack.c.b16 %v2312, %v2312
    %v2509 = vpack.c.b16 %v2313, %v2313
    %v2510 = vpack.c.b16 %v2314, %v2314
    %v2511 = vpack.c.b16 %v2315, %v2315
    %v2512 = vpack.c.b16 %v2316, %v2316
    %v2513 = vpack.c.b16 %v2317, %v2317
    %v2514 = vpack.c.b16 %v2318, %v2318
    %v2515 = vpack.c.b16 %v2319, %v2319
    %v2516 = vpack.c.b16 %v2320, %v2320
    %v2517 = vpack.c.b16 %v2321, %v2321
    %v2518 = vpack.c.b16 %v2322, %v2322
    %v2519 = vpack.c.b16 %v2323, %v2323
    %v2520 = vpack.c.b16 %v2324, %v2324
    %v2521 = vpack.c.b16 %v2325, %v2325
    %v2522 = vpack.c.b16 %v2326, %v2326
    %v2523 = vpack.c.b16 %v2327, %v2327
    %v2524 = vpack.c.b16 %v2328, %v2328
    %v2525 = vpack.c.b16 %v2329, %v2329
    %v2526 = vpack.c.b16 %v2330, %v2330
    %v2527 = vpack.c.b16 %v2331, %v2331
    %v2528 = vpack.c.b16 %v2332, %v2332
    %v2529 = vpack.c.b16 %v2333, %v2333
    %v2530 = vpack.c.b16 %v2334, %v2334
    %v2531 = vpack.c.b16 %v2335, %v2335
    %v2532 = vpack.c.b16 %v2336, %v2336
    %v2533 = vpack.c.b16 %v2337, %v2337
    %v2534 = vpack.c.b16 %v2338, %v2338
    %v2535 = vpack.c.b16 %v2339, %v2339
    %v2536 = vpack.c.b16 %v2340, %v2340
    %v2537 = vpack.c.b16 %v2341, %v2341
    %v2538 = vpack.c.b16 %v2342, %v2342
    %v2539 = vpack.c.b16 %v2343, %v2343
    %v2540 = vpack.c.b16 %v2344, %v2344
    %v2541 = vpack.c.b16 %v2345, %v2345
    %v2542 = vpack.c.b16 %v2346, %v2346
    %v2543 = vpack.c.b16 %v2347, %v2347
    %v2544 = vpack.c.b16 %v2348, %v2348
    %v2545 = vpack.c.b16 %v2349, %v2349
    %v2546 = vpack.c.b16 %v2350, %v2350
    %v2547 = vpack.c.b16 %v2351, %v2351
    %v2548 = vpack.c.b16 %v2352, %v2352
    %v2549 = vpack.c.b16 %v2353, %v2353
    %v2550 = vpack.c.b16 %v2354, %v2354
    %v2551 = vpack.c.b16 %v2355, %v2355
    %v2552 = vpack.c.b16 %v2356, %v2356
    %v2553 = vpack.c.b16 %v2357, %v2357
    %v2554 = vpack.c.b16 %v2358, %v2358
    %v2555 = vpack.c.b16 %v2359, %v2359
    %v2556 = vpack.c.b16 %v2360, %v2360
    %v2557 = vpack.c.b16 %v2361, %v2361
    %v2558 = vpack.c.b16 %v2362, %v2362
    %v2559 = vpack.c.b16 %v2363, %v2363
    %v2560 = vpack.c.b16 %v2364, %v2364
    %v2561 = vpack.c.b16 %v2365, %v2365
    %v2562 = vpack.c.b16 %v2366, %v2366
    %v2563 = vpack.c.b16 %v2367, %v2367
    %v2564 = vpack.c.b16 %v2368, %v2368
    %v2565 = vpack.c.b16 %v2369, %v2369
    %v2566 = vpack.c.b16 %v2370, %v2370
    %v2567 = vpack.c.b16 %v2371, %v2371
    %v2568 = vpack.c.b16 %v2372, %v2372
    %v2569 = vpack.c.b16 %v2373, %v2373
    %v2570 = vpack.c.b16 %v2374, %v2374
    %v2571 = vpack.c.b16 %v2375, %v2375
    %v2572 = vpack.c.b16 %v2376, %v2376
    %v2573 = vpack.c.b16 %v2377, %v2377
    %v2574 = vpack.c.b16 %v2378, %v2378
    %v2575 = vpack.c.b16 %v2379, %v2379
    %v2576 = vpack.c.b16 %v2380, %v2380
    %v2577 = vpack.c.b16 %v2381, %v2381
    %v2578 = vpack.c.b16 %v2382, %v2382
    %v2579 = vpack.c.b16 %v2383, %v2383
    %v2580 = vpack.c.b16 %v2384, %v2384
    %v2581 = vpack.c.b16 %v2385, %v2385
    %v2582 = vpack.c.b16 %v2386, %v2386
    %v2583 = vpack.c.b16 %v2387, %v2387
    %v2584 = vpack.c.b16 %v2388, %v2388
    %v2585 = vpack.c.b16 %v2389, %v2389
    %v2586 = vpack.c.b16 %v2390, %v2390
    %v2587 = vpack.c.b16 %v2391, %v2391
    %v2588 = vpack.c.b16 %v2392, %v2392
    %v2589 = vpack.c.b16 %v2393, %v2393
    %v2590 = vpack.c.b16 %v2394, %v2394
    %v2591 = vpack.c.b16 %v2395, %v2395
    %v2592 = vpack.c.b16 %v2396, %v2396
    %v2593 = vpack.c.b16 %v2397, %v2397
    %v2594 = vpack.c.b16 %v2398, %v2398
    %v2595 = vpack.c.b16 %v2399, %v2399
    %v2596 = vpack.c.b16 %v2400, %v2400
    %v2597 = vpack.c.b16 %v2401, %v2401
    %v2598 = vpack.c.b16 %v2402, %v2402
    %v2599 = vpack.c.b16 %v2403, %v2403
    %v2600 = vpack.c.b16 %v2404, %v2404
    %v2601 = vpack.c.b16 %v2405, %v2405
    %v2602 = vpack.c.b16 %v2406, %v2406
    %v2603 = vpack.c.b16 %v2407, %v2407
    %v2604 = vpack.c.b16 %v2408, %v2408
    %v2605 = vpack.c.b16 %v2409, %v2409
    %v2606 = vpack.c.b16 %v2410, %v2410
    %v2607 = vpack.c.b16 %v2411, %v2411
    %v2608 = vpack.c.b16 %v2412, %v2412
    %v2609 = vpack.c.b16 %v2413, %v2413
    %v2610 = vpack.c.b16 %v2414, %v2414
    %v2611 = vpack.c.b16 %v2415, %v2415
    %v2612 = vpack.c.b16 %v2416, %v2416
    %v2613 = vpack.c.b16 %v2417, %v2417
    %v2614 = vpack.c.b16 %v2418, %v2418
    %v2615 = vpack.c.b16 %v2419, %v2419
    %v2616 = vpack.c.b16 %v2420, %v2420
    %v2617 = vpack.c.b16 %v2421, %v2421
    %v2618 = vpack.c.b16 %v2422, %v2422
    %v2619 = vpack.c.b16 %v2423, %v2423
    %v2620 = vpack.c.b16 %v2424, %v2424
    %v2621 = vpack.c.b16 %v2425, %v2425
    %v2622 = vpack.c.b16 %v2426, %v2426
    %v2623 = vpack.c.b16 %v2427, %v2427
    %v2624 = vpack.c.b16 %v2428, %v2428
    %v2625 = vpack.c.b16 %v2429, %v2429
    %v2626 = vpack.c.b16 %v2430, %v2430
    %v2627 = vpack.c.b16 %v2431, %v2431
    %v2628 = vpack.c.b16 %v2432, %v2432
    %v2629 = vpack.c.b16 %v2433, %v2433
    %v2630 = vpack.c.b16 %v2434, %v2434
    %v2631 = vpack.c.b16 %v2435, %v2435
    %v2632 = vpack.c.b16 %v2436, %v2436
    %v2633 = vpack.c.b16 %v2437, %v2437
    %v2634 = vpack.c.b16 %v2438, %v2438
    %v2635 = vpack.c.b16 %v2439, %v2439
    %v2636 = vpack.c.b16 %v2440, %v2440
    %v2637 = vpack.c.b16 %v2441, %v2441
    %v2638 = vpack.c.b16 %v2442, %v2442
    %v2639 = vpack.c.b16 %v2443, %v2443
    %v2640 = vpack.c.b16 %v2444, %v2444
    %v2641 = vpack.c.b16 %v2445, %v2445
    %v2642 = vpack.c.b16 %v2446, %v2446
    %v2643 = vpack.c.b16 %v2447, %v2447
    %2840 = vst [vmem:[%s3] sm:$0xf] %v2448
    %2841 = vst [vmem:[%s3 + $0x4] sm:$0xf] %v2449
    %2842 = vst [vmem:[%s3 + $0x8] sm:$0xf] %v2450
    %2843 = vst [vmem:[%s3 + $0xc] sm:$0xf] %v2451
    %2844 = vst [vmem:[%s3 + $0x10] sm:$0xf] %v2452
    %2845 = vst [vmem:[%s3 + $0x14] sm:$0xf] %v2453
    %2846 = vst [vmem:[%s3 + $0x18] sm:$0xf] %v2454
    %2847 = vst [vmem:[%s3 + $0x1c] sm:$0xf] %v2455
    %2848 = vst [vmem:[%s3 + $0x20] sm:$0xf] %v2456
    %2849 = vst [vmem:[%s3 + $0x24] sm:$0xf] %v2457
    %2850 = vst [vmem:[%s3 + $0x28] sm:$0xf] %v2458
    %2851 = vst [vmem:[%s3 + $0x2c] sm:$0xf] %v2459
    %2852 = vst [vmem:[%s3 + $0x30] sm:$0xf] %v2460
    %2853 = vst [vmem:[%s3 + $0x34] sm:$0xf] %v2461
    %2854 = vst [vmem:[%s3 + $0x38] sm:$0xf] %v2462
    %2855 = vst [vmem:[%s3 + $0x3c] sm:$0xf] %v2463
    %2856 = vst [vmem:[%s3 + $0x40] sm:$0xf] %v2464
    %2857 = vst [vmem:[%s3 + $0x44] sm:$0xf] %v2465
    %2858 = vst [vmem:[%s3 + $0x48] sm:$0xf] %v2466
    %2859 = vst [vmem:[%s3 + $0x4c] sm:$0xf] %v2467
    %2860 = vst [vmem:[%s3 + $0x50] sm:$0xf] %v2468
    %2861 = vst [vmem:[%s3 + $0x54] sm:$0xf] %v2469
    %2862 = vst [vmem:[%s3 + $0x58] sm:$0xf] %v2470
    %2863 = vst [vmem:[%s3 + $0x5c] sm:$0xf] %v2471
    %2864 = vst [vmem:[%s3 + $0x60] sm:$0xf] %v2472
    %2865 = vst [vmem:[%s3 + $0x64] sm:$0xf] %v2473
    %2866 = vst [vmem:[%s3 + $0x68] sm:$0xf] %v2474
    %2867 = vst [vmem:[%s3 + $0x6c] sm:$0xf] %v2475
    %2868 = vst [vmem:[%s3 + $0x70] sm:$0xf] %v2476
    %2869 = vst [vmem:[%s3 + $0x74] sm:$0xf] %v2477
    %2870 = vst [vmem:[%s3 + $0x78] sm:$0xf] %v2478
    %2871 = vst [vmem:[%s3 + $0x7c] sm:$0xf] %v2479
    %2872 = vst [vmem:[%s3 + $0x80] sm:$0xf] %v2480
    %2873 = vst [vmem:[%s3 + $0x84] sm:$0xf] %v2481
    %2874 = vst [vmem:[%s3 + $0x88] sm:$0xf] %v2482
    %2875 = vst [vmem:[%s3 + $0x8c] sm:$0xf] %v2483
    %2876 = vst [vmem:[%s3 + $0x90] sm:$0xf] %v2484
    %2877 = vst [vmem:[%s3 + $0x94] sm:$0xf] %v2485
    %2878 = vst [vmem:[%s3 + $0x98] sm:$0xf] %v2486
    %2879 = vst [vmem:[%s3 + $0x9c] sm:$0xf] %v2487
    %2880 = vst [vmem:[%s3 + $0xa0] sm:$0xf] %v2488
    %2881 = vst [vmem:[%s3 + $0xa4] sm:$0xf] %v2489
    %2882 = vst [vmem:[%s3 + $0xa8] sm:$0xf] %v2490
    %2883 = vst [vmem:[%s3 + $0xac] sm:$0xf] %v2491
    %2884 = vst [vmem:[%s3 + $0xb0] sm:$0xf] %v2492
    %2885 = vst [vmem:[%s3 + $0xb4] sm:$0xf] %v2493
    %2886 = vst [vmem:[%s3 + $0xb8] sm:$0xf] %v2494
    %2887 = vst [vmem:[%s3 + $0xbc] sm:$0xf] %v2495
    %2888 = vst [vmem:[%s3 + $0xc0] sm:$0xf] %v2496
    %2889 = vst [vmem:[%s3 + $0xc4] sm:$0xf] %v2497
    %2890 = vst [vmem:[%s3 + $0xc8] sm:$0xf] %v2498
    %2891 = vst [vmem:[%s3 + $0xcc] sm:$0xf] %v2499
    %2892 = vst [vmem:[%s3 + $0xd0] sm:$0xf] %v2500
    %2893 = vst [vmem:[%s3 + $0xd4] sm:$0xf] %v2501
    %2894 = vst [vmem:[%s3 + $0xd8] sm:$0xf] %v2502
    %2895 = vst [vmem:[%s3 + $0xdc] sm:$0xf] %v2503
    %2896 = vst [vmem:[%s3 + $0xe0] sm:$0xf] %v2504
    %2897 = vst [vmem:[%s3 + $0xe4] sm:$0xf] %v2505
    %2898 = vst [vmem:[%s3 + $0xe8] sm:$0xf] %v2506
    %2899 = vst [vmem:[%s3 + $0xec] sm:$0xf] %v2507
    %2900 = vst [vmem:[%s3 + $0xf0] sm:$0xf] %v2508
    %2901 = vst [vmem:[%s3 + $0xf4] sm:$0xf] %v2509
    %2902 = vst [vmem:[%s3 + $0xf8] sm:$0xf] %v2510
    %2903 = vst [vmem:[%s3 + $0xfc] sm:$0xf] %v2511
    %2904 = vst [vmem:[%s3 + $0x100] sm:$0xf] %v2512
    %2905 = vst [vmem:[%s3 + $0x104] sm:$0xf] %v2513
    %2906 = vst [vmem:[%s3 + $0x108] sm:$0xf] %v2514
    %2907 = vst [vmem:[%s3 + $0x10c] sm:$0xf] %v2515
    %2908 = vst [vmem:[%s3 + $0x110] sm:$0xf] %v2516
    %2909 = vst [vmem:[%s3 + $0x114] sm:$0xf] %v2517
    %2910 = vst [vmem:[%s3 + $0x118] sm:$0xf] %v2518
    %2911 = vst [vmem:[%s3 + $0x11c] sm:$0xf] %v2519
    %2912 = vst [vmem:[%s3 + $0x120] sm:$0xf] %v2520
    %2913 = vst [vmem:[%s3 + $0x124] sm:$0xf] %v2521
    %2914 = vst [vmem:[%s3 + $0x128] sm:$0xf] %v2522
    %2915 = vst [vmem:[%s3 + $0x12c] sm:$0xf] %v2523
    %2916 = vst [vmem:[%s3 + $0x130] sm:$0xf] %v2524
    %2917 = vst [vmem:[%s3 + $0x134] sm:$0xf] %v2525
    %2918 = vst [vmem:[%s3 + $0x138] sm:$0xf] %v2526
    %2919 = vst [vmem:[%s3 + $0x13c] sm:$0xf] %v2527
    %2920 = vst [vmem:[%s3 + $0x140] sm:$0xf] %v2528
    %2921 = vst [vmem:[%s3 + $0x144] sm:$0xf] %v2529
    %2922 = vst [vmem:[%s3 + $0x148] sm:$0xf] %v2530
    %2923 = vst [vmem:[%s3 + $0x14c] sm:$0xf] %v2531
    %2924 = vst [vmem:[%s3 + $0x150] sm:$0xf] %v2532
    %2925 = vst [vmem:[%s3 + $0x154] sm:$0xf] %v2533
    %2926 = vst [vmem:[%s3 + $0x158] sm:$0xf] %v2534
    %2927 = vst [vmem:[%s3 + $0x15c] sm:$0xf] %v2535
    %2928 = vst [vmem:[%s3 + $0x160] sm:$0xf] %v2536
    %2929 = vst [vmem:[%s3 + $0x164] sm:$0xf] %v2537
    %2930 = vst [vmem:[%s3 + $0x168] sm:$0xf] %v2538
    %2931 = vst [vmem:[%s3 + $0x16c] sm:$0xf] %v2539
    %2932 = vst [vmem:[%s3 + $0x170] sm:$0xf] %v2540
    %2933 = vst [vmem:[%s3 + $0x174] sm:$0xf] %v2541
    %2934 = vst [vmem:[%s3 + $0x178] sm:$0xf] %v2542
    %2935 = vst [vmem:[%s3 + $0x17c] sm:$0xf] %v2543
    %2936 = vst [vmem:[%s3 + $0x180] sm:$0xf] %v2544
    %2937 = vst [vmem:[%s3 + $0x184] sm:$0xf] %v2545
    %2938 = vst [vmem:[%s3 + $0x188] sm:$0xf] %v2546
    %2939 = vst [vmem:[%s3 + $0x18c] sm:$0xf] %v2547
    %2940 = vst [vmem:[%s3 + $0x190] sm:$0xf] %v2548
    %2941 = vst [vmem:[%s3 + $0x194] sm:$0xf] %v2549
    %2942 = vst [vmem:[%s3 + $0x198] sm:$0xf] %v2550
    %2943 = vst [vmem:[%s3 + $0x19c] sm:$0xf] %v2551
    %2944 = vst [vmem:[%s3 + $0x1a0] sm:$0xf] %v2552
    %2945 = vst [vmem:[%s3 + $0x1a4] sm:$0xf] %v2553
    %2946 = vst [vmem:[%s3 + $0x1a8] sm:$0xf] %v2554
    %2947 = vst [vmem:[%s3 + $0x1ac] sm:$0xf] %v2555
    %2948 = vst [vmem:[%s3 + $0x1b0] sm:$0xf] %v2556
    %2949 = vst [vmem:[%s3 + $0x1b4] sm:$0xf] %v2557
    %2950 = vst [vmem:[%s3 + $0x1b8] sm:$0xf] %v2558
    %2951 = vst [vmem:[%s3 + $0x1bc] sm:$0xf] %v2559
    %2952 = vst [vmem:[%s3 + $0x1c0] sm:$0xf] %v2560
    %2953 = vst [vmem:[%s3 + $0x1c4] sm:$0xf] %v2561
    %2954 = vst [vmem:[%s3 + $0x1c8] sm:$0xf] %v2562
    %2955 = vst [vmem:[%s3 + $0x1cc] sm:$0xf] %v2563
    %2956 = vst [vmem:[%s3 + $0x1d0] sm:$0xf] %v2564
    %2957 = vst [vmem:[%s3 + $0x1d4] sm:$0xf] %v2565
    %2958 = vst [vmem:[%s3 + $0x1d8] sm:$0xf] %v2566
    %2959 = vst [vmem:[%s3 + $0x1dc] sm:$0xf] %v2567
    %2960 = vst [vmem:[%s3 + $0x1e0] sm:$0xf] %v2568
    %2961 = vst [vmem:[%s3 + $0x1e4] sm:$0xf] %v2569
    %2962 = vst [vmem:[%s3 + $0x1e8] sm:$0xf] %v2570
    %2963 = vst [vmem:[%s3 + $0x1ec] sm:$0xf] %v2571
    %2964 = vst [vmem:[%s3 + $0x1f0] sm:$0xf] %v2572
    %2965 = vst [vmem:[%s3 + $0x1f4] sm:$0xf] %v2573
    %2966 = vst [vmem:[%s3 + $0x1f8] sm:$0xf] %v2574
    %2967 = vst [vmem:[%s3 + $0x1fc] sm:$0xf] %v2575
    %2968 = vst [vmem:[%s3 + $0x200] sm:$0xf] %v2576
    %2969 = vst [vmem:[%s3 + $0x204] sm:$0xf] %v2577
    %2970 = vst [vmem:[%s3 + $0x208] sm:$0xf] %v2578
    %2971 = vst [vmem:[%s3 + $0x20c] sm:$0xf] %v2579
    %2972 = vst [vmem:[%s3 + $0x210] sm:$0xf] %v2580
    %2973 = vst [vmem:[%s3 + $0x214] sm:$0xf] %v2581
    %2974 = vst [vmem:[%s3 + $0x218] sm:$0xf] %v2582
    %2975 = vst [vmem:[%s3 + $0x21c] sm:$0xf] %v2583
    %2976 = vst [vmem:[%s3 + $0x220] sm:$0xf] %v2584
    %2977 = vst [vmem:[%s3 + $0x224] sm:$0xf] %v2585
    %2978 = vst [vmem:[%s3 + $0x228] sm:$0xf] %v2586
    %2979 = vst [vmem:[%s3 + $0x22c] sm:$0xf] %v2587
    %2980 = vst [vmem:[%s3 + $0x230] sm:$0xf] %v2588
    %2981 = vst [vmem:[%s3 + $0x234] sm:$0xf] %v2589
    %2982 = vst [vmem:[%s3 + $0x238] sm:$0xf] %v2590
    %2983 = vst [vmem:[%s3 + $0x23c] sm:$0xf] %v2591
    %2984 = vst [vmem:[%s3 + $0x240] sm:$0xf] %v2592
    %2985 = vst [vmem:[%s3 + $0x244] sm:$0xf] %v2593
    %2986 = vst [vmem:[%s3 + $0x248] sm:$0xf] %v2594
    %2987 = vst [vmem:[%s3 + $0x24c] sm:$0xf] %v2595
    %2988 = vst [vmem:[%s3 + $0x250] sm:$0xf] %v2596
    %2989 = vst [vmem:[%s3 + $0x254] sm:$0xf] %v2597
    %2990 = vst [vmem:[%s3 + $0x258] sm:$0xf] %v2598
    %2991 = vst [vmem:[%s3 + $0x25c] sm:$0xf] %v2599
    %2992 = vst [vmem:[%s3 + $0x260] sm:$0xf] %v2600
    %2993 = vst [vmem:[%s3 + $0x264] sm:$0xf] %v2601
    %2994 = vst [vmem:[%s3 + $0x268] sm:$0xf] %v2602
    %2995 = vst [vmem:[%s3 + $0x26c] sm:$0xf] %v2603
    %2996 = vst [vmem:[%s3 + $0x270] sm:$0xf] %v2604
    %2997 = vst [vmem:[%s3 + $0x274] sm:$0xf] %v2605
    %2998 = vst [vmem:[%s3 + $0x278] sm:$0xf] %v2606
    %2999 = vst [vmem:[%s3 + $0x27c] sm:$0xf] %v2607
    %3000 = vst [vmem:[%s3 + $0x280] sm:$0xf] %v2608
    %3001 = vst [vmem:[%s3 + $0x284] sm:$0xf] %v2609
    %3002 = vst [vmem:[%s3 + $0x288] sm:$0xf] %v2610
    %3003 = vst [vmem:[%s3 + $0x28c] sm:$0xf] %v2611
    %3004 = vst [vmem:[%s3 + $0x290] sm:$0xf] %v2612
    %3005 = vst [vmem:[%s3 + $0x294] sm:$0xf] %v2613
    %3006 = vst [vmem:[%s3 + $0x298] sm:$0xf] %v2614
    %3007 = vst [vmem:[%s3 + $0x29c] sm:$0xf] %v2615
    %3008 = vst [vmem:[%s3 + $0x2a0] sm:$0xf] %v2616
    %3009 = vst [vmem:[%s3 + $0x2a4] sm:$0xf] %v2617
    %3010 = vst [vmem:[%s3 + $0x2a8] sm:$0xf] %v2618
    %3011 = vst [vmem:[%s3 + $0x2ac] sm:$0xf] %v2619
    %3012 = vst [vmem:[%s3 + $0x2b0] sm:$0xf] %v2620
    %3013 = vst [vmem:[%s3 + $0x2b4] sm:$0xf] %v2621
    %3014 = vst [vmem:[%s3 + $0x2b8] sm:$0xf] %v2622
    %3015 = vst [vmem:[%s3 + $0x2bc] sm:$0xf] %v2623
    %3016 = vst [vmem:[%s3 + $0x2c0] sm:$0xf] %v2624
    %3017 = vst [vmem:[%s3 + $0x2c4] sm:$0xf] %v2625
    %3018 = vst [vmem:[%s3 + $0x2c8] sm:$0xf] %v2626
    %3019 = vst [vmem:[%s3 + $0x2cc] sm:$0xf] %v2627
    %3020 = vst [vmem:[%s3 + $0x2d0] sm:$0xf] %v2628
    %3021 = vst [vmem:[%s3 + $0x2d4] sm:$0xf] %v2629
    %3022 = vst [vmem:[%s3 + $0x2d8] sm:$0xf] %v2630
    %3023 = vst [vmem:[%s3 + $0x2dc] sm:$0xf] %v2631
    %3024 = vst [vmem:[%s3 + $0x2e0] sm:$0xf] %v2632
    %3025 = vst [vmem:[%s3 + $0x2e4] sm:$0xf] %v2633
    %3026 = vst [vmem:[%s3 + $0x2e8] sm:$0xf] %v2634
    %3027 = vst [vmem:[%s3 + $0x2ec] sm:$0xf] %v2635
    %3028 = vst [vmem:[%s3 + $0x2f0] sm:$0xf] %v2636
    %3029 = vst [vmem:[%s3 + $0x2f4] sm:$0xf] %v2637
    %3030 = vst [vmem:[%s3 + $0x2f8] sm:$0xf] %v2638
    %3031 = vst [vmem:[%s3 + $0x2fc] sm:$0xf] %v2639
    %3032 = vst [vmem:[%s3 + $0x300] sm:$0xf] %v2640
    %3033 = vst [vmem:[%s3 + $0x304] sm:$0xf] %v2641
    %3034 = vst [vmem:[%s3 + $0x308] sm:$0xf] %v2642
    %3035 = vst [vmem:[%s3 + $0x30c] sm:$0xf] %v2643
    // Predicated region
    $region22: #{simple_cnn_forward.6} parent=1 // pred_check
      _
    $region23: #{simple_cnn_forward.6} parent=1 // pred_check_branch
      %3037 = sbr.rel (0) target = $region25
    $region24: #{simple_cnn_forward.6} parent=1 // pred_region
      _
    $region25: #{simple_cnn_forward.6} parent=1 // pred_fallthru
      _
    // Predicated region
    $region26: #{simple_cnn_forward.6} parent=1 // pred_check
      _
    $region27: #{simple_cnn_forward.6} parent=1 // pred_check_branch
      %3039 = sbr.rel (0) target = $region29
    $region28: #{simple_cnn_forward.6} parent=1 // pred_region
      _
    $region29: #{simple_cnn_forward.6} parent=1 // pred_fallthru
      _
    %3040 = vsyncpa [#allocation3], 1
    %3041 = vsyncpa [#allocation5], 1

// kernel: simple_cnn_forward.8
$region0: #{simple_cnn_forward.8}
  #allocation0 [shape = 'u32[]', space=smem, size = 0x4, offset = 0x4, fixed_abs, tag = 'smem constant byte address 0x4 - core index']
  #allocation1 [shape = 'u32[144,128]{1,0:T(1,128)}', space=vmem, size = 0x12000, scoped, tag = 'internal scratch']
  %s0 = inlined_call_operand.vmem [shape: bf16[392,288], index: 0, kind: input, shape index: {}]
  %s1 = inlined_call_operand.vmem [shape: bf16[288,128], index: 1, kind: input, shape index: {}]
  %s2 = inlined_call_operand.vmem [shape: f32[1,128], index: 2, kind: input, shape index: {}]
  %s3 = inlined_call_operand.vmem [shape: bf16[392,128], index: 3, kind: output, shape index: {}]
  %s4 = sld [smem:[#allocation0]]
  $region22: #{simple_cnn_forward.8} parent=0
    _
  %s6 = ssub.s32 1, %s4
  %s7 = scalar_select 0, %s6, %s4
  // Predicated region
  $region2: #{simple_cnn_forward.8} parent=0 // pred_check
    _
  $region3: #{simple_cnn_forward.8} parent=0 // pred_check_branch
    %9 = sbr.rel (0) target = $region5
  $region4: #{simple_cnn_forward.8} parent=0 // pred_region
    _
  $region5: #{simple_cnn_forward.8} parent=0 // pred_fallthru
    _
  // Predicated region
  $region6: #{simple_cnn_forward.8} parent=0 // pred_check
    _
  $region7: #{simple_cnn_forward.8} parent=0 // pred_check_branch
    %11 = sbr.rel (0) target = $region9
  $region8: #{simple_cnn_forward.8} parent=0 // pred_region
    _
  $region9: #{simple_cnn_forward.8} parent=0 // pred_fallthru
    _
  // Predicated region
  $region10: #{simple_cnn_forward.8} parent=0 // pred_check
    _
  $region11: #{simple_cnn_forward.8} parent=0 // pred_check_branch
    %13 = sbr.rel (0) target = $region13
  $region12: #{simple_cnn_forward.8} parent=0 // pred_region
    _
  $region13: #{simple_cnn_forward.8} parent=0 // pred_fallthru
    _
  %v15 = vld [vmem:[%s0] sm:$0xff]
  %v16 = vld [vmem:[%s0 + $0x8] sm:$0xf]
  %v17 = vld [vmem:[%s0 + $0xc] sm:$0xff]
  %v18 = vld [vmem:[%s0 + $0x14] sm:$0xf]
  %v19 = vld [vmem:[%s0 + $0x18] sm:$0xff]
  %v20 = vld [vmem:[%s0 + $0x20] sm:$0xf]
  %v21 = vld [vmem:[%s0 + $0x24] sm:$0xff]
  %v22 = vld [vmem:[%s0 + $0x2c] sm:$0xf]
  %v23 = vld [vmem:[%s0 + $0x30] sm:$0xff]
  %v24 = vld [vmem:[%s0 + $0x38] sm:$0xf]
  %v25 = vld [vmem:[%s0 + $0x3c] sm:$0xff]
  %v26 = vld [vmem:[%s0 + $0x44] sm:$0xf]
  %v27 = vld [vmem:[%s0 + $0x48] sm:$0xff]
  %v28 = vld [vmem:[%s0 + $0x50] sm:$0xf]
  %v29 = vld [vmem:[%s0 + $0x54] sm:$0xff]
  %v30 = vld [vmem:[%s0 + $0x5c] sm:$0xf]
  %v31 = vld [vmem:[%s0 + $0x60] sm:$0xff]
  %v32 = vld [vmem:[%s0 + $0x68] sm:$0xf]
  %v33 = vld [vmem:[%s0 + $0x6c] sm:$0xff]
  %v34 = vld [vmem:[%s0 + $0x74] sm:$0xf]
  %v35 = vld [vmem:[%s0 + $0x78] sm:$0xff]
  %v36 = vld [vmem:[%s0 + $0x80] sm:$0xf]
  %v37 = vld [vmem:[%s0 + $0x84] sm:$0xff]
  %v38 = vld [vmem:[%s0 + $0x8c] sm:$0xf]
  %v39 = vld [vmem:[%s0 + $0x90] sm:$0xff]
  %v40 = vld [vmem:[%s0 + $0x98] sm:$0xf]
  %v41 = vld [vmem:[%s0 + $0x9c] sm:$0xff]
  %v42 = vld [vmem:[%s0 + $0xa4] sm:$0xf]
  %v43 = vld [vmem:[%s0 + $0xa8] sm:$0xff]
  %v44 = vld [vmem:[%s0 + $0xb0] sm:$0xf]
  %v45 = vld [vmem:[%s0 + $0xb4] sm:$0xff]
  %v46 = vld [vmem:[%s0 + $0xbc] sm:$0xf]
  %v47 = vld [vmem:[%s0 + $0xc0] sm:$0xff]
  %v48 = vld [vmem:[%s0 + $0xc8] sm:$0xf]
  %v49 = vld [vmem:[%s0 + $0xcc] sm:$0xff]
  %v50 = vld [vmem:[%s0 + $0xd4] sm:$0xf]
  %v51 = vld [vmem:[%s0 + $0xd8] sm:$0xff]
  %v52 = vld [vmem:[%s0 + $0xe0] sm:$0xf]
  %v53 = vld [vmem:[%s0 + $0xe4] sm:$0xff]
  %v54 = vld [vmem:[%s0 + $0xec] sm:$0xf]
  %v55 = vld [vmem:[%s0 + $0xf0] sm:$0xff]
  %v56 = vld [vmem:[%s0 + $0xf8] sm:$0xf]
  %v57 = vld [vmem:[%s0 + $0xfc] sm:$0xff]
  %v58 = vld [vmem:[%s0 + $0x104] sm:$0xf]
  %v59 = vld [vmem:[%s0 + $0x108] sm:$0xff]
  %v60 = vld [vmem:[%s0 + $0x110] sm:$0xf]
  %v61 = vld [vmem:[%s0 + $0x114] sm:$0xff]
  %v62 = vld [vmem:[%s0 + $0x11c] sm:$0xf]
  %v63 = vld [vmem:[%s0 + $0x120] sm:$0xff]
  %v64 = vld [vmem:[%s0 + $0x128] sm:$0xf]
  %v65 = vld [vmem:[%s0 + $0x12c] sm:$0xff]
  %v66 = vld [vmem:[%s0 + $0x134] sm:$0xf]
  %v67 = vld [vmem:[%s0 + $0x138] sm:$0xff]
  %v68 = vld [vmem:[%s0 + $0x140] sm:$0xf]
  %v69 = vld [vmem:[%s0 + $0x144] sm:$0xff]
  %v70 = vld [vmem:[%s0 + $0x14c] sm:$0xf]
  %v71 = vld [vmem:[%s0 + $0x150] sm:$0xff]
  %v72 = vld [vmem:[%s0 + $0x158] sm:$0xf]
  %v73 = vld [vmem:[%s0 + $0x15c] sm:$0xff]
  %v74 = vld [vmem:[%s0 + $0x164] sm:$0xf]
  %v75 = vld [vmem:[%s0 + $0x168] sm:$0xff]
  %v76 = vld [vmem:[%s0 + $0x170] sm:$0xf]
  %v77 = vld [vmem:[%s0 + $0x174] sm:$0xff]
  %v78 = vld [vmem:[%s0 + $0x17c] sm:$0xf]
  %v79 = vld [vmem:[%s0 + $0x180] sm:$0xff]
  %v80 = vld [vmem:[%s0 + $0x188] sm:$0xf]
  %v81 = vld [vmem:[%s0 + $0x18c] sm:$0xff]
  %v82 = vld [vmem:[%s0 + $0x194] sm:$0xf]
  %v83 = vld [vmem:[%s0 + $0x198] sm:$0xff]
  %v84 = vld [vmem:[%s0 + $0x1a0] sm:$0xf]
  %v85 = vld [vmem:[%s0 + $0x1a4] sm:$0xff]
  %v86 = vld [vmem:[%s0 + $0x1ac] sm:$0xf]
  %v87 = vld [vmem:[%s0 + $0x1b0] sm:$0xff]
  %v88 = vld [vmem:[%s0 + $0x1b8] sm:$0xf]
  %v89 = vld [vmem:[%s0 + $0x1bc] sm:$0xff]
  %v90 = vld [vmem:[%s0 + $0x1c4] sm:$0xf]
  %v91 = vld [vmem:[%s0 + $0x1c8] sm:$0xff]
  %v92 = vld [vmem:[%s0 + $0x1d0] sm:$0xf]
  %v93 = vld [vmem:[%s0 + $0x1d4] sm:$0xff]
  %v94 = vld [vmem:[%s0 + $0x1dc] sm:$0xf]
  %v95 = vld [vmem:[%s0 + $0x1e0] sm:$0xff]
  %v96 = vld [vmem:[%s0 + $0x1e8] sm:$0xf]
  %v97 = vld [vmem:[%s0 + $0x1ec] sm:$0xff]
  %v98 = vld [vmem:[%s0 + $0x1f4] sm:$0xf]
  %v99 = vld [vmem:[%s0 + $0x1f8] sm:$0xff]
  %v100 = vld [vmem:[%s0 + $0x200] sm:$0xf]
  %v101 = vld [vmem:[%s0 + $0x204] sm:$0xff]
  %v102 = vld [vmem:[%s0 + $0x20c] sm:$0xf]
  %v103 = vld [vmem:[%s0 + $0x210] sm:$0xff]
  %v104 = vld [vmem:[%s0 + $0x218] sm:$0xf]
  %v105 = vld [vmem:[%s0 + $0x21c] sm:$0xff]
  %v106 = vld [vmem:[%s0 + $0x224] sm:$0xf]
  %v107 = vld [vmem:[%s0 + $0x228] sm:$0xff]
  %v108 = vld [vmem:[%s0 + $0x230] sm:$0xf]
  %v109 = vld [vmem:[%s0 + $0x234] sm:$0xff]
  %v110 = vld [vmem:[%s0 + $0x23c] sm:$0xf]
  %v111 = vld [vmem:[%s0 + $0x240] sm:$0xff]
  %v112 = vld [vmem:[%s0 + $0x248] sm:$0xf]
  %v113 = vld [vmem:[%s1] sm:$0xf]
  %v114 = vld [vmem:[%s1 + $0x4] sm:$0xf]
  %v115 = vld [vmem:[%s1 + $0x8] sm:$0xf]
  %v116 = vld [vmem:[%s1 + $0xc] sm:$0xf]
  %v117 = vld [vmem:[%s1 + $0x10] sm:$0xf]
  %v118 = vld [vmem:[%s1 + $0x14] sm:$0xf]
  %v119 = vld [vmem:[%s1 + $0x18] sm:$0xf]
  %v120 = vld [vmem:[%s1 + $0x1c] sm:$0xf]
  %v121 = vld [vmem:[%s1 + $0x20] sm:$0xf]
  %v122 = vld [vmem:[%s1 + $0x24] sm:$0xf]
  %v123 = vld [vmem:[%s1 + $0x28] sm:$0xf]
  %v124 = vld [vmem:[%s1 + $0x2c] sm:$0xf]
  %v125 = vld [vmem:[%s1 + $0x30] sm:$0xf]
  %v126 = vld [vmem:[%s1 + $0x34] sm:$0xf]
  %v127 = vld [vmem:[%s1 + $0x38] sm:$0xf]
  %v128 = vld [vmem:[%s1 + $0x3c] sm:$0xf]
  %v129 = vld [vmem:[%s1 + $0x40] sm:$0xf]
  %v130 = vld [vmem:[%s1 + $0x44] sm:$0xf]
  %v131 = vld [vmem:[%s1 + $0x48] sm:$0xf]
  %v132 = vld [vmem:[%s1 + $0x4c] sm:$0xf]
  %v133 = vld [vmem:[%s1 + $0x50] sm:$0xf]
  %v134 = vld [vmem:[%s1 + $0x54] sm:$0xf]
  %v135 = vld [vmem:[%s1 + $0x58] sm:$0xf]
  %v136 = vld [vmem:[%s1 + $0x5c] sm:$0xf]
  %v137 = vld [vmem:[%s1 + $0x60] sm:$0xf]
  %v138 = vld [vmem:[%s1 + $0x64] sm:$0xf]
  %v139 = vld [vmem:[%s1 + $0x68] sm:$0xf]
  %v140 = vld [vmem:[%s1 + $0x6c] sm:$0xf]
  %v141 = vld [vmem:[%s1 + $0x70] sm:$0xf]
  %v142 = vld [vmem:[%s1 + $0x74] sm:$0xf]
  %v143 = vld [vmem:[%s1 + $0x78] sm:$0xf]
  %v144 = vld [vmem:[%s1 + $0x7c] sm:$0xf]
  %v145 = vld [vmem:[%s1 + $0x80] sm:$0xf]
  %v146 = vld [vmem:[%s1 + $0x84] sm:$0xf]
  %v147 = vld [vmem:[%s1 + $0x88] sm:$0xf]
  %v148 = vld [vmem:[%s1 + $0x8c] sm:$0xf]
  %v149 = vld [vmem:[%s2] sm:$0x1]
  %v151 = vlaneseq
  %v152 = vshrl.u32 %v151, 7
  %v153 = vsub.s32 0, %v152
  %v154 = vrot.slane %v149, %v153
  %v254 = vunpack.c.l.b16 %v15
  %v255 = vunpack.c.h.b16 %v15
  %v256 = vunpack.c.l.b16 %v16
  %v257 = vunpack.c.l.b16 %v17
  %v258 = vunpack.c.h.b16 %v17
  %v259 = vunpack.c.l.b16 %v18
  %v260 = vunpack.c.l.b16 %v19
  %v261 = vunpack.c.h.b16 %v19
  %v262 = vunpack.c.l.b16 %v20
  %v263 = vunpack.c.l.b16 %v21
  %v264 = vunpack.c.h.b16 %v21
  %v265 = vunpack.c.l.b16 %v22
  %v266 = vunpack.c.l.b16 %v23
  %v267 = vunpack.c.h.b16 %v23
  %v268 = vunpack.c.l.b16 %v24
  %v269 = vunpack.c.l.b16 %v25
  %v270 = vunpack.c.h.b16 %v25
  %v271 = vunpack.c.l.b16 %v26
  %v272 = vunpack.c.l.b16 %v27
  %v273 = vunpack.c.h.b16 %v27
  %v274 = vunpack.c.l.b16 %v28
  %v275 = vunpack.c.l.b16 %v29
  %v276 = vunpack.c.h.b16 %v29
  %v277 = vunpack.c.l.b16 %v30
  %v278 = vunpack.c.l.b16 %v31
  %v279 = vunpack.c.h.b16 %v31
  %v280 = vunpack.c.l.b16 %v32
  %v281 = vunpack.c.l.b16 %v33
  %v282 = vunpack.c.h.b16 %v33
  %v283 = vunpack.c.l.b16 %v34
  %v284 = vunpack.c.l.b16 %v35
  %v285 = vunpack.c.h.b16 %v35
  %v286 = vunpack.c.l.b16 %v36
  %v287 = vunpack.c.l.b16 %v37
  %v288 = vunpack.c.h.b16 %v37
  %v289 = vunpack.c.l.b16 %v38
  %v290 = vunpack.c.l.b16 %v39
  %v291 = vunpack.c.h.b16 %v39
  %v292 = vunpack.c.l.b16 %v40
  %v293 = vunpack.c.l.b16 %v41
  %v294 = vunpack.c.h.b16 %v41
  %v295 = vunpack.c.l.b16 %v42
  %v296 = vunpack.c.l.b16 %v43
  %v297 = vunpack.c.h.b16 %v43
  %v298 = vunpack.c.l.b16 %v44
  %v299 = vunpack.c.l.b16 %v45
  %v300 = vunpack.c.h.b16 %v45
  %v301 = vunpack.c.l.b16 %v46
  %v302 = vunpack.c.l.b16 %v47
  %v303 = vunpack.c.h.b16 %v47
  %v304 = vunpack.c.l.b16 %v48
  %v305 = vunpack.c.l.b16 %v49
  %v306 = vunpack.c.h.b16 %v49
  %v307 = vunpack.c.l.b16 %v50
  %v308 = vunpack.c.l.b16 %v51
  %v309 = vunpack.c.h.b16 %v51
  %v310 = vunpack.c.l.b16 %v52
  %v311 = vunpack.c.l.b16 %v53
  %v312 = vunpack.c.h.b16 %v53
  %v313 = vunpack.c.l.b16 %v54
  %v314 = vunpack.c.l.b16 %v55
  %v315 = vunpack.c.h.b16 %v55
  %v316 = vunpack.c.l.b16 %v56
  %v317 = vunpack.c.l.b16 %v57
  %v318 = vunpack.c.h.b16 %v57
  %v319 = vunpack.c.l.b16 %v58
  %v320 = vunpack.c.l.b16 %v59
  %v321 = vunpack.c.h.b16 %v59
  %v322 = vunpack.c.l.b16 %v60
  %v323 = vunpack.c.l.b16 %v61
  %v324 = vunpack.c.h.b16 %v61
  %v325 = vunpack.c.l.b16 %v62
  %v326 = vunpack.c.l.b16 %v63
  %v327 = vunpack.c.h.b16 %v63
  %v328 = vunpack.c.l.b16 %v64
  %v329 = vunpack.c.l.b16 %v65
  %v330 = vunpack.c.h.b16 %v65
  %v331 = vunpack.c.l.b16 %v66
  %v332 = vunpack.c.l.b16 %v67
  %v333 = vunpack.c.h.b16 %v67
  %v334 = vunpack.c.l.b16 %v68
  %v335 = vunpack.c.l.b16 %v69
  %v336 = vunpack.c.h.b16 %v69
  %v337 = vunpack.c.l.b16 %v70
  %v338 = vunpack.c.l.b16 %v71
  %v339 = vunpack.c.h.b16 %v71
  %v340 = vunpack.c.l.b16 %v72
  %v341 = vunpack.c.l.b16 %v73
  %v342 = vunpack.c.h.b16 %v73
  %v343 = vunpack.c.l.b16 %v74
  %v344 = vunpack.c.l.b16 %v75
  %v345 = vunpack.c.h.b16 %v75
  %v346 = vunpack.c.l.b16 %v76
  %v347 = vunpack.c.l.b16 %v77
  %v348 = vunpack.c.h.b16 %v77
  %v349 = vunpack.c.l.b16 %v78
  %v350 = vunpack.c.l.b16 %v79
  %v351 = vunpack.c.h.b16 %v79
  %v352 = vunpack.c.l.b16 %v80
  %v353 = vunpack.c.l.b16 %v81
  %v354 = vunpack.c.h.b16 %v81
  %v355 = vunpack.c.l.b16 %v82
  %v356 = vunpack.c.l.b16 %v83
  %v357 = vunpack.c.h.b16 %v83
  %v358 = vunpack.c.l.b16 %v84
  %v359 = vunpack.c.l.b16 %v85
  %v360 = vunpack.c.h.b16 %v85
  %v361 = vunpack.c.l.b16 %v86
  %v362 = vunpack.c.l.b16 %v87
  %v363 = vunpack.c.h.b16 %v87
  %v364 = vunpack.c.l.b16 %v88
  %v365 = vunpack.c.l.b16 %v89
  %v366 = vunpack.c.h.b16 %v89
  %v367 = vunpack.c.l.b16 %v90
  %v368 = vunpack.c.l.b16 %v91
  %v369 = vunpack.c.h.b16 %v91
  %v370 = vunpack.c.l.b16 %v92
  %v371 = vunpack.c.l.b16 %v93
  %v372 = vunpack.c.h.b16 %v93
  %v373 = vunpack.c.l.b16 %v94
  %v374 = vunpack.c.l.b16 %v95
  %v375 = vunpack.c.h.b16 %v95
  %v376 = vunpack.c.l.b16 %v96
  %v377 = vunpack.c.l.b16 %v97
  %v378 = vunpack.c.h.b16 %v97
  %v379 = vunpack.c.l.b16 %v98
  %v380 = vunpack.c.l.b16 %v99
  %v381 = vunpack.c.h.b16 %v99
  %v382 = vunpack.c.l.b16 %v100
  %v383 = vunpack.c.l.b16 %v101
  %v384 = vunpack.c.h.b16 %v101
  %v385 = vunpack.c.l.b16 %v102
  %v386 = vunpack.c.l.b16 %v103
  %v387 = vunpack.c.h.b16 %v103
  %v388 = vunpack.c.l.b16 %v104
  %v389 = vunpack.c.l.b16 %v105
  %v390 = vunpack.c.h.b16 %v105
  %v391 = vunpack.c.l.b16 %v106
  %v392 = vunpack.c.l.b16 %v107
  %v393 = vunpack.c.h.b16 %v107
  %v394 = vunpack.c.l.b16 %v108
  %v395 = vunpack.c.l.b16 %v109
  %v396 = vunpack.c.h.b16 %v109
  %v397 = vunpack.c.l.b16 %v110
  %v398 = vunpack.c.l.b16 %v111
  %v399 = vunpack.c.h.b16 %v111
  %v400 = vunpack.c.l.b16 %v112
  %v401 = vpack.c.b16 %v257, %v254
  %v402 = vpack.c.b16 %v258, %v255
  %v403 = vpack.c.b16 %v259, %v256
  %v404 = vpack.c.b16 %v263, %v260
  %v405 = vpack.c.b16 %v264, %v261
  %v406 = vpack.c.b16 %v265, %v262
  %v407 = vpack.c.b16 %v269, %v266
  %v408 = vpack.c.b16 %v270, %v267
  %v409 = vpack.c.b16 %v271, %v268
  %v410 = vpack.c.b16 %v275, %v272
  %v411 = vpack.c.b16 %v276, %v273
  %v412 = vpack.c.b16 %v277, %v274
  %v413 = vpack.c.b16 %v281, %v278
  %v414 = vpack.c.b16 %v282, %v279
  %v415 = vpack.c.b16 %v283, %v280
  %v416 = vpack.c.b16 %v287, %v284
  %v417 = vpack.c.b16 %v288, %v285
  %v418 = vpack.c.b16 %v289, %v286
  %v419 = vpack.c.b16 %v293, %v290
  %v420 = vpack.c.b16 %v294, %v291
  %v421 = vpack.c.b16 %v295, %v292
  %v422 = vpack.c.b16 %v299, %v296
  %v423 = vpack.c.b16 %v300, %v297
  %v424 = vpack.c.b16 %v301, %v298
  %v425 = vpack.c.b16 %v305, %v302
  %v426 = vpack.c.b16 %v306, %v303
  %v427 = vpack.c.b16 %v307, %v304
  %v428 = vpack.c.b16 %v311, %v308
  %v429 = vpack.c.b16 %v312, %v309
  %v430 = vpack.c.b16 %v313, %v310
  %v431 = vpack.c.b16 %v317, %v314
  %v432 = vpack.c.b16 %v318, %v315
  %v433 = vpack.c.b16 %v319, %v316
  %v434 = vpack.c.b16 %v323, %v320
  %v435 = vpack.c.b16 %v324, %v321
  %v436 = vpack.c.b16 %v325, %v322
  %v437 = vpack.c.b16 %v329, %v326
  %v438 = vpack.c.b16 %v330, %v327
  %v439 = vpack.c.b16 %v331, %v328
  %v440 = vpack.c.b16 %v335, %v332
  %v441 = vpack.c.b16 %v336, %v333
  %v442 = vpack.c.b16 %v337, %v334
  %v443 = vpack.c.b16 %v341, %v338
  %v444 = vpack.c.b16 %v342, %v339
  %v445 = vpack.c.b16 %v343, %v340
  %v446 = vpack.c.b16 %v347, %v344
  %v447 = vpack.c.b16 %v348, %v345
  %v448 = vpack.c.b16 %v349, %v346
  %v449 = vpack.c.b16 %v353, %v350
  %v450 = vpack.c.b16 %v354, %v351
  %v451 = vpack.c.b16 %v355, %v352
  %v452 = vpack.c.b16 %v359, %v356
  %v453 = vpack.c.b16 %v360, %v357
  %v454 = vpack.c.b16 %v361, %v358
  %v455 = vpack.c.b16 %v365, %v362
  %v456 = vpack.c.b16 %v366, %v363
  %v457 = vpack.c.b16 %v367, %v364
  %v458 = vpack.c.b16 %v371, %v368
  %v459 = vpack.c.b16 %v372, %v369
  %v460 = vpack.c.b16 %v373, %v370
  %v461 = vpack.c.b16 %v377, %v374
  %v462 = vpack.c.b16 %v378, %v375
  %v463 = vpack.c.b16 %v379, %v376
  %v464 = vpack.c.b16 %v383, %v380
  %v465 = vpack.c.b16 %v384, %v381
  %v466 = vpack.c.b16 %v385, %v382
  %v467 = vpack.c.b16 %v389, %v386
  %v468 = vpack.c.b16 %v390, %v387
  %v469 = vpack.c.b16 %v391, %v388
  %v470 = vpack.c.b16 %v395, %v392
  %v471 = vpack.c.b16 %v396, %v393
  %v472 = vpack.c.b16 %v397, %v394
  %v473 = vpack.c.b16 %v398, %v398
  %v474 = vpack.c.b16 %v399, %v399
  %v475 = vpack.c.b16 %v400, %v400
  %v562 = vunpack.c.l.b16 %v113
  %v563 = vunpack.c.l.b16 %v114
  %v564 = vunpack.c.l.b16 %v115
  %v565 = vunpack.c.l.b16 %v116
  %v566 = vunpack.c.l.b16 %v117
  %v567 = vunpack.c.l.b16 %v118
  %v568 = vunpack.c.l.b16 %v119
  %v569 = vunpack.c.l.b16 %v120
  %v570 = vunpack.c.l.b16 %v121
  %v571 = vunpack.c.l.b16 %v122
  %v572 = vunpack.c.l.b16 %v123
  %v573 = vunpack.c.l.b16 %v124
  %v574 = vunpack.c.l.b16 %v125
  %v575 = vunpack.c.l.b16 %v126
  %v576 = vunpack.c.l.b16 %v127
  %v577 = vunpack.c.l.b16 %v128
  %v578 = vunpack.c.l.b16 %v129
  %v579 = vunpack.c.l.b16 %v130
  %v580 = vunpack.c.l.b16 %v131
  %v581 = vunpack.c.l.b16 %v132
  %v582 = vunpack.c.l.b16 %v133
  %v583 = vunpack.c.l.b16 %v134
  %v584 = vunpack.c.l.b16 %v135
  %v585 = vunpack.c.l.b16 %v136
  %v586 = vunpack.c.l.b16 %v137
  %v587 = vunpack.c.l.b16 %v138
  %v588 = vunpack.c.l.b16 %v139
  %v589 = vunpack.c.l.b16 %v140
  %v590 = vunpack.c.l.b16 %v141
  %v591 = vunpack.c.l.b16 %v142
  %v592 = vunpack.c.l.b16 %v143
  %v593 = vunpack.c.l.b16 %v144
  %v594 = vunpack.c.l.b16 %v145
  %v595 = vunpack.c.l.b16 %v146
  %v596 = vunpack.c.l.b16 %v147
  %v597 = vunpack.c.l.b16 %v148
  %v598 = vpack.c.b16 %v563, %v562
  %v599 = vpack.c.b16 %v565, %v564
  %v600 = vpack.c.b16 %v567, %v566
  %v601 = vpack.c.b16 %v569, %v568
  %v602 = vpack.c.b16 %v571, %v570
  %v603 = vpack.c.b16 %v573, %v572
  %v604 = vpack.c.b16 %v575, %v574
  %v605 = vpack.c.b16 %v577, %v576
  %v606 = vpack.c.b16 %v579, %v578
  %v607 = vpack.c.b16 %v581, %v580
  %v608 = vpack.c.b16 %v583, %v582
  %v609 = vpack.c.b16 %v585, %v584
  %v610 = vpack.c.b16 %v587, %v586
  %v611 = vpack.c.b16 %v589, %v588
  %v612 = vpack.c.b16 %v591, %v590
  %v613 = vpack.c.b16 %v593, %v592
  %v614 = vpack.c.b16 %v595, %v594
  %v615 = vpack.c.b16 %v597, %v596
  %vm634 = vcmask 261120
  %v636 = vsel %vm634, %v403, 0
  %v639 = vsel %vm634, %v406, 0
  %v642 = vsel %vm634, %v409, 0
  %v645 = vsel %vm634, %v412, 0
  %v648 = vsel %vm634, %v415, 0
  %v651 = vsel %vm634, %v418, 0
  %v654 = vsel %vm634, %v421, 0
  %v657 = vsel %vm634, %v424, 0
  %v660 = vsel %vm634, %v427, 0
  %v663 = vsel %vm634, %v430, 0
  %v666 = vsel %vm634, %v433, 0
  %v669 = vsel %vm634, %v436, 0
  %v672 = vsel %vm634, %v439, 0
  %v675 = vsel %vm634, %v442, 0
  %v678 = vsel %vm634, %v445, 0
  %v681 = vsel %vm634, %v448, 0
  %v684 = vsel %vm634, %v451, 0
  %v687 = vsel %vm634, %v454, 0
  %v690 = vsel %vm634, %v457, 0
  %v693 = vsel %vm634, %v460, 0
  %v696 = vsel %vm634, %v463, 0
  %v699 = vsel %vm634, %v466, 0
  %v702 = vsel %vm634, %v469, 0
  %v705 = vsel %vm634, %v472, 0
  %v708 = vsel %vm634, %v475, 0
  %710 = vmatprep.subr.bf16.mxu0 0
  %711 = vmatpush1.bf16.msra.mxu0 %v598
  %712 = vmatprep.subr.bf16.mxu0 0
  %713 = vmatpush1.bf16.msra.mxu0 %v599
  %714 = vmatprep.subr.bf16.mxu0 0
  %715 = vmatpush1.bf16.msra.mxu0 %v600
  %716 = vmatprep.subr.bf16.mxu0 0
  %717 = vmatpush1.bf16.msra.mxu0 %v601
  %718 = vmatprep.subr.bf16.mxu0 0
  %719 = vmatpush1.bf16.msra.mxu0 %v602
  %720 = vmatprep.subr.bf16.mxu0 0
  %721 = vmatpush1.bf16.msra.mxu0 %v603
  %722 = vmatprep.subr.bf16.mxu0 0
  %723 = vmatpush1.bf16.msra.mxu0 %v604
  %724 = vmatprep.subr.bf16.mxu0 0
  %725 = vmatpush1.bf16.msra.mxu0 %v605
  %726 = vmatprep.subr.bf16.mxu0 0
  %727 = vmatpush1.bf16.msra.mxu0 %v606
  %728 = vmatprep.subr.bf16.mxu0 0
  %729 = vmatpush1.bf16.msra.mxu0 %v607
  %730 = vmatprep.subr.bf16.mxu0 0
  %731 = vmatpush1.bf16.msra.mxu0 %v608
  %732 = vmatprep.subr.bf16.mxu0 0
  %733 = vmatpush1.bf16.msra.mxu0 %v609
  %734 = vmatprep.subr.bf16.mxu0 0
  %735 = vmatpush1.bf16.msra.mxu0 %v610
  %736 = vmatprep.subr.bf16.mxu0 0
  %737 = vmatpush1.bf16.msra.mxu0 %v611
  %738 = vmatprep.subr.bf16.mxu0 0
  %739 = vmatpush1.bf16.msra.mxu0 %v612
  %740 = vmatprep.subr.bf16.mxu0 0
  %741 = vmatpush1.bf16.msra.mxu0 %v613
  %742 = vmatprep.mubr.bf16.mxu0 %v402
  %743 = vmatmul.mubr.bf16.gmra.mrb[0].mxu0 %v401
  %v744 = vpop.f32.mrb[0].mxu0
  %v745 = vadd.f32 %v154, %v744
  %v746 = vpop.f32.mrb[0].mxu0
  %v747 = vpop.f32.mrb[0].mxu0
  %v748 = vadd.f32 %v154, %v747
  %v749 = vpop.f32.mrb[0].mxu0
  %750 = vmatprep.mubr.bf16.mxu0 %v405
  %751 = vmatmul.mubr.bf16.gmra.mrb[0].mxu0 %v404
  %v752 = vpop.f32.mrb[0].mxu0
  %v753 = vadd.f32 %v154, %v752
  %v754 = vpop.f32.mrb[0].mxu0
  %v755 = vpop.f32.mrb[0].mxu0
  %v756 = vadd.f32 %v154, %v755
  %v757 = vpop.f32.mrb[0].mxu0
  %758 = vmatprep.mubr.bf16.mxu0 %v408
  %759 = vmatmul.mubr.bf16.gmra.mrb[0].mxu0 %v407
  %v760 = vpop.f32.mrb[0].mxu0
  %v761 = vadd.f32 %v154, %v760
  %v762 = vpop.f32.mrb[0].mxu0
  %v763 = vpop.f32.mrb[0].mxu0
  %v764 = vadd.f32 %v154, %v763
  %v765 = vpop.f32.mrb[0].mxu0
  %766 = vmatprep.mubr.bf16.mxu0 %v411
  %767 = vmatmul.mubr.bf16.gmra.mrb[0].mxu0 %v410
  %v768 = vpop.f32.mrb[0].mxu0
  %v769 = vadd.f32 %v154, %v768
  %v770 = vpop.f32.mrb[0].mxu0
  %v771 = vpop.f32.mrb[0].mxu0
  %v772 = vadd.f32 %v154, %v771
  %v773 = vpop.f32.mrb[0].mxu0
  %774 = vmatprep.mubr.bf16.mxu0 %v414
  %775 = vmatmul.mubr.bf16.gmra.mrb[0].mxu0 %v413
  %v776 = vpop.f32.mrb[0].mxu0
  %v777 = vadd.f32 %v154, %v776
  %v778 = vpop.f32.mrb[0].mxu0
  %v779 = vpop.f32.mrb[0].mxu0
  %v780 = vadd.f32 %v154, %v779
  %v781 = vpop.f32.mrb[0].mxu0
  %782 = vmatprep.mubr.bf16.mxu0 %v417
  %783 = vmatmul.mubr.bf16.gmra.mrb[0].mxu0 %v416
  %v784 = vpop.f32.mrb[0].mxu0
  %v785 = vadd.f32 %v154, %v784
  %v786 = vpop.f32.mrb[0].mxu0
  %v787 = vpop.f32.mrb[0].mxu0
  %v788 = vadd.f32 %v154, %v787
  %v789 = vpop.f32.mrb[0].mxu0
  %790 = vmatprep.mubr.bf16.mxu0 %v420
  %791 = vmatmul.mubr.bf16.gmra.mrb[0].mxu0 %v419
  %v792 = vpop.f32.mrb[0].mxu0
  %v793 = vadd.f32 %v154, %v792
  %v794 = vpop.f32.mrb[0].mxu0
  %v795 = vpop.f32.mrb[0].mxu0
  %v796 = vadd.f32 %v154, %v795
  %v797 = vpop.f32.mrb[0].mxu0
  %798 = vmatprep.mubr.bf16.mxu0 %v423
  %799 = vmatmul.mubr.bf16.gmra.mrb[0].mxu0 %v422
  %v800 = vpop.f32.mrb[0].mxu0
  %v801 = vadd.f32 %v154, %v800
  %v802 = vpop.f32.mrb[0].mxu0
  %v803 = vpop.f32.mrb[0].mxu0
  %v804 = vadd.f32 %v154, %v803
  %v805 = vpop.f32.mrb[0].mxu0
  %806 = vmatprep.mubr.bf16.mxu0 %v426
  %807 = vmatmul.mubr.bf16.gmra.mrb[0].mxu0 %v425
  %v808 = vpop.f32.mrb[0].mxu0
  %v809 = vadd.f32 %v154, %v808
  %v810 = vpop.f32.mrb[0].mxu0
  %v811 = vpop.f32.mrb[0].mxu0
  %v812 = vadd.f32 %v154, %v811
  %v813 = vpop.f32.mrb[0].mxu0
  %814 = vmatprep.mubr.bf16.mxu0 %v429
  %815 = vmatmul.mubr.bf16.gmra.mrb[0].mxu0 %v428
  %v816 = vpop.f32.mrb[0].mxu0
  %v817 = vadd.f32 %v154, %v816
  %v818 = vpop.f32.mrb[0].mxu0
  %v819 = vpop.f32.mrb[0].mxu0
  %v820 = vadd.f32 %v154, %v819
  %v821 = vpop.f32.mrb[0].mxu0
  %822 = vmatprep.mubr.bf16.mxu0 %v432
  %823 = vmatmul.mubr.bf16.gmra.mrb[0].mxu0 %v431
  %v824 = vpop.f32.mrb[0].mxu0
  %v825 = vadd.f32 %v154, %v824
  %v826 = vpop.f32.mrb[0].mxu0
  %v827 = vpop.f32.mrb[0].mxu0
  %v828 = vadd.f32 %v154, %v827
  %v829 = vpop.f32.mrb[0].mxu0
  %830 = vmatprep.mubr.bf16.mxu0 %v435
  %831 = vmatmul.mubr.bf16.gmra.mrb[0].mxu0 %v434
  %v832 = vpop.f32.mrb[0].mxu0
  %v833 = vadd.f32 %v154, %v832
  %v834 = vpop.f32.mrb[0].mxu0
  %v835 = vpop.f32.mrb[0].mxu0
  %v836 = vadd.f32 %v154, %v835
  %v837 = vpop.f32.mrb[0].mxu0
  %838 = vmatprep.mubr.bf16.mxu0 %v438
  %839 = vmatmul.mubr.bf16.gmra.mrb[0].mxu0 %v437
  %v840 = vpop.f32.mrb[0].mxu0
  %v841 = vadd.f32 %v154, %v840
  %v842 = vpop.f32.mrb[0].mxu0
  %v843 = vpop.f32.mrb[0].mxu0
  %v844 = vadd.f32 %v154, %v843
  %v845 = vpop.f32.mrb[0].mxu0
  %846 = vmatprep.mubr.bf16.mxu0 %v441
  %847 = vmatmul.mubr.bf16.gmra.mrb[0].mxu0 %v440
  %v848 = vpop.f32.mrb[0].mxu0
  %v849 = vadd.f32 %v154, %v848
  %v850 = vpop.f32.mrb[0].mxu0
  %v851 = vpop.f32.mrb[0].mxu0
  %v852 = vadd.f32 %v154, %v851
  %v853 = vpop.f32.mrb[0].mxu0
  %854 = vmatprep.mubr.bf16.mxu0 %v444
  %855 = vmatmul.mubr.bf16.gmra.mrb[0].mxu0 %v443
  %v856 = vpop.f32.mrb[0].mxu0
  %v857 = vadd.f32 %v154, %v856
  %v858 = vpop.f32.mrb[0].mxu0
  %v859 = vpop.f32.mrb[0].mxu0
  %v860 = vadd.f32 %v154, %v859
  %v861 = vpop.f32.mrb[0].mxu0
  %862 = vmatprep.mubr.bf16.mxu0 %v447
  %863 = vmatmul.mubr.bf16.gmra.mrb[0].mxu0 %v446
  %v864 = vpop.f32.mrb[0].mxu0
  %v865 = vadd.f32 %v154, %v864
  %v866 = vpop.f32.mrb[0].mxu0
  %v867 = vpop.f32.mrb[0].mxu0
  %v868 = vadd.f32 %v154, %v867
  %v869 = vpop.f32.mrb[0].mxu0
  %870 = vmatprep.mubr.bf16.mxu0 %v450
  %871 = vmatmul.mubr.bf16.gmra.mrb[0].mxu0 %v449
  %v872 = vpop.f32.mrb[0].mxu0
  %v873 = vadd.f32 %v154, %v872
  %v874 = vpop.f32.mrb[0].mxu0
  %v875 = vpop.f32.mrb[0].mxu0
  %v876 = vadd.f32 %v154, %v875
  %v877 = vpop.f32.mrb[0].mxu0
  %878 = vmatprep.mubr.bf16.mxu0 %v453
  %879 = vmatmul.mubr.bf16.gmra.mrb[0].mxu0 %v452
  %v880 = vpop.f32.mrb[0].mxu0
  %v881 = vadd.f32 %v154, %v880
  %v882 = vpop.f32.mrb[0].mxu0
  %v883 = vpop.f32.mrb[0].mxu0
  %v884 = vadd.f32 %v154, %v883
  %v885 = vpop.f32.mrb[0].mxu0
  %886 = vmatprep.mubr.bf16.mxu0 %v456
  %887 = vmatmul.mubr.bf16.gmra.mrb[0].mxu0 %v455
  %v888 = vpop.f32.mrb[0].mxu0
  %v889 = vadd.f32 %v154, %v888
  %v890 = vpop.f32.mrb[0].mxu0
  %v891 = vpop.f32.mrb[0].mxu0
  %v892 = vadd.f32 %v154, %v891
  %v893 = vpop.f32.mrb[0].mxu0
  %894 = vmatprep.mubr.bf16.mxu0 %v459
  %895 = vmatmul.mubr.bf16.gmra.mrb[0].mxu0 %v458
  %v896 = vpop.f32.mrb[0].mxu0
  %v897 = vadd.f32 %v154, %v896
  %v898 = vpop.f32.mrb[0].mxu0
  %v899 = vpop.f32.mrb[0].mxu0
  %v900 = vadd.f32 %v154, %v899
  %v901 = vpop.f32.mrb[0].mxu0
  %902 = vmatprep.mubr.bf16.mxu0 %v462
  %903 = vmatmul.mubr.bf16.gmra.mrb[0].mxu0 %v461
  %v904 = vpop.f32.mrb[0].mxu0
  %v905 = vadd.f32 %v154, %v904
  %v906 = vpop.f32.mrb[0].mxu0
  %v907 = vpop.f32.mrb[0].mxu0
  %v908 = vadd.f32 %v154, %v907
  %v909 = vpop.f32.mrb[0].mxu0
  %910 = vmatprep.mubr.bf16.mxu0 %v465
  %911 = vmatmul.mubr.bf16.gmra.mrb[0].mxu0 %v464
  %v912 = vpop.f32.mrb[0].mxu0
  %v913 = vadd.f32 %v154, %v912
  %v914 = vpop.f32.mrb[0].mxu0
  %v915 = vpop.f32.mrb[0].mxu0
  %v916 = vadd.f32 %v154, %v915
  %v917 = vpop.f32.mrb[0].mxu0
  %918 = vmatprep.mubr.bf16.mxu0 %v468
  %919 = vmatmul.mubr.bf16.gmra.mrb[0].mxu0 %v467
  %v920 = vpop.f32.mrb[0].mxu0
  %v921 = vadd.f32 %v154, %v920
  %v922 = vpop.f32.mrb[0].mxu0
  %v923 = vpop.f32.mrb[0].mxu0
  %v924 = vadd.f32 %v154, %v923
  %v925 = vpop.f32.mrb[0].mxu0
  %926 = vmatprep.mubr.bf16.mxu0 %v471
  %927 = vmatmul.mubr.bf16.gmra.mrb[0].mxu0 %v470
  %v928 = vpop.f32.mrb[0].mxu0
  %v929 = vadd.f32 %v154, %v928
  %v930 = vpop.f32.mrb[0].mxu0
  %v931 = vpop.f32.mrb[0].mxu0
  %v932 = vadd.f32 %v154, %v931
  %v933 = vpop.f32.mrb[0].mxu0
  %934 = vmatprep.mubr.bf16.mxu0 %v474
  %935 = vmatmul.mubr.bf16.gmra.mrb[0].mxu0 %v473
  %v936 = vpop.f32.mrb[0].mxu0
  %v937 = vadd.f32 %v154, %v936
  %v938 = vpop.f32.mrb[0].mxu0
  %v939 = vpop.f32.mrb[0].mxu0
  %v940 = vpop.f32.mrb[0].mxu0
  %941 = vdwg.mxu0
  %942 = vmatprep.subr.bf16.mxu0 0
  %943 = vmatpush1.bf16.msra.mxu0 %v614
  %944 = vmatprep.subr.bf16.mxu0 0
  %945 = vmatpush1.bf16.msra.mxu0 %v615
  %946 = vmatprep.subr.bf16.mxu0 0
  %947 = vmatpush1.bf16.msra.mxu0 0
  %948 = vmatprep.subr.bf16.mxu0 0
  %949 = vmatpush1.bf16.msra.mxu0 0
  %950 = vmatprep.subr.bf16.mxu0 0
  %951 = vmatpush1.bf16.msra.mxu0 0
  %952 = vmatprep.subr.bf16.mxu0 0
  %953 = vmatpush1.bf16.msra.mxu0 0
  %954 = vmatprep.subr.bf16.mxu0 0
  %955 = vmatpush1.bf16.msra.mxu0 0
  %956 = vmatprep.subr.bf16.mxu0 0
  %957 = vmatpush1.bf16.msra.mxu0 0
  %958 = vmatprep.subr.bf16.mxu0 0
  %959 = vmatpush1.bf16.msra.mxu0 0
  %960 = vmatprep.subr.bf16.mxu0 0
  %961 = vmatpush1.bf16.msra.mxu0 0
  %962 = vmatprep.subr.bf16.mxu0 0
  %963 = vmatpush1.bf16.msra.mxu0 0
  %964 = vmatprep.subr.bf16.mxu0 0
  %965 = vmatpush1.bf16.msra.mxu0 0
  %966 = vmatprep.subr.bf16.mxu0 0
  %967 = vmatpush1.bf16.msra.mxu0 0
  %968 = vmatprep.subr.bf16.mxu0 0
  %969 = vmatpush1.bf16.msra.mxu0 0
  %970 = vmatprep.subr.bf16.mxu0 0
  %971 = vmatpush1.bf16.msra.mxu0 0
  %972 = vmatprep.subr.bf16.mxu0 0
  %973 = vmatpush1.bf16.msra.mxu0 0
  %974 = vmatprep.mubr.bf16.mxu0 0
  %975 = vmatmul.mubr.bf16.gmra.mrb[0].mxu0 %v636
  %v976 = vpop.f32.mrb[0].mxu0
  %v977 = vadd.f32 %v745, %v976
  %v978 = vpop.f32.mrb[0].mxu0
  %v979 = vpop.f32.mrb[0].mxu0
  %v980 = vadd.f32 %v748, %v979
  %v981 = vpop.f32.mrb[0].mxu0
  %982 = vmatprep.mubr.bf16.mxu0 0
  %983 = vmatmul.mubr.bf16.gmra.mrb[0].mxu0 %v639
  %v984 = vpop.f32.mrb[0].mxu0
  %v985 = vadd.f32 %v753, %v984
  %v986 = vpop.f32.mrb[0].mxu0
  %v987 = vpop.f32.mrb[0].mxu0
  %v988 = vadd.f32 %v756, %v987
  %v989 = vpop.f32.mrb[0].mxu0
  %990 = vmatprep.mubr.bf16.mxu0 0
  %991 = vmatmul.mubr.bf16.gmra.mrb[0].mxu0 %v642
  %v992 = vpop.f32.mrb[0].mxu0
  %v993 = vadd.f32 %v761, %v992
  %v994 = vpop.f32.mrb[0].mxu0
  %v995 = vpop.f32.mrb[0].mxu0
  %v996 = vadd.f32 %v764, %v995
  %v997 = vpop.f32.mrb[0].mxu0
  %998 = vmatprep.mubr.bf16.mxu0 0
  %999 = vmatmul.mubr.bf16.gmra.mrb[0].mxu0 %v645
  %v1000 = vpop.f32.mrb[0].mxu0
  %v1001 = vadd.f32 %v769, %v1000
  %v1002 = vpop.f32.mrb[0].mxu0
  %v1003 = vpop.f32.mrb[0].mxu0
  %v1004 = vadd.f32 %v772, %v1003
  %v1005 = vpop.f32.mrb[0].mxu0
  %1006 = vmatprep.mubr.bf16.mxu0 0
  %1007 = vmatmul.mubr.bf16.gmra.mrb[0].mxu0 %v648
  %v1008 = vpop.f32.mrb[0].mxu0
  %v1009 = vadd.f32 %v777, %v1008
  %v1010 = vpop.f32.mrb[0].mxu0
  %v1011 = vpop.f32.mrb[0].mxu0
  %v1012 = vadd.f32 %v780, %v1011
  %v1013 = vpop.f32.mrb[0].mxu0
  %1014 = vmatprep.mubr.bf16.mxu0 0
  %1015 = vmatmul.mubr.bf16.gmra.mrb[0].mxu0 %v651
  %v1016 = vpop.f32.mrb[0].mxu0
  %v1017 = vadd.f32 %v785, %v1016
  %v1018 = vpop.f32.mrb[0].mxu0
  %v1019 = vpop.f32.mrb[0].mxu0
  %v1020 = vadd.f32 %v788, %v1019
  %v1021 = vpop.f32.mrb[0].mxu0
  %1022 = vmatprep.mubr.bf16.mxu0 0
  %1023 = vmatmul.mubr.bf16.gmra.mrb[0].mxu0 %v654
  %v1024 = vpop.f32.mrb[0].mxu0
  %v1025 = vadd.f32 %v793, %v1024
  %v1026 = vpop.f32.mrb[0].mxu0
  %v1027 = vpop.f32.mrb[0].mxu0
  %v1028 = vadd.f32 %v796, %v1027
  %v1029 = vpop.f32.mrb[0].mxu0
  %1030 = vmatprep.mubr.bf16.mxu0 0
  %1031 = vmatmul.mubr.bf16.gmra.mrb[0].mxu0 %v657
  %v1032 = vpop.f32.mrb[0].mxu0
  %v1033 = vadd.f32 %v801, %v1032
  %v1034 = vpop.f32.mrb[0].mxu0
  %v1035 = vpop.f32.mrb[0].mxu0
  %v1036 = vadd.f32 %v804, %v1035
  %v1037 = vpop.f32.mrb[0].mxu0
  %1038 = vmatprep.mubr.bf16.mxu0 0
  %1039 = vmatmul.mubr.bf16.gmra.mrb[0].mxu0 %v660
  %v1040 = vpop.f32.mrb[0].mxu0
  %v1041 = vadd.f32 %v809, %v1040
  %v1042 = vpop.f32.mrb[0].mxu0
  %v1043 = vpop.f32.mrb[0].mxu0
  %v1044 = vadd.f32 %v812, %v1043
  %v1045 = vpop.f32.mrb[0].mxu0
  %1046 = vmatprep.mubr.bf16.mxu0 0
  %1047 = vmatmul.mubr.bf16.gmra.mrb[0].mxu0 %v663
  %v1048 = vpop.f32.mrb[0].mxu0
  %v1049 = vadd.f32 %v817, %v1048
  %v1050 = vpop.f32.mrb[0].mxu0
  %v1051 = vpop.f32.mrb[0].mxu0
  %v1052 = vadd.f32 %v820, %v1051
  %v1053 = vpop.f32.mrb[0].mxu0
  %1054 = vmatprep.mubr.bf16.mxu0 0
  %1055 = vmatmul.mubr.bf16.gmra.mrb[0].mxu0 %v666
  %v1056 = vpop.f32.mrb[0].mxu0
  %v1057 = vadd.f32 %v825, %v1056
  %v1058 = vpop.f32.mrb[0].mxu0
  %v1059 = vpop.f32.mrb[0].mxu0
  %v1060 = vadd.f32 %v828, %v1059
  %v1061 = vpop.f32.mrb[0].mxu0
  %1062 = vmatprep.mubr.bf16.mxu0 0
  %1063 = vmatmul.mubr.bf16.gmra.mrb[0].mxu0 %v669
  %v1064 = vpop.f32.mrb[0].mxu0
  %v1065 = vadd.f32 %v833, %v1064
  %v1066 = vpop.f32.mrb[0].mxu0
  %v1067 = vpop.f32.mrb[0].mxu0
  %v1068 = vadd.f32 %v836, %v1067
  %v1069 = vpop.f32.mrb[0].mxu0
  %1070 = vmatprep.mubr.bf16.mxu0 0
  %1071 = vmatmul.mubr.bf16.gmra.mrb[0].mxu0 %v672
  %v1072 = vpop.f32.mrb[0].mxu0
  %v1073 = vadd.f32 %v841, %v1072
  %v1074 = vpop.f32.mrb[0].mxu0
  %v1075 = vpop.f32.mrb[0].mxu0
  %v1076 = vadd.f32 %v844, %v1075
  %v1077 = vpop.f32.mrb[0].mxu0
  %1078 = vmatprep.mubr.bf16.mxu0 0
  %1079 = vmatmul.mubr.bf16.gmra.mrb[0].mxu0 %v675
  %v1080 = vpop.f32.mrb[0].mxu0
  %v1081 = vadd.f32 %v849, %v1080
  %v1082 = vpop.f32.mrb[0].mxu0
  %v1083 = vpop.f32.mrb[0].mxu0
  %v1084 = vadd.f32 %v852, %v1083
  %v1085 = vpop.f32.mrb[0].mxu0
  %1086 = vmatprep.mubr.bf16.mxu0 0
  %1087 = vmatmul.mubr.bf16.gmra.mrb[0].mxu0 %v678
  %v1088 = vpop.f32.mrb[0].mxu0
  %v1089 = vadd.f32 %v857, %v1088
  %v1090 = vpop.f32.mrb[0].mxu0
  %v1091 = vpop.f32.mrb[0].mxu0
  %v1092 = vadd.f32 %v860, %v1091
  %v1093 = vpop.f32.mrb[0].mxu0
  %1094 = vmatprep.mubr.bf16.mxu0 0
  %1095 = vmatmul.mubr.bf16.gmra.mrb[0].mxu0 %v681
  %v1096 = vpop.f32.mrb[0].mxu0
  %v1097 = vadd.f32 %v865, %v1096
  %v1098 = vpop.f32.mrb[0].mxu0
  %v1099 = vpop.f32.mrb[0].mxu0
  %v1100 = vadd.f32 %v868, %v1099
  %v1101 = vpop.f32.mrb[0].mxu0
  %1102 = vmatprep.mubr.bf16.mxu0 0
  %1103 = vmatmul.mubr.bf16.gmra.mrb[0].mxu0 %v684
  %v1104 = vpop.f32.mrb[0].mxu0
  %v1105 = vadd.f32 %v873, %v1104
  %v1106 = vpop.f32.mrb[0].mxu0
  %v1107 = vpop.f32.mrb[0].mxu0
  %v1108 = vadd.f32 %v876, %v1107
  %v1109 = vpop.f32.mrb[0].mxu0
  %1110 = vmatprep.mubr.bf16.mxu0 0
  %1111 = vmatmul.mubr.bf16.gmra.mrb[0].mxu0 %v687
  %v1112 = vpop.f32.mrb[0].mxu0
  %v1113 = vadd.f32 %v881, %v1112
  %v1114 = vpop.f32.mrb[0].mxu0
  %v1115 = vpop.f32.mrb[0].mxu0
  %v1116 = vadd.f32 %v884, %v1115
  %v1117 = vpop.f32.mrb[0].mxu0
  %1118 = vmatprep.mubr.bf16.mxu0 0
  %1119 = vmatmul.mubr.bf16.gmra.mrb[0].mxu0 %v690
  %v1120 = vpop.f32.mrb[0].mxu0
  %v1121 = vadd.f32 %v889, %v1120
  %v1122 = vpop.f32.mrb[0].mxu0
  %v1123 = vpop.f32.mrb[0].mxu0
  %v1124 = vadd.f32 %v892, %v1123
  %v1125 = vpop.f32.mrb[0].mxu0
  %1126 = vmatprep.mubr.bf16.mxu0 0
  %1127 = vmatmul.mubr.bf16.gmra.mrb[0].mxu0 %v693
  %v1128 = vpop.f32.mrb[0].mxu0
  %v1129 = vadd.f32 %v897, %v1128
  %v1130 = vpop.f32.mrb[0].mxu0
  %v1131 = vpop.f32.mrb[0].mxu0
  %v1132 = vadd.f32 %v900, %v1131
  %v1133 = vpop.f32.mrb[0].mxu0
  %1134 = vmatprep.mubr.bf16.mxu0 0
  %1135 = vmatmul.mubr.bf16.gmra.mrb[0].mxu0 %v696
  %v1136 = vpop.f32.mrb[0].mxu0
  %v1137 = vadd.f32 %v905, %v1136
  %v1138 = vpop.f32.mrb[0].mxu0
  %v1139 = vpop.f32.mrb[0].mxu0
  %v1140 = vadd.f32 %v908, %v1139
  %v1141 = vpop.f32.mrb[0].mxu0
  %1142 = vmatprep.mubr.bf16.mxu0 0
  %1143 = vmatmul.mubr.bf16.gmra.mrb[0].mxu0 %v699
  %v1144 = vpop.f32.mrb[0].mxu0
  %v1145 = vadd.f32 %v913, %v1144
  %v1146 = vpop.f32.mrb[0].mxu0
  %v1147 = vpop.f32.mrb[0].mxu0
  %v1148 = vadd.f32 %v916, %v1147
  %v1149 = vpop.f32.mrb[0].mxu0
  %1150 = vmatprep.mubr.bf16.mxu0 0
  %1151 = vmatmul.mubr.bf16.gmra.mrb[0].mxu0 %v702
  %v1152 = vpop.f32.mrb[0].mxu0
  %v1153 = vadd.f32 %v921, %v1152
  %v1154 = vpop.f32.mrb[0].mxu0
  %v1155 = vpop.f32.mrb[0].mxu0
  %v1156 = vadd.f32 %v924, %v1155
  %v1157 = vpop.f32.mrb[0].mxu0
  %1158 = vmatprep.mubr.bf16.mxu0 0
  %1159 = vmatmul.mubr.bf16.gmra.mrb[0].mxu0 %v705
  %v1160 = vpop.f32.mrb[0].mxu0
  %v1161 = vadd.f32 %v929, %v1160
  %v1162 = vpop.f32.mrb[0].mxu0
  %v1163 = vpop.f32.mrb[0].mxu0
  %v1164 = vadd.f32 %v932, %v1163
  %v1165 = vpop.f32.mrb[0].mxu0
  %1166 = vmatprep.mubr.bf16.mxu0 0
  %1167 = vmatmul.mubr.bf16.gmra.mrb[0].mxu0 %v708
  %v1168 = vpop.f32.mrb[0].mxu0
  %v1169 = vadd.f32 %v937, %v1168
  %v1170 = vpop.f32.mrb[0].mxu0
  %v1171 = vpop.f32.mrb[0].mxu0
  %v1172 = vpop.f32.mrb[0].mxu0
  %1173 = vdwg.mxu0
  %v1174 = vmax.f32 %v977, 0.0
  %v1175 = vmax.f32 %v980, 0.0
  %v1176 = vmax.f32 %v985, 0.0
  %v1177 = vmax.f32 %v988, 0.0
  %v1178 = vmax.f32 %v993, 0.0
  %v1179 = vmax.f32 %v996, 0.0
  %v1180 = vmax.f32 %v1001, 0.0
  %v1181 = vmax.f32 %v1004, 0.0
  %v1182 = vmax.f32 %v1009, 0.0
  %v1183 = vmax.f32 %v1012, 0.0
  %v1184 = vmax.f32 %v1017, 0.0
  %v1185 = vmax.f32 %v1020, 0.0
  %v1186 = vmax.f32 %v1025, 0.0
  %v1187 = vmax.f32 %v1028, 0.0
  %v1188 = vmax.f32 %v1033, 0.0
  %v1189 = vmax.f32 %v1036, 0.0
  %v1190 = vmax.f32 %v1041, 0.0
  %v1191 = vmax.f32 %v1044, 0.0
  %v1192 = vmax.f32 %v1049, 0.0
  %v1193 = vmax.f32 %v1052, 0.0
  %v1194 = vmax.f32 %v1057, 0.0
  %v1195 = vmax.f32 %v1060, 0.0
  %v1196 = vmax.f32 %v1065, 0.0
  %v1197 = vmax.f32 %v1068, 0.0
  %v1198 = vmax.f32 %v1073, 0.0
  %v1199 = vmax.f32 %v1076, 0.0
  %v1200 = vmax.f32 %v1081, 0.0
  %v1201 = vmax.f32 %v1084, 0.0
  %v1202 = vmax.f32 %v1089, 0.0
  %v1203 = vmax.f32 %v1092, 0.0
  %v1204 = vmax.f32 %v1097, 0.0
  %v1205 = vmax.f32 %v1100, 0.0
  %v1206 = vmax.f32 %v1105, 0.0
  %v1207 = vmax.f32 %v1108, 0.0
  %v1208 = vmax.f32 %v1113, 0.0
  %v1209 = vmax.f32 %v1116, 0.0
  %v1210 = vmax.f32 %v1121, 0.0
  %v1211 = vmax.f32 %v1124, 0.0
  %v1212 = vmax.f32 %v1129, 0.0
  %v1213 = vmax.f32 %v1132, 0.0
  %v1214 = vmax.f32 %v1137, 0.0
  %v1215 = vmax.f32 %v1140, 0.0
  %v1216 = vmax.f32 %v1145, 0.0
  %v1217 = vmax.f32 %v1148, 0.0
  %v1218 = vmax.f32 %v1153, 0.0
  %v1219 = vmax.f32 %v1156, 0.0
  %v1220 = vmax.f32 %v1161, 0.0
  %v1221 = vmax.f32 %v1164, 0.0
  %v1222 = vmax.f32 %v1169, 0.0
  %v1223 = vpack.c.bf16 %v1175, %v1174
  %v1224 = vpack.c.bf16 %v1177, %v1176
  %v1225 = vpack.c.bf16 %v1179, %v1178
  %v1226 = vpack.c.bf16 %v1181, %v1180
  %v1227 = vpack.c.bf16 %v1183, %v1182
  %v1228 = vpack.c.bf16 %v1185, %v1184
  %v1229 = vpack.c.bf16 %v1187, %v1186
  %v1230 = vpack.c.bf16 %v1189, %v1188
  %v1231 = vpack.c.bf16 %v1191, %v1190
  %v1232 = vpack.c.bf16 %v1193, %v1192
  %v1233 = vpack.c.bf16 %v1195, %v1194
  %v1234 = vpack.c.bf16 %v1197, %v1196
  %v1235 = vpack.c.bf16 %v1199, %v1198
  %v1236 = vpack.c.bf16 %v1201, %v1200
  %v1237 = vpack.c.bf16 %v1203, %v1202
  %v1238 = vpack.c.bf16 %v1205, %v1204
  %v1239 = vpack.c.bf16 %v1207, %v1206
  %v1240 = vpack.c.bf16 %v1209, %v1208
  %v1241 = vpack.c.bf16 %v1211, %v1210
  %v1242 = vpack.c.bf16 %v1213, %v1212
  %v1243 = vpack.c.bf16 %v1215, %v1214
  %v1244 = vpack.c.bf16 %v1217, %v1216
  %v1245 = vpack.c.bf16 %v1219, %v1218
  %v1246 = vpack.c.bf16 %v1221, %v1220
  %v1247 = vpack.c.bf16 %v1222, %v1222
  %v1273 = vunpack.c.l.b16 %v1223
  %v1274 = vunpack.c.h.b16 %v1223
  %v1275 = vunpack.c.l.b16 %v1224
  %v1276 = vunpack.c.h.b16 %v1224
  %v1277 = vunpack.c.l.b16 %v1225
  %v1278 = vunpack.c.h.b16 %v1225
  %v1279 = vunpack.c.l.b16 %v1226
  %v1280 = vunpack.c.h.b16 %v1226
  %v1281 = vunpack.c.l.b16 %v1227
  %v1282 = vunpack.c.h.b16 %v1227
  %v1283 = vunpack.c.l.b16 %v1228
  %v1284 = vunpack.c.h.b16 %v1228
  %v1285 = vunpack.c.l.b16 %v1229
  %v1286 = vunpack.c.h.b16 %v1229
  %v1287 = vunpack.c.l.b16 %v1230
  %v1288 = vunpack.c.h.b16 %v1230
  %v1289 = vunpack.c.l.b16 %v1231
  %v1290 = vunpack.c.h.b16 %v1231
  %v1291 = vunpack.c.l.b16 %v1232
  %v1292 = vunpack.c.h.b16 %v1232
  %v1293 = vunpack.c.l.b16 %v1233
  %v1294 = vunpack.c.h.b16 %v1233
  %v1295 = vunpack.c.l.b16 %v1234
  %v1296 = vunpack.c.h.b16 %v1234
  %v1297 = vunpack.c.l.b16 %v1235
  %v1298 = vunpack.c.h.b16 %v1235
  %v1299 = vunpack.c.l.b16 %v1236
  %v1300 = vunpack.c.h.b16 %v1236
  %v1301 = vunpack.c.l.b16 %v1237
  %v1302 = vunpack.c.h.b16 %v1237
  %v1303 = vunpack.c.l.b16 %v1238
  %v1304 = vunpack.c.h.b16 %v1238
  %v1305 = vunpack.c.l.b16 %v1239
  %v1306 = vunpack.c.h.b16 %v1239
  %v1307 = vunpack.c.l.b16 %v1240
  %v1308 = vunpack.c.h.b16 %v1240
  %v1309 = vunpack.c.l.b16 %v1241
  %v1310 = vunpack.c.h.b16 %v1241
  %v1311 = vunpack.c.l.b16 %v1242
  %v1312 = vunpack.c.h.b16 %v1242
  %v1313 = vunpack.c.l.b16 %v1243
  %v1314 = vunpack.c.h.b16 %v1243
  %v1315 = vunpack.c.l.b16 %v1244
  %v1316 = vunpack.c.h.b16 %v1244
  %v1317 = vunpack.c.l.b16 %v1245
  %v1318 = vunpack.c.h.b16 %v1245
  %v1319 = vunpack.c.l.b16 %v1246
  %v1320 = vunpack.c.h.b16 %v1246
  %v1321 = vunpack.c.l.b16 %v1247
  %v1322 = vpack.c.b16 %v1273, %v1273
  %v1323 = vpack.c.b16 %v1274, %v1274
  %v1324 = vpack.c.b16 %v1275, %v1275
  %v1325 = vpack.c.b16 %v1276, %v1276
  %v1326 = vpack.c.b16 %v1277, %v1277
  %v1327 = vpack.c.b16 %v1278, %v1278
  %v1328 = vpack.c.b16 %v1279, %v1279
  %v1329 = vpack.c.b16 %v1280, %v1280
  %v1330 = vpack.c.b16 %v1281, %v1281
  %v1331 = vpack.c.b16 %v1282, %v1282
  %v1332 = vpack.c.b16 %v1283, %v1283
  %v1333 = vpack.c.b16 %v1284, %v1284
  %v1334 = vpack.c.b16 %v1285, %v1285
  %v1335 = vpack.c.b16 %v1286, %v1286
  %v1336 = vpack.c.b16 %v1287, %v1287
  %v1337 = vpack.c.b16 %v1288, %v1288
  %v1338 = vpack.c.b16 %v1289, %v1289
  %v1339 = vpack.c.b16 %v1290, %v1290
  %v1340 = vpack.c.b16 %v1291, %v1291
  %v1341 = vpack.c.b16 %v1292, %v1292
  %v1342 = vpack.c.b16 %v1293, %v1293
  %v1343 = vpack.c.b16 %v1294, %v1294
  %v1344 = vpack.c.b16 %v1295, %v1295
  %v1345 = vpack.c.b16 %v1296, %v1296
  %v1346 = vpack.c.b16 %v1297, %v1297
  %v1347 = vpack.c.b16 %v1298, %v1298
  %v1348 = vpack.c.b16 %v1299, %v1299
  %v1349 = vpack.c.b16 %v1300, %v1300
  %v1350 = vpack.c.b16 %v1301, %v1301
  %v1351 = vpack.c.b16 %v1302, %v1302
  %v1352 = vpack.c.b16 %v1303, %v1303
  %v1353 = vpack.c.b16 %v1304, %v1304
  %v1354 = vpack.c.b16 %v1305, %v1305
  %v1355 = vpack.c.b16 %v1306, %v1306
  %v1356 = vpack.c.b16 %v1307, %v1307
  %v1357 = vpack.c.b16 %v1308, %v1308
  %v1358 = vpack.c.b16 %v1309, %v1309
  %v1359 = vpack.c.b16 %v1310, %v1310
  %v1360 = vpack.c.b16 %v1311, %v1311
  %v1361 = vpack.c.b16 %v1312, %v1312
  %v1362 = vpack.c.b16 %v1313, %v1313
  %v1363 = vpack.c.b16 %v1314, %v1314
  %v1364 = vpack.c.b16 %v1315, %v1315
  %v1365 = vpack.c.b16 %v1316, %v1316
  %v1366 = vpack.c.b16 %v1317, %v1317
  %v1367 = vpack.c.b16 %v1318, %v1318
  %v1368 = vpack.c.b16 %v1319, %v1319
  %v1369 = vpack.c.b16 %v1320, %v1320
  %v1370 = vpack.c.b16 %v1321, %v1321
  %1420 = vst [vmem:[%s3] sm:$0xf] %v1322
  %1421 = vst [vmem:[%s3 + $0x4] sm:$0xf] %v1323
  %1422 = vst [vmem:[%s3 + $0x8] sm:$0xf] %v1324
  %1423 = vst [vmem:[%s3 + $0xc] sm:$0xf] %v1325
  %1424 = vst [vmem:[%s3 + $0x10] sm:$0xf] %v1326
  %1425 = vst [vmem:[%s3 + $0x14] sm:$0xf] %v1327
  %1426 = vst [vmem:[%s3 + $0x18] sm:$0xf] %v1328
  %1427 = vst [vmem:[%s3 + $0x1c] sm:$0xf] %v1329
  %1428 = vst [vmem:[%s3 + $0x20] sm:$0xf] %v1330
  %1429 = vst [vmem:[%s3 + $0x24] sm:$0xf] %v1331
  %1430 = vst [vmem:[%s3 + $0x28] sm:$0xf] %v1332
  %1431 = vst [vmem:[%s3 + $0x2c] sm:$0xf] %v1333
  %1432 = vst [vmem:[%s3 + $0x30] sm:$0xf] %v1334
  %1433 = vst [vmem:[%s3 + $0x34] sm:$0xf] %v1335
  %1434 = vst [vmem:[%s3 + $0x38] sm:$0xf] %v1336
  %1435 = vst [vmem:[%s3 + $0x3c] sm:$0xf] %v1337
  %1436 = vst [vmem:[%s3 + $0x40] sm:$0xf] %v1338
  %1437 = vst [vmem:[%s3 + $0x44] sm:$0xf] %v1339
  %1438 = vst [vmem:[%s3 + $0x48] sm:$0xf] %v1340
  %1439 = vst [vmem:[%s3 + $0x4c] sm:$0xf] %v1341
  %1440 = vst [vmem:[%s3 + $0x50] sm:$0xf] %v1342
  %1441 = vst [vmem:[%s3 + $0x54] sm:$0xf] %v1343
  %1442 = vst [vmem:[%s3 + $0x58] sm:$0xf] %v1344
  %1443 = vst [vmem:[%s3 + $0x5c] sm:$0xf] %v1345
  %1444 = vst [vmem:[%s3 + $0x60] sm:$0xf] %v1346
  %1445 = vst [vmem:[%s3 + $0x64] sm:$0xf] %v1347
  %1446 = vst [vmem:[%s3 + $0x68] sm:$0xf] %v1348
  %1447 = vst [vmem:[%s3 + $0x6c] sm:$0xf] %v1349
  %1448 = vst [vmem:[%s3 + $0x70] sm:$0xf] %v1350
  %1449 = vst [vmem:[%s3 + $0x74] sm:$0xf] %v1351
  %1450 = vst [vmem:[%s3 + $0x78] sm:$0xf] %v1352
  %1451 = vst [vmem:[%s3 + $0x7c] sm:$0xf] %v1353
  %1452 = vst [vmem:[%s3 + $0x80] sm:$0xf] %v1354
  %1453 = vst [vmem:[%s3 + $0x84] sm:$0xf] %v1355
  %1454 = vst [vmem:[%s3 + $0x88] sm:$0xf] %v1356
  %1455 = vst [vmem:[%s3 + $0x8c] sm:$0xf] %v1357
  %1456 = vst [vmem:[%s3 + $0x90] sm:$0xf] %v1358
  %1457 = vst [vmem:[%s3 + $0x94] sm:$0xf] %v1359
  %1458 = vst [vmem:[%s3 + $0x98] sm:$0xf] %v1360
  %1459 = vst [vmem:[%s3 + $0x9c] sm:$0xf] %v1361
  %1460 = vst [vmem:[%s3 + $0xa0] sm:$0xf] %v1362
  %1461 = vst [vmem:[%s3 + $0xa4] sm:$0xf] %v1363
  %1462 = vst [vmem:[%s3 + $0xa8] sm:$0xf] %v1364
  %1463 = vst [vmem:[%s3 + $0xac] sm:$0xf] %v1365
  %1464 = vst [vmem:[%s3 + $0xb0] sm:$0xf] %v1366
  %1465 = vst [vmem:[%s3 + $0xb4] sm:$0xf] %v1367
  %1466 = vst [vmem:[%s3 + $0xb8] sm:$0xf] %v1368
  %1467 = vst [vmem:[%s3 + $0xbc] sm:$0xf] %v1369
  %1468 = vst [vmem:[%s3 + $0xc0] sm:$0xf] %v1370
  // Predicated region
  $region14: #{simple_cnn_forward.8} parent=0 // pred_check
    _
  $region15: #{simple_cnn_forward.8} parent=0 // pred_check_branch
    %1470 = sbr.rel (0) target = $region17
  $region16: #{simple_cnn_forward.8} parent=0 // pred_region
    _
  $region17: #{simple_cnn_forward.8} parent=0 // pred_fallthru
    _
  // Predicated region
  $region18: #{simple_cnn_forward.8} parent=0 // pred_check
    _
  $region19: #{simple_cnn_forward.8} parent=0 // pred_check_branch
    %1472 = sbr.rel (0) target = $region21
  $region20: #{simple_cnn_forward.8} parent=0 // pred_region
    _
  $region21: #{simple_cnn_forward.8} parent=0 // pred_fallthru
    _

// kernel: simple_cnn_forward.9
$region0: #{simple_cnn_forward.9}
  #allocation0 [shape = 'u32[]', space=smem, size = 0x4, offset = 0x4, fixed_abs, tag = 'smem constant byte address 0x4 - core index']
  #allocation1 [shape = 'u32[144,128]{1,0:T(1,128)}', space=vmem, size = 0x12000, scoped, tag = 'internal scratch']
  %s0 = inlined_call_operand.vmem [shape: bf16[2,7,448], index: 0, kind: input, shape index: {}]
  %s1 = inlined_call_operand.vmem [shape: bf16[2,7,448], index: 1, kind: input, shape index: {}]
  %s2 = inlined_call_operand.vmem [shape: bf16[2,7,448], index: 2, kind: input, shape index: {}]
  %s3 = inlined_call_operand.vmem [shape: bf16[2,7,448], index: 3, kind: input, shape index: {}]
  %s4 = inlined_call_operand.vmem [shape: bf16[2,7,448], index: 4, kind: output, shape index: {}]
  %s5 = sld [smem:[#allocation0]]
  $region26: #{simple_cnn_forward.9} parent=0
    _
  %s7 = ssub.s32 1, %s5
  %s8 = scalar_select 0, %s7, %s5
  // Predicated region
  $region2: #{simple_cnn_forward.9} parent=0 // pred_check
    _
  $region3: #{simple_cnn_forward.9} parent=0 // pred_check_branch
    %10 = sbr.rel (0) target = $region5
  $region4: #{simple_cnn_forward.9} parent=0 // pred_region
    _
  $region5: #{simple_cnn_forward.9} parent=0 // pred_fallthru
    _
  // Predicated region
  $region6: #{simple_cnn_forward.9} parent=0 // pred_check
    _
  $region7: #{simple_cnn_forward.9} parent=0 // pred_check_branch
    %12 = sbr.rel (0) target = $region9
  $region8: #{simple_cnn_forward.9} parent=0 // pred_region
    _
  $region9: #{simple_cnn_forward.9} parent=0 // pred_fallthru
    _
  // Predicated region
  $region10: #{simple_cnn_forward.9} parent=0 // pred_check
    _
  $region11: #{simple_cnn_forward.9} parent=0 // pred_check_branch
    %14 = sbr.rel (0) target = $region13
  $region12: #{simple_cnn_forward.9} parent=0 // pred_region
    _
  $region13: #{simple_cnn_forward.9} parent=0 // pred_fallthru
    _
  // Predicated region
  $region14: #{simple_cnn_forward.9} parent=0 // pred_check
    _
  $region15: #{simple_cnn_forward.9} parent=0 // pred_check_branch
    %16 = sbr.rel (0) target = $region17
  $region16: #{simple_cnn_forward.9} parent=0 // pred_region
    _
  $region17: #{simple_cnn_forward.9} parent=0 // pred_fallthru
    _
  %v17 = vld [vmem:[%s0] sm:$0xff]
  %v18 = vld [vmem:[%s0 + $0x8] sm:$0xff]
  %v19 = vld [vmem:[%s0 + $0x10] sm:$0xff]
  %v20 = vld [vmem:[%s0 + $0x18] sm:$0xff]
  %v21 = vld [vmem:[%s1] sm:$0xff]
  %v22 = vld [vmem:[%s1 + $0x8] sm:$0xff]
  %v23 = vld [vmem:[%s1 + $0x10] sm:$0xff]
  %v24 = vld [vmem:[%s1 + $0x18] sm:$0xff]
  %v25 = vmax.bf16 %v17, %v21
  %v26 = vmax.bf16 %v18, %v22
  %v27 = vmax.bf16 %v19, %v23
  %v28 = vmax.bf16 %v20, %v24
  %v29 = vld [vmem:[%s2] sm:$0xff]
  %v30 = vld [vmem:[%s2 + $0x8] sm:$0xff]
  %v31 = vld [vmem:[%s2 + $0x10] sm:$0xff]
  %v32 = vld [vmem:[%s2 + $0x18] sm:$0xff]
  %v33 = vld [vmem:[%s3] sm:$0xff]
  %v34 = vld [vmem:[%s3 + $0x8] sm:$0xff]
  %v35 = vld [vmem:[%s3 + $0x10] sm:$0xff]
  %v36 = vld [vmem:[%s3 + $0x18] sm:$0xff]
  %v37 = vmax.bf16 %v29, %v33
  %v38 = vmax.bf16 %v30, %v34
  %v39 = vmax.bf16 %v31, %v35
  %v40 = vmax.bf16 %v32, %v36
  %v41 = vmax.bf16 %v25, %v37
  %v42 = vmax.bf16 %v26, %v38
  %v43 = vmax.bf16 %v27, %v39
  %v44 = vmax.bf16 %v28, %v40
  %vm45 = vcmask 1043456
  %vm46 = vsmask.f32 3328
  %vm47 = vmand %vm45, %vm46
  %vm48 = vcmask 1047556
  %vm49 = vsmask.f32 7424
  %vm50 = vmand %vm48, %vm49
  %vm51 = vmor %vm50, %vm47
  %v52 = vld [vmem:[%s4] sm:$0xff]
  %v53 = vsel %vm51, %v41, %v52
  %54 = vst [vmem:[%s4] sm:$0xff] %v53
  %vm55 = vcmask 523268
  %vm56 = vmand %vm55, %vm49
  %vm57 = vmor %vm56, %vm47
  %v58 = vld [vmem:[%s4 + $0x8] sm:$0xff]
  %v59 = vsel %vm57, %v42, %v58
  %60 = vst [vmem:[%s4 + $0x8] sm:$0xff] %v59
  %v61 = vld [vmem:[%s4 + $0x10] sm:$0xff]
  %v62 = vsel %vm51, %v43, %v61
  %63 = vst [vmem:[%s4 + $0x10] sm:$0xff] %v62
  %v64 = vld [vmem:[%s4 + $0x18] sm:$0xff]
  %v65 = vsel %vm57, %v44, %v64
  %66 = vst [vmem:[%s4 + $0x18] sm:$0xff] %v65
  // Predicated region
  $region18: #{simple_cnn_forward.9} parent=0 // pred_check
    _
  $region19: #{simple_cnn_forward.9} parent=0 // pred_check_branch
    %68 = sbr.rel (0) target = $region21
  $region20: #{simple_cnn_forward.9} parent=0 // pred_region
    _
  $region21: #{simple_cnn_forward.9} parent=0 // pred_fallthru
    _
  // Predicated region
  $region22: #{simple_cnn_forward.9} parent=0 // pred_check
    _
  $region23: #{simple_cnn_forward.9} parent=0 // pred_check_branch
    %70 = sbr.rel (0) target = $region25
  $region24: #{simple_cnn_forward.9} parent=0 // pred_region
    _
  $region25: #{simple_cnn_forward.9} parent=0 // pred_fallthru
    _

// kernel: simple_cnn_forward.11
$region0: #{simple_cnn_forward.11}
  #allocation0 [shape = 'u32[]', space=smem, size = 0x4, offset = 0x4, fixed_abs, tag = 'smem constant byte address 0x4 - core index']
  #allocation1 [shape = 'u32[144,128]{1,0:T(1,128)}', space=vmem, size = 0x12000, scoped, tag = 'internal scratch']
  %s0 = inlined_call_operand.vmem [shape: bf16[2,128], index: 0, kind: input, shape index: {}]
  %s1 = inlined_call_operand.vmem [shape: bf16[128,128], index: 1, kind: input, shape index: {}]
  %s2 = inlined_call_operand.vmem [shape: f32[1,128], index: 2, kind: input, shape index: {}]
  %s3 = inlined_call_operand.hbm [shape: f32[2,128], index: 3, kind: output, shape index: {}]
  %s4 = sld [smem:[#allocation0]]
  $region22: #{simple_cnn_forward.11} parent=0
    _
  %s6 = ssub.s32 1, %s4
  %s7 = scalar_select 0, %s6, %s4
  $region1: #{simple_cnn_forward.11} parent=0
    #allocation2 [shape = 'u8[1024]{0}', space=vmem, size = 0x400, scoped, tag = 'output window, operand 0, single buffered']
    #allocation3 [shape = 's32[1]{0}', space=sflag, size = 0x4, scoped, tag = 'scoped memory for simple_cnn_forward.11']
    %8 = vsyncpa [#allocation3], 0
    // Predicated region
    $region2: #{simple_cnn_forward.11} parent=1 // pred_check
      _
    $region3: #{simple_cnn_forward.11} parent=1 // pred_check_branch
      %10 = sbr.rel (0) target = $region5
    $region4: #{simple_cnn_forward.11} parent=1 // pred_region
      _
    $region5: #{simple_cnn_forward.11} parent=1 // pred_fallthru
      _
    // Predicated region
    $region6: #{simple_cnn_forward.11} parent=1 // pred_check
      _
    $region7: #{simple_cnn_forward.11} parent=1 // pred_check_branch
      %12 = sbr.rel (0) target = $region9
    $region8: #{simple_cnn_forward.11} parent=1 // pred_region
      _
    $region9: #{simple_cnn_forward.11} parent=1 // pred_fallthru
      _
    // Predicated region
    $region10: #{simple_cnn_forward.11} parent=1 // pred_check
      _
    $region11: #{simple_cnn_forward.11} parent=1 // pred_check_branch
      %14 = sbr.rel (0) target = $region13
    $region12: #{simple_cnn_forward.11} parent=1 // pred_region
      _
    $region13: #{simple_cnn_forward.11} parent=1 // pred_fallthru
      _
    %v16 = vld [vmem:[%s0] sm:$0x1]
    %v17 = vld [vmem:[%s1] sm:$0xf]
    %v18 = vld [vmem:[%s1 + $0x4] sm:$0xf]
    %v19 = vld [vmem:[%s1 + $0x8] sm:$0xf]
    %v20 = vld [vmem:[%s1 + $0xc] sm:$0xf]
    %v21 = vld [vmem:[%s1 + $0x10] sm:$0xf]
    %v22 = vld [vmem:[%s1 + $0x14] sm:$0xf]
    %v23 = vld [vmem:[%s1 + $0x18] sm:$0xf]
    %v24 = vld [vmem:[%s1 + $0x1c] sm:$0xf]
    %v25 = vld [vmem:[%s1 + $0x20] sm:$0xf]
    %v26 = vld [vmem:[%s1 + $0x24] sm:$0xf]
    %v27 = vld [vmem:[%s1 + $0x28] sm:$0xf]
    %v28 = vld [vmem:[%s1 + $0x2c] sm:$0xf]
    %v29 = vld [vmem:[%s1 + $0x30] sm:$0xf]
    %v30 = vld [vmem:[%s1 + $0x34] sm:$0xf]
    %v31 = vld [vmem:[%s1 + $0x38] sm:$0xf]
    %v32 = vld [vmem:[%s1 + $0x3c] sm:$0xf]
    %v33 = vld [vmem:[%s2] sm:$0x1]
    %v35 = vlaneseq
    %v36 = vshrl.u32 %v35, 7
    %v37 = vsub.s32 0, %v36
    %v38 = vrot.slane %v33, %v37
    %v56 = vunpack.c.l.b16 %v17
    %v57 = vunpack.c.l.b16 %v18
    %v58 = vunpack.c.l.b16 %v19
    %v59 = vunpack.c.l.b16 %v20
    %v60 = vunpack.c.l.b16 %v21
    %v61 = vunpack.c.l.b16 %v22
    %v62 = vunpack.c.l.b16 %v23
    %v63 = vunpack.c.l.b16 %v24
    %v64 = vunpack.c.l.b16 %v25
    %v65 = vunpack.c.l.b16 %v26
    %v66 = vunpack.c.l.b16 %v27
    %v67 = vunpack.c.l.b16 %v28
    %v68 = vunpack.c.l.b16 %v29
    %v69 = vunpack.c.l.b16 %v30
    %v70 = vunpack.c.l.b16 %v31
    %v71 = vunpack.c.l.b16 %v32
    %v72 = vpack.c.b16 %v57, %v56
    %v73 = vpack.c.b16 %v59, %v58
    %v74 = vpack.c.b16 %v61, %v60
    %v75 = vpack.c.b16 %v63, %v62
    %v76 = vpack.c.b16 %v65, %v64
    %v77 = vpack.c.b16 %v67, %v66
    %v78 = vpack.c.b16 %v69, %v68
    %v79 = vpack.c.b16 %v71, %v70
    %88 = vmatprep.subr.bf16.mxu0 0
    %89 = vmatpush1.bf16.msra.mxu0 %v72
    %90 = vmatprep.subr.bf16.mxu0 0
    %91 = vmatpush1.bf16.msra.mxu0 %v73
    %92 = vmatprep.subr.bf16.mxu0 0
    %93 = vmatpush1.bf16.msra.mxu0 %v74
    %94 = vmatprep.subr.bf16.mxu0 0
    %95 = vmatpush1.bf16.msra.mxu0 %v75
    %96 = vmatprep.subr.bf16.mxu0 0
    %97 = vmatpush1.bf16.msra.mxu0 %v76
    %98 = vmatprep.subr.bf16.mxu0 0
    %99 = vmatpush1.bf16.msra.mxu0 %v77
    %100 = vmatprep.subr.bf16.mxu0 0
    %101 = vmatpush1.bf16.msra.mxu0 %v78
    %102 = vmatprep.subr.bf16.mxu0 0
    %103 = vmatpush1.bf16.msra.mxu0 %v79
    %104 = vmatprep.subr.bf16.mxu0 0
    %105 = vmatpush1.bf16.msra.mxu0 0
    %106 = vmatprep.subr.bf16.mxu0 0
    %107 = vmatpush1.bf16.msra.mxu0 0
    %108 = vmatprep.subr.bf16.mxu0 0
    %109 = vmatpush1.bf16.msra.mxu0 0
    %110 = vmatprep.subr.bf16.mxu0 0
    %111 = vmatpush1.bf16.msra.mxu0 0
    %112 = vmatprep.subr.bf16.mxu0 0
    %113 = vmatpush1.bf16.msra.mxu0 0
    %114 = vmatprep.subr.bf16.mxu0 0
    %115 = vmatpush1.bf16.msra.mxu0 0
    %116 = vmatprep.subr.bf16.mxu0 0
    %117 = vmatpush1.bf16.msra.mxu0 0
    %118 = vmatprep.subr.bf16.mxu0 0
    %119 = vmatpush1.bf16.msra.mxu0 0
    %120 = vmatprep.mubr.bf16.mxu0 0
    %121 = vmatmul.mubr.bf16.gmra.mrb[0].mxu0 %v16
    %v122 = vpop.f32.mrb[0].mxu0
    %v123 = vadd.f32 %v38, %v122
    %v124 = vpop.f32.mrb[0].mxu0
    %v125 = vpop.f32.mrb[0].mxu0
    %v126 = vpop.f32.mrb[0].mxu0
    %127 = vdwg.mxu0
    %128 = vst [vmem:[#allocation2] sm:$0x3] %v123
    // Predicated region
    $region14: #{simple_cnn_forward.11} parent=1 // pred_check
      _
    $region15: #{simple_cnn_forward.11} parent=1 // pred_check_branch
      %130 = sbr.rel (0) target = $region17
    $region16: #{simple_cnn_forward.11} parent=1 // pred_region
      %s132 = ssub.s32 32, 32
      %133 = vsyncadd [#allocation3], %s132
      %s135 = sshll.u32 [#allocation2], 4
      %s136 = int_to_ptr.vmem [resolvable:$true] %s135
      %138 = dma.vmem_to_hbm [thread:$0]  %s136, 32, %s3, [#allocation3]
    $region17: #{simple_cnn_forward.11} parent=1 // pred_fallthru
      _
    // Predicated region
    $region18: #{simple_cnn_forward.11} parent=1 // pred_check
      _
    $region19: #{simple_cnn_forward.11} parent=1 // pred_check_branch
      %140 = sbr.rel (0) target = $region21
    $region20: #{simple_cnn_forward.11} parent=1 // pred_region
      %141 = dma.done [#allocation3], 32
    $region21: #{simple_cnn_forward.11} parent=1 // pred_fallthru
      _
    %142 = vsyncpa [#allocation3], 1

// kernel: simple_cnn_forward.10
$region0: #{simple_cnn_forward.10}
  #allocation0 [shape = 'u32[]', space=smem, size = 0x4, offset = 0x4, fixed_abs, tag = 'smem constant byte address 0x4 - core index']
  #allocation1 [shape = 'u32[144,128]{1,0:T(1,128)}', space=vmem, size = 0x12000, scoped, tag = 'internal scratch']
  %s0 = inlined_call_operand.vmem [shape: bf16[2,3136], index: 0, kind: input, shape index: {}]
  %s1 = inlined_call_operand.vmem [shape: bf16[3136,128], index: 1, kind: input, shape index: {}]
  %s2 = inlined_call_operand.vmem [shape: f32[1,128], index: 2, kind: input, shape index: {}]
  %s3 = inlined_call_operand.vmem [shape: bf16[2,128], index: 3, kind: output, shape index: {}]
  %s4 = sld [smem:[#allocation0]]
  $region22: #{simple_cnn_forward.10} parent=0
    _
  %s6 = ssub.s32 1, %s4
  %s7 = scalar_select 0, %s6, %s4
  // Predicated region
  $region2: #{simple_cnn_forward.10} parent=0 // pred_check
    _
  $region3: #{simple_cnn_forward.10} parent=0 // pred_check_branch
    %9 = sbr.rel (0) target = $region5
  $region4: #{simple_cnn_forward.10} parent=0 // pred_region
    _
  $region5: #{simple_cnn_forward.10} parent=0 // pred_fallthru
    _
  // Predicated region
  $region6: #{simple_cnn_forward.10} parent=0 // pred_check
    _
  $region7: #{simple_cnn_forward.10} parent=0 // pred_check_branch
    %11 = sbr.rel (0) target = $region9
  $region8: #{simple_cnn_forward.10} parent=0 // pred_region
    _
  $region9: #{simple_cnn_forward.10} parent=0 // pred_fallthru
    _
  // Predicated region
  $region10: #{simple_cnn_forward.10} parent=0 // pred_check
    _
  $region11: #{simple_cnn_forward.10} parent=0 // pred_check_branch
    %13 = sbr.rel (0) target = $region13
  $region12: #{simple_cnn_forward.10} parent=0 // pred_region
    _
  $region13: #{simple_cnn_forward.10} parent=0 // pred_fallthru
    _
  %v15 = vld [vmem:[%s0] sm:$0xff]
  %v16 = vld [vmem:[%s0 + $0x8] sm:$0xff]
  %v17 = vld [vmem:[%s0 + $0x10] sm:$0xff]
  %v18 = vld [vmem:[%s0 + $0x18] sm:$0x1]
  %v19 = vld [vmem:[%s1] sm:$0xf]
  %v20 = vld [vmem:[%s1 + $0x4] sm:$0xf]
  %v21 = vld [vmem:[%s1 + $0x8] sm:$0xf]
  %v22 = vld [vmem:[%s1 + $0xc] sm:$0xf]
  %v23 = vld [vmem:[%s1 + $0x10] sm:$0xf]
  %v24 = vld [vmem:[%s1 + $0x14] sm:$0xf]
  %v25 = vld [vmem:[%s1 + $0x18] sm:$0xf]
  %v26 = vld [vmem:[%s1 + $0x1c] sm:$0xf]
  %v27 = vld [vmem:[%s1 + $0x20] sm:$0xf]
  %v28 = vld [vmem:[%s1 + $0x24] sm:$0xf]
  %v29 = vld [vmem:[%s1 + $0x28] sm:$0xf]
  %v30 = vld [vmem:[%s1 + $0x2c] sm:$0xf]
  %v31 = vld [vmem:[%s1 + $0x30] sm:$0xf]
  %v32 = vld [vmem:[%s1 + $0x34] sm:$0xf]
  %v33 = vld [vmem:[%s1 + $0x38] sm:$0xf]
  %v34 = vld [vmem:[%s1 + $0x3c] sm:$0xf]
  %v35 = vld [vmem:[%s1 + $0x40] sm:$0xf]
  %v36 = vld [vmem:[%s1 + $0x44] sm:$0xf]
  %v37 = vld [vmem:[%s1 + $0x48] sm:$0xf]
  %v38 = vld [vmem:[%s1 + $0x4c] sm:$0xf]
  %v39 = vld [vmem:[%s1 + $0x50] sm:$0xf]
  %v40 = vld [vmem:[%s1 + $0x54] sm:$0xf]
  %v41 = vld [vmem:[%s1 + $0x58] sm:$0xf]
  %v42 = vld [vmem:[%s1 + $0x5c] sm:$0xf]
  %v43 = vld [vmem:[%s1 + $0x60] sm:$0xf]
  %v44 = vld [vmem:[%s1 + $0x64] sm:$0xf]
  %v45 = vld [vmem:[%s1 + $0x68] sm:$0xf]
  %v46 = vld [vmem:[%s1 + $0x6c] sm:$0xf]
  %v47 = vld [vmem:[%s1 + $0x70] sm:$0xf]
  %v48 = vld [vmem:[%s1 + $0x74] sm:$0xf]
  %v49 = vld [vmem:[%s1 + $0x78] sm:$0xf]
  %v50 = vld [vmem:[%s1 + $0x7c] sm:$0xf]
  %v51 = vld [vmem:[%s1 + $0x80] sm:$0xf]
  %v52 = vld [vmem:[%s1 + $0x84] sm:$0xf]
  %v53 = vld [vmem:[%s1 + $0x88] sm:$0xf]
  %v54 = vld [vmem:[%s1 + $0x8c] sm:$0xf]
  %v55 = vld [vmem:[%s1 + $0x90] sm:$0xf]
  %v56 = vld [vmem:[%s1 + $0x94] sm:$0xf]
  %v57 = vld [vmem:[%s1 + $0x98] sm:$0xf]
  %v58 = vld [vmem:[%s1 + $0x9c] sm:$0xf]
  %v59 = vld [vmem:[%s1 + $0xa0] sm:$0xf]
  %v60 = vld [vmem:[%s1 + $0xa4] sm:$0xf]
  %v61 = vld [vmem:[%s1 + $0xa8] sm:$0xf]
  %v62 = vld [vmem:[%s1 + $0xac] sm:$0xf]
  %v63 = vld [vmem:[%s1 + $0xb0] sm:$0xf]
  %v64 = vld [vmem:[%s1 + $0xb4] sm:$0xf]
  %v65 = vld [vmem:[%s1 + $0xb8] sm:$0xf]
  %v66 = vld [vmem:[%s1 + $0xbc] sm:$0xf]
  %v67 = vld [vmem:[%s1 + $0xc0] sm:$0xf]
  %v68 = vld [vmem:[%s1 + $0xc4] sm:$0xf]
  %v69 = vld [vmem:[%s1 + $0xc8] sm:$0xf]
  %v70 = vld [vmem:[%s1 + $0xcc] sm:$0xf]
  %v71 = vld [vmem:[%s1 + $0xd0] sm:$0xf]
  %v72 = vld [vmem:[%s1 + $0xd4] sm:$0xf]
  %v73 = vld [vmem:[%s1 + $0xd8] sm:$0xf]
  %v74 = vld [vmem:[%s1 + $0xdc] sm:$0xf]
  %v75 = vld [vmem:[%s1 + $0xe0] sm:$0xf]
  %v76 = vld [vmem:[%s1 + $0xe4] sm:$0xf]
  %v77 = vld [vmem:[%s1 + $0xe8] sm:$0xf]
  %v78 = vld [vmem:[%s1 + $0xec] sm:$0xf]
  %v79 = vld [vmem:[%s1 + $0xf0] sm:$0xf]
  %v80 = vld [vmem:[%s1 + $0xf4] sm:$0xf]
  %v81 = vld [vmem:[%s1 + $0xf8] sm:$0xf]
  %v82 = vld [vmem:[%s1 + $0xfc] sm:$0xf]
  %v83 = vld [vmem:[%s1 + $0x100] sm:$0xf]
  %v84 = vld [vmem:[%s1 + $0x104] sm:$0xf]
  %v85 = vld [vmem:[%s1 + $0x108] sm:$0xf]
  %v86 = vld [vmem:[%s1 + $0x10c] sm:$0xf]
  %v87 = vld [vmem:[%s1 + $0x110] sm:$0xf]
  %v88 = vld [vmem:[%s1 + $0x114] sm:$0xf]
  %v89 = vld [vmem:[%s1 + $0x118] sm:$0xf]
  %v90 = vld [vmem:[%s1 + $0x11c] sm:$0xf]
  %v91 = vld [vmem:[%s1 + $0x120] sm:$0xf]
  %v92 = vld [vmem:[%s1 + $0x124] sm:$0xf]
  %v93 = vld [vmem:[%s1 + $0x128] sm:$0xf]
  %v94 = vld [vmem:[%s1 + $0x12c] sm:$0xf]
  %v95 = vld [vmem:[%s1 + $0x130] sm:$0xf]
  %v96 = vld [vmem:[%s1 + $0x134] sm:$0xf]
  %v97 = vld [vmem:[%s1 + $0x138] sm:$0xf]
  %v98 = vld [vmem:[%s1 + $0x13c] sm:$0xf]
  %v99 = vld [vmem:[%s1 + $0x140] sm:$0xf]
  %v100 = vld [vmem:[%s1 + $0x144] sm:$0xf]
  %v101 = vld [vmem:[%s1 + $0x148] sm:$0xf]
  %v102 = vld [vmem:[%s1 + $0x14c] sm:$0xf]
  %v103 = vld [vmem:[%s1 + $0x150] sm:$0xf]
  %v104 = vld [vmem:[%s1 + $0x154] sm:$0xf]
  %v105 = vld [vmem:[%s1 + $0x158] sm:$0xf]
  %v106 = vld [vmem:[%s1 + $0x15c] sm:$0xf]
  %v107 = vld [vmem:[%s1 + $0x160] sm:$0xf]
  %v108 = vld [vmem:[%s1 + $0x164] sm:$0xf]
  %v109 = vld [vmem:[%s1 + $0x168] sm:$0xf]
  %v110 = vld [vmem:[%s1 + $0x16c] sm:$0xf]
  %v111 = vld [vmem:[%s1 + $0x170] sm:$0xf]
  %v112 = vld [vmem:[%s1 + $0x174] sm:$0xf]
  %v113 = vld [vmem:[%s1 + $0x178] sm:$0xf]
  %v114 = vld [vmem:[%s1 + $0x17c] sm:$0xf]
  %v115 = vld [vmem:[%s1 + $0x180] sm:$0xf]
  %v116 = vld [vmem:[%s1 + $0x184] sm:$0xf]
  %v117 = vld [vmem:[%s1 + $0x188] sm:$0xf]
  %v118 = vld [vmem:[%s1 + $0x18c] sm:$0xf]
  %v119 = vld [vmem:[%s1 + $0x190] sm:$0xf]
  %v120 = vld [vmem:[%s1 + $0x194] sm:$0xf]
  %v121 = vld [vmem:[%s1 + $0x198] sm:$0xf]
  %v122 = vld [vmem:[%s1 + $0x19c] sm:$0xf]
  %v123 = vld [vmem:[%s1 + $0x1a0] sm:$0xf]
  %v124 = vld [vmem:[%s1 + $0x1a4] sm:$0xf]
  %v125 = vld [vmem:[%s1 + $0x1a8] sm:$0xf]
  %v126 = vld [vmem:[%s1 + $0x1ac] sm:$0xf]
  %v127 = vld [vmem:[%s1 + $0x1b0] sm:$0xf]
  %v128 = vld [vmem:[%s1 + $0x1b4] sm:$0xf]
  %v129 = vld [vmem:[%s1 + $0x1b8] sm:$0xf]
  %v130 = vld [vmem:[%s1 + $0x1bc] sm:$0xf]
  %v131 = vld [vmem:[%s1 + $0x1c0] sm:$0xf]
  %v132 = vld [vmem:[%s1 + $0x1c4] sm:$0xf]
  %v133 = vld [vmem:[%s1 + $0x1c8] sm:$0xf]
  %v134 = vld [vmem:[%s1 + $0x1cc] sm:$0xf]
  %v135 = vld [vmem:[%s1 + $0x1d0] sm:$0xf]
  %v136 = vld [vmem:[%s1 + $0x1d4] sm:$0xf]
  %v137 = vld [vmem:[%s1 + $0x1d8] sm:$0xf]
  %v138 = vld [vmem:[%s1 + $0x1dc] sm:$0xf]
  %v139 = vld [vmem:[%s1 + $0x1e0] sm:$0xf]
  %v140 = vld [vmem:[%s1 + $0x1e4] sm:$0xf]
  %v141 = vld [vmem:[%s1 + $0x1e8] sm:$0xf]
  %v142 = vld [vmem:[%s1 + $0x1ec] sm:$0xf]
  %v143 = vld [vmem:[%s1 + $0x1f0] sm:$0xf]
  %v144 = vld [vmem:[%s1 + $0x1f4] sm:$0xf]
  %v145 = vld [vmem:[%s1 + $0x1f8] sm:$0xf]
  %v146 = vld [vmem:[%s1 + $0x1fc] sm:$0xf]
  %v147 = vld [vmem:[%s1 + $0x200] sm:$0xf]
  %v148 = vld [vmem:[%s1 + $0x204] sm:$0xf]
  %v149 = vld [vmem:[%s1 + $0x208] sm:$0xf]
  %v150 = vld [vmem:[%s1 + $0x20c] sm:$0xf]
  %v151 = vld [vmem:[%s1 + $0x210] sm:$0xf]
  %v152 = vld [vmem:[%s1 + $0x214] sm:$0xf]
  %v153 = vld [vmem:[%s1 + $0x218] sm:$0xf]
  %v154 = vld [vmem:[%s1 + $0x21c] sm:$0xf]
  %v155 = vld [vmem:[%s1 + $0x220] sm:$0xf]
  %v156 = vld [vmem:[%s1 + $0x224] sm:$0xf]
  %v157 = vld [vmem:[%s1 + $0x228] sm:$0xf]
  %v158 = vld [vmem:[%s1 + $0x22c] sm:$0xf]
  %v159 = vld [vmem:[%s1 + $0x230] sm:$0xf]
  %v160 = vld [vmem:[%s1 + $0x234] sm:$0xf]
  %v161 = vld [vmem:[%s1 + $0x238] sm:$0xf]
  %v162 = vld [vmem:[%s1 + $0x23c] sm:$0xf]
  %v163 = vld [vmem:[%s1 + $0x240] sm:$0xf]
  %v164 = vld [vmem:[%s1 + $0x244] sm:$0xf]
  %v165 = vld [vmem:[%s1 + $0x248] sm:$0xf]
  %v166 = vld [vmem:[%s1 + $0x24c] sm:$0xf]
  %v167 = vld [vmem:[%s1 + $0x250] sm:$0xf]
  %v168 = vld [vmem:[%s1 + $0x254] sm:$0xf]
  %v169 = vld [vmem:[%s1 + $0x258] sm:$0xf]
  %v170 = vld [vmem:[%s1 + $0x25c] sm:$0xf]
  %v171 = vld [vmem:[%s1 + $0x260] sm:$0xf]
  %v172 = vld [vmem:[%s1 + $0x264] sm:$0xf]
  %v173 = vld [vmem:[%s1 + $0x268] sm:$0xf]
  %v174 = vld [vmem:[%s1 + $0x26c] sm:$0xf]
  %v175 = vld [vmem:[%s1 + $0x270] sm:$0xf]
  %v176 = vld [vmem:[%s1 + $0x274] sm:$0xf]
  %v177 = vld [vmem:[%s1 + $0x278] sm:$0xf]
  %v178 = vld [vmem:[%s1 + $0x27c] sm:$0xf]
  %v179 = vld [vmem:[%s1 + $0x280] sm:$0xf]
  %v180 = vld [vmem:[%s1 + $0x284] sm:$0xf]
  %v181 = vld [vmem:[%s1 + $0x288] sm:$0xf]
  %v182 = vld [vmem:[%s1 + $0x28c] sm:$0xf]
  %v183 = vld [vmem:[%s1 + $0x290] sm:$0xf]
  %v184 = vld [vmem:[%s1 + $0x294] sm:$0xf]
  %v185 = vld [vmem:[%s1 + $0x298] sm:$0xf]
  %v186 = vld [vmem:[%s1 + $0x29c] sm:$0xf]
  %v187 = vld [vmem:[%s1 + $0x2a0] sm:$0xf]
  %v188 = vld [vmem:[%s1 + $0x2a4] sm:$0xf]
  %v189 = vld [vmem:[%s1 + $0x2a8] sm:$0xf]
  %v190 = vld [vmem:[%s1 + $0x2ac] sm:$0xf]
  %v191 = vld [vmem:[%s1 + $0x2b0] sm:$0xf]
  %v192 = vld [vmem:[%s1 + $0x2b4] sm:$0xf]
  %v193 = vld [vmem:[%s1 + $0x2b8] sm:$0xf]
  %v194 = vld [vmem:[%s1 + $0x2bc] sm:$0xf]
  %v195 = vld [vmem:[%s1 + $0x2c0] sm:$0xf]
  %v196 = vld [vmem:[%s1 + $0x2c4] sm:$0xf]
  %v197 = vld [vmem:[%s1 + $0x2c8] sm:$0xf]
  %v198 = vld [vmem:[%s1 + $0x2cc] sm:$0xf]
  %v199 = vld [vmem:[%s1 + $0x2d0] sm:$0xf]
  %v200 = vld [vmem:[%s1 + $0x2d4] sm:$0xf]
  %v201 = vld [vmem:[%s1 + $0x2d8] sm:$0xf]
  %v202 = vld [vmem:[%s1 + $0x2dc] sm:$0xf]
  %v203 = vld [vmem:[%s1 + $0x2e0] sm:$0xf]
  %v204 = vld [vmem:[%s1 + $0x2e4] sm:$0xf]
  %v205 = vld [vmem:[%s1 + $0x2e8] sm:$0xf]
  %v206 = vld [vmem:[%s1 + $0x2ec] sm:$0xf]
  %v207 = vld [vmem:[%s1 + $0x2f0] sm:$0xf]
  %v208 = vld [vmem:[%s1 + $0x2f4] sm:$0xf]
  %v209 = vld [vmem:[%s1 + $0x2f8] sm:$0xf]
  %v210 = vld [vmem:[%s1 + $0x2fc] sm:$0xf]
  %v211 = vld [vmem:[%s1 + $0x300] sm:$0xf]
  %v212 = vld [vmem:[%s1 + $0x304] sm:$0xf]
  %v213 = vld [vmem:[%s1 + $0x308] sm:$0xf]
  %v214 = vld [vmem:[%s1 + $0x30c] sm:$0xf]
  %v215 = vld [vmem:[%s1 + $0x310] sm:$0xf]
  %v216 = vld [vmem:[%s1 + $0x314] sm:$0xf]
  %v217 = vld [vmem:[%s1 + $0x318] sm:$0xf]
  %v218 = vld [vmem:[%s1 + $0x31c] sm:$0xf]
  %v219 = vld [vmem:[%s1 + $0x320] sm:$0xf]
  %v220 = vld [vmem:[%s1 + $0x324] sm:$0xf]
  %v221 = vld [vmem:[%s1 + $0x328] sm:$0xf]
  %v222 = vld [vmem:[%s1 + $0x32c] sm:$0xf]
  %v223 = vld [vmem:[%s1 + $0x330] sm:$0xf]
  %v224 = vld [vmem:[%s1 + $0x334] sm:$0xf]
  %v225 = vld [vmem:[%s1 + $0x338] sm:$0xf]
  %v226 = vld [vmem:[%s1 + $0x33c] sm:$0xf]
  %v227 = vld [vmem:[%s1 + $0x340] sm:$0xf]
  %v228 = vld [vmem:[%s1 + $0x344] sm:$0xf]
  %v229 = vld [vmem:[%s1 + $0x348] sm:$0xf]
  %v230 = vld [vmem:[%s1 + $0x34c] sm:$0xf]
  %v231 = vld [vmem:[%s1 + $0x350] sm:$0xf]
  %v232 = vld [vmem:[%s1 + $0x354] sm:$0xf]
  %v233 = vld [vmem:[%s1 + $0x358] sm:$0xf]
  %v234 = vld [vmem:[%s1 + $0x35c] sm:$0xf]
  %v235 = vld [vmem:[%s1 + $0x360] sm:$0xf]
  %v236 = vld [vmem:[%s1 + $0x364] sm:$0xf]
  %v237 = vld [vmem:[%s1 + $0x368] sm:$0xf]
  %v238 = vld [vmem:[%s1 + $0x36c] sm:$0xf]
  %v239 = vld [vmem:[%s1 + $0x370] sm:$0xf]
  %v240 = vld [vmem:[%s1 + $0x374] sm:$0xf]
  %v241 = vld [vmem:[%s1 + $0x378] sm:$0xf]
  %v242 = vld [vmem:[%s1 + $0x37c] sm:$0xf]
  %v243 = vld [vmem:[%s1 + $0x380] sm:$0xf]
  %v244 = vld [vmem:[%s1 + $0x384] sm:$0xf]
  %v245 = vld [vmem:[%s1 + $0x388] sm:$0xf]
  %v246 = vld [vmem:[%s1 + $0x38c] sm:$0xf]
  %v247 = vld [vmem:[%s1 + $0x390] sm:$0xf]
  %v248 = vld [vmem:[%s1 + $0x394] sm:$0xf]
  %v249 = vld [vmem:[%s1 + $0x398] sm:$0xf]
  %v250 = vld [vmem:[%s1 + $0x39c] sm:$0xf]
  %v251 = vld [vmem:[%s1 + $0x3a0] sm:$0xf]
  %v252 = vld [vmem:[%s1 + $0x3a4] sm:$0xf]
  %v253 = vld [vmem:[%s1 + $0x3a8] sm:$0xf]
  %v254 = vld [vmem:[%s1 + $0x3ac] sm:$0xf]
  %v255 = vld [vmem:[%s1 + $0x3b0] sm:$0xf]
  %v256 = vld [vmem:[%s1 + $0x3b4] sm:$0xf]
  %v257 = vld [vmem:[%s1 + $0x3b8] sm:$0xf]
  %v258 = vld [vmem:[%s1 + $0x3bc] sm:$0xf]
  %v259 = vld [vmem:[%s1 + $0x3c0] sm:$0xf]
  %v260 = vld [vmem:[%s1 + $0x3c4] sm:$0xf]
  %v261 = vld [vmem:[%s1 + $0x3c8] sm:$0xf]
  %v262 = vld [vmem:[%s1 + $0x3cc] sm:$0xf]
  %v263 = vld [vmem:[%s1 + $0x3d0] sm:$0xf]
  %v264 = vld [vmem:[%s1 + $0x3d4] sm:$0xf]
  %v265 = vld [vmem:[%s1 + $0x3d8] sm:$0xf]
  %v266 = vld [vmem:[%s1 + $0x3dc] sm:$0xf]
  %v267 = vld [vmem:[%s1 + $0x3e0] sm:$0xf]
  %v268 = vld [vmem:[%s1 + $0x3e4] sm:$0xf]
  %v269 = vld [vmem:[%s1 + $0x3e8] sm:$0xf]
  %v270 = vld [vmem:[%s1 + $0x3ec] sm:$0xf]
  %v271 = vld [vmem:[%s1 + $0x3f0] sm:$0xf]
  %v272 = vld [vmem:[%s1 + $0x3f4] sm:$0xf]
  %v273 = vld [vmem:[%s1 + $0x3f8] sm:$0xf]
  %v274 = vld [vmem:[%s1 + $0x3fc] sm:$0xf]
  %v275 = vld [vmem:[%s1 + $0x400] sm:$0xf]
  %v276 = vld [vmem:[%s1 + $0x404] sm:$0xf]
  %v277 = vld [vmem:[%s1 + $0x408] sm:$0xf]
  %v278 = vld [vmem:[%s1 + $0x40c] sm:$0xf]
  %v279 = vld [vmem:[%s1 + $0x410] sm:$0xf]
  %v280 = vld [vmem:[%s1 + $0x414] sm:$0xf]
  %v281 = vld [vmem:[%s1 + $0x418] sm:$0xf]
  %v282 = vld [vmem:[%s1 + $0x41c] sm:$0xf]
  %v283 = vld [vmem:[%s1 + $0x420] sm:$0xf]
  %v284 = vld [vmem:[%s1 + $0x424] sm:$0xf]
  %v285 = vld [vmem:[%s1 + $0x428] sm:$0xf]
  %v286 = vld [vmem:[%s1 + $0x42c] sm:$0xf]
  %v287 = vld [vmem:[%s1 + $0x430] sm:$0xf]
  %v288 = vld [vmem:[%s1 + $0x434] sm:$0xf]
  %v289 = vld [vmem:[%s1 + $0x438] sm:$0xf]
  %v290 = vld [vmem:[%s1 + $0x43c] sm:$0xf]
  %v291 = vld [vmem:[%s1 + $0x440] sm:$0xf]
  %v292 = vld [vmem:[%s1 + $0x444] sm:$0xf]
  %v293 = vld [vmem:[%s1 + $0x448] sm:$0xf]
  %v294 = vld [vmem:[%s1 + $0x44c] sm:$0xf]
  %v295 = vld [vmem:[%s1 + $0x450] sm:$0xf]
  %v296 = vld [vmem:[%s1 + $0x454] sm:$0xf]
  %v297 = vld [vmem:[%s1 + $0x458] sm:$0xf]
  %v298 = vld [vmem:[%s1 + $0x45c] sm:$0xf]
  %v299 = vld [vmem:[%s1 + $0x460] sm:$0xf]
  %v300 = vld [vmem:[%s1 + $0x464] sm:$0xf]
  %v301 = vld [vmem:[%s1 + $0x468] sm:$0xf]
  %v302 = vld [vmem:[%s1 + $0x46c] sm:$0xf]
  %v303 = vld [vmem:[%s1 + $0x470] sm:$0xf]
  %v304 = vld [vmem:[%s1 + $0x474] sm:$0xf]
  %v305 = vld [vmem:[%s1 + $0x478] sm:$0xf]
  %v306 = vld [vmem:[%s1 + $0x47c] sm:$0xf]
  %v307 = vld [vmem:[%s1 + $0x480] sm:$0xf]
  %v308 = vld [vmem:[%s1 + $0x484] sm:$0xf]
  %v309 = vld [vmem:[%s1 + $0x488] sm:$0xf]
  %v310 = vld [vmem:[%s1 + $0x48c] sm:$0xf]
  %v311 = vld [vmem:[%s1 + $0x490] sm:$0xf]
  %v312 = vld [vmem:[%s1 + $0x494] sm:$0xf]
  %v313 = vld [vmem:[%s1 + $0x498] sm:$0xf]
  %v314 = vld [vmem:[%s1 + $0x49c] sm:$0xf]
  %v315 = vld [vmem:[%s1 + $0x4a0] sm:$0xf]
  %v316 = vld [vmem:[%s1 + $0x4a4] sm:$0xf]
  %v317 = vld [vmem:[%s1 + $0x4a8] sm:$0xf]
  %v318 = vld [vmem:[%s1 + $0x4ac] sm:$0xf]
  %v319 = vld [vmem:[%s1 + $0x4b0] sm:$0xf]
  %v320 = vld [vmem:[%s1 + $0x4b4] sm:$0xf]
  %v321 = vld [vmem:[%s1 + $0x4b8] sm:$0xf]
  %v322 = vld [vmem:[%s1 + $0x4bc] sm:$0xf]
  %v323 = vld [vmem:[%s1 + $0x4c0] sm:$0xf]
  %v324 = vld [vmem:[%s1 + $0x4c4] sm:$0xf]
  %v325 = vld [vmem:[%s1 + $0x4c8] sm:$0xf]
  %v326 = vld [vmem:[%s1 + $0x4cc] sm:$0xf]
  %v327 = vld [vmem:[%s1 + $0x4d0] sm:$0xf]
  %v328 = vld [vmem:[%s1 + $0x4d4] sm:$0xf]
  %v329 = vld [vmem:[%s1 + $0x4d8] sm:$0xf]
  %v330 = vld [vmem:[%s1 + $0x4dc] sm:$0xf]
  %v331 = vld [vmem:[%s1 + $0x4e0] sm:$0xf]
  %v332 = vld [vmem:[%s1 + $0x4e4] sm:$0xf]
  %v333 = vld [vmem:[%s1 + $0x4e8] sm:$0xf]
  %v334 = vld [vmem:[%s1 + $0x4ec] sm:$0xf]
  %v335 = vld [vmem:[%s1 + $0x4f0] sm:$0xf]
  %v336 = vld [vmem:[%s1 + $0x4f4] sm:$0xf]
  %v337 = vld [vmem:[%s1 + $0x4f8] sm:$0xf]
  %v338 = vld [vmem:[%s1 + $0x4fc] sm:$0xf]
  %v339 = vld [vmem:[%s1 + $0x500] sm:$0xf]
  %v340 = vld [vmem:[%s1 + $0x504] sm:$0xf]
  %v341 = vld [vmem:[%s1 + $0x508] sm:$0xf]
  %v342 = vld [vmem:[%s1 + $0x50c] sm:$0xf]
  %v343 = vld [vmem:[%s1 + $0x510] sm:$0xf]
  %v344 = vld [vmem:[%s1 + $0x514] sm:$0xf]
  %v345 = vld [vmem:[%s1 + $0x518] sm:$0xf]
  %v346 = vld [vmem:[%s1 + $0x51c] sm:$0xf]
  %v347 = vld [vmem:[%s1 + $0x520] sm:$0xf]
  %v348 = vld [vmem:[%s1 + $0x524] sm:$0xf]
  %v349 = vld [vmem:[%s1 + $0x528] sm:$0xf]
  %v350 = vld [vmem:[%s1 + $0x52c] sm:$0xf]
  %v351 = vld [vmem:[%s1 + $0x530] sm:$0xf]
  %v352 = vld [vmem:[%s1 + $0x534] sm:$0xf]
  %v353 = vld [vmem:[%s1 + $0x538] sm:$0xf]
  %v354 = vld [vmem:[%s1 + $0x53c] sm:$0xf]
  %v355 = vld [vmem:[%s1 + $0x540] sm:$0xf]
  %v356 = vld [vmem:[%s1 + $0x544] sm:$0xf]
  %v357 = vld [vmem:[%s1 + $0x548] sm:$0xf]
  %v358 = vld [vmem:[%s1 + $0x54c] sm:$0xf]
  %v359 = vld [vmem:[%s1 + $0x550] sm:$0xf]
  %v360 = vld [vmem:[%s1 + $0x554] sm:$0xf]
  %v361 = vld [vmem:[%s1 + $0x558] sm:$0xf]
  %v362 = vld [vmem:[%s1 + $0x55c] sm:$0xf]
  %v363 = vld [vmem:[%s1 + $0x560] sm:$0xf]
  %v364 = vld [vmem:[%s1 + $0x564] sm:$0xf]
  %v365 = vld [vmem:[%s1 + $0x568] sm:$0xf]
  %v366 = vld [vmem:[%s1 + $0x56c] sm:$0xf]
  %v367 = vld [vmem:[%s1 + $0x570] sm:$0xf]
  %v368 = vld [vmem:[%s1 + $0x574] sm:$0xf]
  %v369 = vld [vmem:[%s1 + $0x578] sm:$0xf]
  %v370 = vld [vmem:[%s1 + $0x57c] sm:$0xf]
  %v371 = vld [vmem:[%s1 + $0x580] sm:$0xf]
  %v372 = vld [vmem:[%s1 + $0x584] sm:$0xf]
  %v373 = vld [vmem:[%s1 + $0x588] sm:$0xf]
  %v374 = vld [vmem:[%s1 + $0x58c] sm:$0xf]
  %v375 = vld [vmem:[%s1 + $0x590] sm:$0xf]
  %v376 = vld [vmem:[%s1 + $0x594] sm:$0xf]
  %v377 = vld [vmem:[%s1 + $0x598] sm:$0xf]
  %v378 = vld [vmem:[%s1 + $0x59c] sm:$0xf]
  %v379 = vld [vmem:[%s1 + $0x5a0] sm:$0xf]
  %v380 = vld [vmem:[%s1 + $0x5a4] sm:$0xf]
  %v381 = vld [vmem:[%s1 + $0x5a8] sm:$0xf]
  %v382 = vld [vmem:[%s1 + $0x5ac] sm:$0xf]
  %v383 = vld [vmem:[%s1 + $0x5b0] sm:$0xf]
  %v384 = vld [vmem:[%s1 + $0x5b4] sm:$0xf]
  %v385 = vld [vmem:[%s1 + $0x5b8] sm:$0xf]
  %v386 = vld [vmem:[%s1 + $0x5bc] sm:$0xf]
  %v387 = vld [vmem:[%s1 + $0x5c0] sm:$0xf]
  %v388 = vld [vmem:[%s1 + $0x5c4] sm:$0xf]
  %v389 = vld [vmem:[%s1 + $0x5c8] sm:$0xf]
  %v390 = vld [vmem:[%s1 + $0x5cc] sm:$0xf]
  %v391 = vld [vmem:[%s1 + $0x5d0] sm:$0xf]
  %v392 = vld [vmem:[%s1 + $0x5d4] sm:$0xf]
  %v393 = vld [vmem:[%s1 + $0x5d8] sm:$0xf]
  %v394 = vld [vmem:[%s1 + $0x5dc] sm:$0xf]
  %v395 = vld [vmem:[%s1 + $0x5e0] sm:$0xf]
  %v396 = vld [vmem:[%s1 + $0x5e4] sm:$0xf]
  %v397 = vld [vmem:[%s1 + $0x5e8] sm:$0xf]
  %v398 = vld [vmem:[%s1 + $0x5ec] sm:$0xf]
  %v399 = vld [vmem:[%s1 + $0x5f0] sm:$0xf]
  %v400 = vld [vmem:[%s1 + $0x5f4] sm:$0xf]
  %v401 = vld [vmem:[%s1 + $0x5f8] sm:$0xf]
  %v402 = vld [vmem:[%s1 + $0x5fc] sm:$0xf]
  %v403 = vld [vmem:[%s1 + $0x600] sm:$0xf]
  %v404 = vld [vmem:[%s1 + $0x604] sm:$0xf]
  %v405 = vld [vmem:[%s1 + $0x608] sm:$0xf]
  %v406 = vld [vmem:[%s1 + $0x60c] sm:$0xf]
  %v407 = vld [vmem:[%s1 + $0x610] sm:$0xf]
  %v408 = vld [vmem:[%s1 + $0x614] sm:$0xf]
  %v409 = vld [vmem:[%s1 + $0x618] sm:$0xf]
  %v410 = vld [vmem:[%s1 + $0x61c] sm:$0xf]
  %v411 = vld [vmem:[%s2] sm:$0x1]
  %v413 = vlaneseq
  %v414 = vshrl.u32 %v413, 7
  %v415 = vsub.s32 0, %v414
  %v416 = vrot.slane %v411, %v415
  %v422 = vcombine.high %v15, %v15
  %v424 = vunpack.c.l.s4 1966171168
  %v425 = vunpack.c.0.s8 %v424
  %v426 = vlaneseq
  %v427 = vshrl.u32 %v426, 7
  %v428 = vsub.s32 %v425, %v427
  %v429 = vrot.slane %v15, %v428
  %v431 = vunpack.c.l.s4 1966171168
  %v432 = vunpack.c.0.s8 %v431
  %v433 = vlaneseq
  %v434 = vshrl.u32 %v433, 7
  %v435 = vsub.s32 %v432, %v434
  %v436 = vrot.slane %v422, %v435
  %v437 = vcombine.high %v429, %v429
  %v438 = vcombine.high %v436, %v436
  %v440 = vunpack.c.l.s4 1966171168
  %v441 = vunpack.c.0.s8 %v440
  %v442 = vlaneseq
  %v443 = vshrl.u32 %v442, 7
  %v444 = vsub.s32 %v441, %v443
  %v445 = vrot.slane %v429, %v444
  %v447 = vunpack.c.l.s4 1966171168
  %v448 = vunpack.c.0.s8 %v447
  %v449 = vlaneseq
  %v450 = vshrl.u32 %v449, 7
  %v451 = vsub.s32 %v448, %v450
  %v452 = vrot.slane %v436, %v451
  %v454 = vunpack.c.l.s4 1966171168
  %v455 = vunpack.c.0.s8 %v454
  %v456 = vlaneseq
  %v457 = vshrl.u32 %v456, 7
  %v458 = vsub.s32 %v455, %v457
  %v459 = vrot.slane %v437, %v458
  %v461 = vunpack.c.l.s4 1966171168
  %v462 = vunpack.c.0.s8 %v461
  %v463 = vlaneseq
  %v464 = vshrl.u32 %v463, 7
  %v465 = vsub.s32 %v462, %v464
  %v466 = vrot.slane %v438, %v465
  %v467 = vcombine.high %v445, %v445
  %v468 = vcombine.high %v452, %v452
  %v469 = vcombine.high %v459, %v459
  %v470 = vcombine.high %v466, %v466
  %v471 = vcombine.high %v16, %v16
  %v473 = vunpack.c.l.s4 1966171168
  %v474 = vunpack.c.0.s8 %v473
  %v475 = vlaneseq
  %v476 = vshrl.u32 %v475, 7
  %v477 = vsub.s32 %v474, %v476
  %v478 = vrot.slane %v16, %v477
  %v480 = vunpack.c.l.s4 1966171168
  %v481 = vunpack.c.0.s8 %v480
  %v482 = vlaneseq
  %v483 = vshrl.u32 %v482, 7
  %v484 = vsub.s32 %v481, %v483
  %v485 = vrot.slane %v471, %v484
  %v486 = vcombine.high %v478, %v478
  %v487 = vcombine.high %v485, %v485
  %v489 = vunpack.c.l.s4 1966171168
  %v490 = vunpack.c.0.s8 %v489
  %v491 = vlaneseq
  %v492 = vshrl.u32 %v491, 7
  %v493 = vsub.s32 %v490, %v492
  %v494 = vrot.slane %v478, %v493
  %v496 = vunpack.c.l.s4 1966171168
  %v497 = vunpack.c.0.s8 %v496
  %v498 = vlaneseq
  %v499 = vshrl.u32 %v498, 7
  %v500 = vsub.s32 %v497, %v499
  %v501 = vrot.slane %v485, %v500
  %v503 = vunpack.c.l.s4 1966171168
  %v504 = vunpack.c.0.s8 %v503
  %v505 = vlaneseq
  %v506 = vshrl.u32 %v505, 7
  %v507 = vsub.s32 %v504, %v506
  %v508 = vrot.slane %v486, %v507
  %v510 = vunpack.c.l.s4 1966171168
  %v511 = vunpack.c.0.s8 %v510
  %v512 = vlaneseq
  %v513 = vshrl.u32 %v512, 7
  %v514 = vsub.s32 %v511, %v513
  %v515 = vrot.slane %v487, %v514
  %v516 = vcombine.high %v494, %v494
  %v517 = vcombine.high %v501, %v501
  %v518 = vcombine.high %v508, %v508
  %v519 = vcombine.high %v515, %v515
  %v520 = vcombine.high %v17, %v17
  %v522 = vunpack.c.l.s4 1966171168
  %v523 = vunpack.c.0.s8 %v522
  %v524 = vlaneseq
  %v525 = vshrl.u32 %v524, 7
  %v526 = vsub.s32 %v523, %v525
  %v527 = vrot.slane %v17, %v526
  %v529 = vunpack.c.l.s4 1966171168
  %v530 = vunpack.c.0.s8 %v529
  %v531 = vlaneseq
  %v532 = vshrl.u32 %v531, 7
  %v533 = vsub.s32 %v530, %v532
  %v534 = vrot.slane %v520, %v533
  %v535 = vcombine.high %v527, %v527
  %v536 = vcombine.high %v534, %v534
  %v538 = vunpack.c.l.s4 1966171168
  %v539 = vunpack.c.0.s8 %v538
  %v540 = vlaneseq
  %v541 = vshrl.u32 %v540, 7
  %v542 = vsub.s32 %v539, %v541
  %v543 = vrot.slane %v527, %v542
  %v545 = vunpack.c.l.s4 1966171168
  %v546 = vunpack.c.0.s8 %v545
  %v547 = vlaneseq
  %v548 = vshrl.u32 %v547, 7
  %v549 = vsub.s32 %v546, %v548
  %v550 = vrot.slane %v534, %v549
  %v552 = vunpack.c.l.s4 1966171168
  %v553 = vunpack.c.0.s8 %v552
  %v554 = vlaneseq
  %v555 = vshrl.u32 %v554, 7
  %v556 = vsub.s32 %v553, %v555
  %v557 = vrot.slane %v535, %v556
  %v559 = vunpack.c.l.s4 1966171168
  %v560 = vunpack.c.0.s8 %v559
  %v561 = vlaneseq
  %v562 = vshrl.u32 %v561, 7
  %v563 = vsub.s32 %v560, %v562
  %v564 = vrot.slane %v536, %v563
  %v565 = vcombine.high %v543, %v543
  %v566 = vcombine.high %v550, %v550
  %v567 = vcombine.high %v557, %v557
  %v568 = vcombine.high %v564, %v564
  %v570 = vunpack.c.l.s4 1966171168
  %v571 = vunpack.c.0.s8 %v570
  %v572 = vlaneseq
  %v573 = vshrl.u32 %v572, 7
  %v574 = vsub.s32 %v571, %v573
  %v575 = vrot.slane %v18, %v574
  %v577 = vunpack.c.l.s4 1966171168
  %v578 = vunpack.c.0.s8 %v577
  %v579 = vlaneseq
  %v580 = vshrl.u32 %v579, 7
  %v581 = vsub.s32 %v578, %v580
  %v582 = vrot.slane %v575, %v581
  %v999 = vunpack.c.l.b16 %v19
  %v1000 = vunpack.c.l.b16 %v20
  %v1001 = vunpack.c.l.b16 %v21
  %v1002 = vunpack.c.l.b16 %v22
  %v1003 = vunpack.c.l.b16 %v23
  %v1004 = vunpack.c.l.b16 %v24
  %v1005 = vunpack.c.l.b16 %v25
  %v1006 = vunpack.c.l.b16 %v26
  %v1007 = vunpack.c.l.b16 %v27
  %v1008 = vunpack.c.l.b16 %v28
  %v1009 = vunpack.c.l.b16 %v29
  %v1010 = vunpack.c.l.b16 %v30
  %v1011 = vunpack.c.l.b16 %v31
  %v1012 = vunpack.c.l.b16 %v32
  %v1013 = vunpack.c.l.b16 %v33
  %v1014 = vunpack.c.l.b16 %v34
  %v1015 = vunpack.c.l.b16 %v35
  %v1016 = vunpack.c.l.b16 %v36
  %v1017 = vunpack.c.l.b16 %v37
  %v1018 = vunpack.c.l.b16 %v38
  %v1019 = vunpack.c.l.b16 %v39
  %v1020 = vunpack.c.l.b16 %v40
  %v1021 = vunpack.c.l.b16 %v41
  %v1022 = vunpack.c.l.b16 %v42
  %v1023 = vunpack.c.l.b16 %v43
  %v1024 = vunpack.c.l.b16 %v44
  %v1025 = vunpack.c.l.b16 %v45
  %v1026 = vunpack.c.l.b16 %v46
  %v1027 = vunpack.c.l.b16 %v47
  %v1028 = vunpack.c.l.b16 %v48
  %v1029 = vunpack.c.l.b16 %v49
  %v1030 = vunpack.c.l.b16 %v50
  %v1031 = vunpack.c.l.b16 %v51
  %v1032 = vunpack.c.l.b16 %v52
  %v1033 = vunpack.c.l.b16 %v53
  %v1034 = vunpack.c.l.b16 %v54
  %v1035 = vunpack.c.l.b16 %v55
  %v1036 = vunpack.c.l.b16 %v56
  %v1037 = vunpack.c.l.b16 %v57
  %v1038 = vunpack.c.l.b16 %v58
  %v1039 = vunpack.c.l.b16 %v59
  %v1040 = vunpack.c.l.b16 %v60
  %v1041 = vunpack.c.l.b16 %v61
  %v1042 = vunpack.c.l.b16 %v62
  %v1043 = vunpack.c.l.b16 %v63
  %v1044 = vunpack.c.l.b16 %v64
  %v1045 = vunpack.c.l.b16 %v65
  %v1046 = vunpack.c.l.b16 %v66
  %v1047 = vunpack.c.l.b16 %v67
  %v1048 = vunpack.c.l.b16 %v68
  %v1049 = vunpack.c.l.b16 %v69
  %v1050 = vunpack.c.l.b16 %v70
  %v1051 = vunpack.c.l.b16 %v71
  %v1052 = vunpack.c.l.b16 %v72
  %v1053 = vunpack.c.l.b16 %v73
  %v1054 = vunpack.c.l.b16 %v74
  %v1055 = vunpack.c.l.b16 %v75
  %v1056 = vunpack.c.l.b16 %v76
  %v1057 = vunpack.c.l.b16 %v77
  %v1058 = vunpack.c.l.b16 %v78
  %v1059 = vunpack.c.l.b16 %v79
  %v1060 = vunpack.c.l.b16 %v80
  %v1061 = vunpack.c.l.b16 %v81
  %v1062 = vunpack.c.l.b16 %v82
  %v1063 = vunpack.c.l.b16 %v83
  %v1064 = vunpack.c.l.b16 %v84
  %v1065 = vunpack.c.l.b16 %v85
  %v1066 = vunpack.c.l.b16 %v86
  %v1067 = vunpack.c.l.b16 %v87
  %v1068 = vunpack.c.l.b16 %v88
  %v1069 = vunpack.c.l.b16 %v89
  %v1070 = vunpack.c.l.b16 %v90
  %v1071 = vunpack.c.l.b16 %v91
  %v1072 = vunpack.c.l.b16 %v92
  %v1073 = vunpack.c.l.b16 %v93
  %v1074 = vunpack.c.l.b16 %v94
  %v1075 = vunpack.c.l.b16 %v95
  %v1076 = vunpack.c.l.b16 %v96
  %v1077 = vunpack.c.l.b16 %v97
  %v1078 = vunpack.c.l.b16 %v98
  %v1079 = vunpack.c.l.b16 %v99
  %v1080 = vunpack.c.l.b16 %v100
  %v1081 = vunpack.c.l.b16 %v101
  %v1082 = vunpack.c.l.b16 %v102
  %v1083 = vunpack.c.l.b16 %v103
  %v1084 = vunpack.c.l.b16 %v104
  %v1085 = vunpack.c.l.b16 %v105
  %v1086 = vunpack.c.l.b16 %v106
  %v1087 = vunpack.c.l.b16 %v107
  %v1088 = vunpack.c.l.b16 %v108
  %v1089 = vunpack.c.l.b16 %v109
  %v1090 = vunpack.c.l.b16 %v110
  %v1091 = vunpack.c.l.b16 %v111
  %v1092 = vunpack.c.l.b16 %v112
  %v1093 = vunpack.c.l.b16 %v113
  %v1094 = vunpack.c.l.b16 %v114
  %v1095 = vunpack.c.l.b16 %v115
  %v1096 = vunpack.c.l.b16 %v116
  %v1097 = vunpack.c.l.b16 %v117
  %v1098 = vunpack.c.l.b16 %v118
  %v1099 = vunpack.c.l.b16 %v119
  %v1100 = vunpack.c.l.b16 %v120
  %v1101 = vunpack.c.l.b16 %v121
  %v1102 = vunpack.c.l.b16 %v122
  %v1103 = vunpack.c.l.b16 %v123
  %v1104 = vunpack.c.l.b16 %v124
  %v1105 = vunpack.c.l.b16 %v125
  %v1106 = vunpack.c.l.b16 %v126
  %v1107 = vunpack.c.l.b16 %v127
  %v1108 = vunpack.c.l.b16 %v128
  %v1109 = vunpack.c.l.b16 %v129
  %v1110 = vunpack.c.l.b16 %v130
  %v1111 = vunpack.c.l.b16 %v131
  %v1112 = vunpack.c.l.b16 %v132
  %v1113 = vunpack.c.l.b16 %v133
  %v1114 = vunpack.c.l.b16 %v134
  %v1115 = vunpack.c.l.b16 %v135
  %v1116 = vunpack.c.l.b16 %v136
  %v1117 = vunpack.c.l.b16 %v137
  %v1118 = vunpack.c.l.b16 %v138
  %v1119 = vunpack.c.l.b16 %v139
  %v1120 = vunpack.c.l.b16 %v140
  %v1121 = vunpack.c.l.b16 %v141
  %v1122 = vunpack.c.l.b16 %v142
  %v1123 = vunpack.c.l.b16 %v143
  %v1124 = vunpack.c.l.b16 %v144
  %v1125 = vunpack.c.l.b16 %v145
  %v1126 = vunpack.c.l.b16 %v146
  %v1127 = vunpack.c.l.b16 %v147
  %v1128 = vunpack.c.l.b16 %v148
  %v1129 = vunpack.c.l.b16 %v149
  %v1130 = vunpack.c.l.b16 %v150
  %v1131 = vunpack.c.l.b16 %v151
  %v1132 = vunpack.c.l.b16 %v152
  %v1133 = vunpack.c.l.b16 %v153
  %v1134 = vunpack.c.l.b16 %v154
  %v1135 = vunpack.c.l.b16 %v155
  %v1136 = vunpack.c.l.b16 %v156
  %v1137 = vunpack.c.l.b16 %v157
  %v1138 = vunpack.c.l.b16 %v158
  %v1139 = vunpack.c.l.b16 %v159
  %v1140 = vunpack.c.l.b16 %v160
  %v1141 = vunpack.c.l.b16 %v161
  %v1142 = vunpack.c.l.b16 %v162
  %v1143 = vunpack.c.l.b16 %v163
  %v1144 = vunpack.c.l.b16 %v164
  %v1145 = vunpack.c.l.b16 %v165
  %v1146 = vunpack.c.l.b16 %v166
  %v1147 = vunpack.c.l.b16 %v167
  %v1148 = vunpack.c.l.b16 %v168
  %v1149 = vunpack.c.l.b16 %v169
  %v1150 = vunpack.c.l.b16 %v170
  %v1151 = vunpack.c.l.b16 %v171
  %v1152 = vunpack.c.l.b16 %v172
  %v1153 = vunpack.c.l.b16 %v173
  %v1154 = vunpack.c.l.b16 %v174
  %v1155 = vunpack.c.l.b16 %v175
  %v1156 = vunpack.c.l.b16 %v176
  %v1157 = vunpack.c.l.b16 %v177
  %v1158 = vunpack.c.l.b16 %v178
  %v1159 = vunpack.c.l.b16 %v179
  %v1160 = vunpack.c.l.b16 %v180
  %v1161 = vunpack.c.l.b16 %v181
  %v1162 = vunpack.c.l.b16 %v182
  %v1163 = vunpack.c.l.b16 %v183
  %v1164 = vunpack.c.l.b16 %v184
  %v1165 = vunpack.c.l.b16 %v185
  %v1166 = vunpack.c.l.b16 %v186
  %v1167 = vunpack.c.l.b16 %v187
  %v1168 = vunpack.c.l.b16 %v188
  %v1169 = vunpack.c.l.b16 %v189
  %v1170 = vunpack.c.l.b16 %v190
  %v1171 = vunpack.c.l.b16 %v191
  %v1172 = vunpack.c.l.b16 %v192
  %v1173 = vunpack.c.l.b16 %v193
  %v1174 = vunpack.c.l.b16 %v194
  %v1175 = vunpack.c.l.b16 %v195
  %v1176 = vunpack.c.l.b16 %v196
  %v1177 = vunpack.c.l.b16 %v197
  %v1178 = vunpack.c.l.b16 %v198
  %v1179 = vunpack.c.l.b16 %v199
  %v1180 = vunpack.c.l.b16 %v200
  %v1181 = vunpack.c.l.b16 %v201
  %v1182 = vunpack.c.l.b16 %v202
  %v1183 = vunpack.c.l.b16 %v203
  %v1184 = vunpack.c.l.b16 %v204
  %v1185 = vunpack.c.l.b16 %v205
  %v1186 = vunpack.c.l.b16 %v206
  %v1187 = vunpack.c.l.b16 %v207
  %v1188 = vunpack.c.l.b16 %v208
  %v1189 = vunpack.c.l.b16 %v209
  %v1190 = vunpack.c.l.b16 %v210
  %v1191 = vunpack.c.l.b16 %v211
  %v1192 = vunpack.c.l.b16 %v212
  %v1193 = vunpack.c.l.b16 %v213
  %v1194 = vunpack.c.l.b16 %v214
  %v1195 = vunpack.c.l.b16 %v215
  %v1196 = vunpack.c.l.b16 %v216
  %v1197 = vunpack.c.l.b16 %v217
  %v1198 = vunpack.c.l.b16 %v218
  %v1199 = vunpack.c.l.b16 %v219
  %v1200 = vunpack.c.l.b16 %v220
  %v1201 = vunpack.c.l.b16 %v221
  %v1202 = vunpack.c.l.b16 %v222
  %v1203 = vunpack.c.l.b16 %v223
  %v1204 = vunpack.c.l.b16 %v224
  %v1205 = vunpack.c.l.b16 %v225
  %v1206 = vunpack.c.l.b16 %v226
  %v1207 = vunpack.c.l.b16 %v227
  %v1208 = vunpack.c.l.b16 %v228
  %v1209 = vunpack.c.l.b16 %v229
  %v1210 = vunpack.c.l.b16 %v230
  %v1211 = vunpack.c.l.b16 %v231
  %v1212 = vunpack.c.l.b16 %v232
  %v1213 = vunpack.c.l.b16 %v233
  %v1214 = vunpack.c.l.b16 %v234
  %v1215 = vunpack.c.l.b16 %v235
  %v1216 = vunpack.c.l.b16 %v236
  %v1217 = vunpack.c.l.b16 %v237
  %v1218 = vunpack.c.l.b16 %v238
  %v1219 = vunpack.c.l.b16 %v239
  %v1220 = vunpack.c.l.b16 %v240
  %v1221 = vunpack.c.l.b16 %v241
  %v1222 = vunpack.c.l.b16 %v242
  %v1223 = vunpack.c.l.b16 %v243
  %v1224 = vunpack.c.l.b16 %v244
  %v1225 = vunpack.c.l.b16 %v245
  %v1226 = vunpack.c.l.b16 %v246
  %v1227 = vunpack.c.l.b16 %v247
  %v1228 = vunpack.c.l.b16 %v248
  %v1229 = vunpack.c.l.b16 %v249
  %v1230 = vunpack.c.l.b16 %v250
  %v1231 = vunpack.c.l.b16 %v251
  %v1232 = vunpack.c.l.b16 %v252
  %v1233 = vunpack.c.l.b16 %v253
  %v1234 = vunpack.c.l.b16 %v254
  %v1235 = vunpack.c.l.b16 %v255
  %v1236 = vunpack.c.l.b16 %v256
  %v1237 = vunpack.c.l.b16 %v257
  %v1238 = vunpack.c.l.b16 %v258
  %v1239 = vunpack.c.l.b16 %v259
  %v1240 = vunpack.c.l.b16 %v260
  %v1241 = vunpack.c.l.b16 %v261
  %v1242 = vunpack.c.l.b16 %v262
  %v1243 = vunpack.c.l.b16 %v263
  %v1244 = vunpack.c.l.b16 %v264
  %v1245 = vunpack.c.l.b16 %v265
  %v1246 = vunpack.c.l.b16 %v266
  %v1247 = vunpack.c.l.b16 %v267
  %v1248 = vunpack.c.l.b16 %v268
  %v1249 = vunpack.c.l.b16 %v269
  %v1250 = vunpack.c.l.b16 %v270
  %v1251 = vunpack.c.l.b16 %v271
  %v1252 = vunpack.c.l.b16 %v272
  %v1253 = vunpack.c.l.b16 %v273
  %v1254 = vunpack.c.l.b16 %v274
  %v1255 = vunpack.c.l.b16 %v275
  %v1256 = vunpack.c.l.b16 %v276
  %v1257 = vunpack.c.l.b16 %v277
  %v1258 = vunpack.c.l.b16 %v278
  %v1259 = vunpack.c.l.b16 %v279
  %v1260 = vunpack.c.l.b16 %v280
  %v1261 = vunpack.c.l.b16 %v281
  %v1262 = vunpack.c.l.b16 %v282
  %v1263 = vunpack.c.l.b16 %v283
  %v1264 = vunpack.c.l.b16 %v284
  %v1265 = vunpack.c.l.b16 %v285
  %v1266 = vunpack.c.l.b16 %v286
  %v1267 = vunpack.c.l.b16 %v287
  %v1268 = vunpack.c.l.b16 %v288
  %v1269 = vunpack.c.l.b16 %v289
  %v1270 = vunpack.c.l.b16 %v290
  %v1271 = vunpack.c.l.b16 %v291
  %v1272 = vunpack.c.l.b16 %v292
  %v1273 = vunpack.c.l.b16 %v293
  %v1274 = vunpack.c.l.b16 %v294
  %v1275 = vunpack.c.l.b16 %v295
  %v1276 = vunpack.c.l.b16 %v296
  %v1277 = vunpack.c.l.b16 %v297
  %v1278 = vunpack.c.l.b16 %v298
  %v1279 = vunpack.c.l.b16 %v299
  %v1280 = vunpack.c.l.b16 %v300
  %v1281 = vunpack.c.l.b16 %v301
  %v1282 = vunpack.c.l.b16 %v302
  %v1283 = vunpack.c.l.b16 %v303
  %v1284 = vunpack.c.l.b16 %v304
  %v1285 = vunpack.c.l.b16 %v305
  %v1286 = vunpack.c.l.b16 %v306
  %v1287 = vunpack.c.l.b16 %v307
  %v1288 = vunpack.c.l.b16 %v308
  %v1289 = vunpack.c.l.b16 %v309
  %v1290 = vunpack.c.l.b16 %v310
  %v1291 = vunpack.c.l.b16 %v311
  %v1292 = vunpack.c.l.b16 %v312
  %v1293 = vunpack.c.l.b16 %v313
  %v1294 = vunpack.c.l.b16 %v314
  %v1295 = vunpack.c.l.b16 %v315
  %v1296 = vunpack.c.l.b16 %v316
  %v1297 = vunpack.c.l.b16 %v317
  %v1298 = vunpack.c.l.b16 %v318
  %v1299 = vunpack.c.l.b16 %v319
  %v1300 = vunpack.c.l.b16 %v320
  %v1301 = vunpack.c.l.b16 %v321
  %v1302 = vunpack.c.l.b16 %v322
  %v1303 = vunpack.c.l.b16 %v323
  %v1304 = vunpack.c.l.b16 %v324
  %v1305 = vunpack.c.l.b16 %v325
  %v1306 = vunpack.c.l.b16 %v326
  %v1307 = vunpack.c.l.b16 %v327
  %v1308 = vunpack.c.l.b16 %v328
  %v1309 = vunpack.c.l.b16 %v329
  %v1310 = vunpack.c.l.b16 %v330
  %v1311 = vunpack.c.l.b16 %v331
  %v1312 = vunpack.c.l.b16 %v332
  %v1313 = vunpack.c.l.b16 %v333
  %v1314 = vunpack.c.l.b16 %v334
  %v1315 = vunpack.c.l.b16 %v335
  %v1316 = vunpack.c.l.b16 %v336
  %v1317 = vunpack.c.l.b16 %v337
  %v1318 = vunpack.c.l.b16 %v338
  %v1319 = vunpack.c.l.b16 %v339
  %v1320 = vunpack.c.l.b16 %v340
  %v1321 = vunpack.c.l.b16 %v341
  %v1322 = vunpack.c.l.b16 %v342
  %v1323 = vunpack.c.l.b16 %v343
  %v1324 = vunpack.c.l.b16 %v344
  %v1325 = vunpack.c.l.b16 %v345
  %v1326 = vunpack.c.l.b16 %v346
  %v1327 = vunpack.c.l.b16 %v347
  %v1328 = vunpack.c.l.b16 %v348
  %v1329 = vunpack.c.l.b16 %v349
  %v1330 = vunpack.c.l.b16 %v350
  %v1331 = vunpack.c.l.b16 %v351
  %v1332 = vunpack.c.l.b16 %v352
  %v1333 = vunpack.c.l.b16 %v353
  %v1334 = vunpack.c.l.b16 %v354
  %v1335 = vunpack.c.l.b16 %v355
  %v1336 = vunpack.c.l.b16 %v356
  %v1337 = vunpack.c.l.b16 %v357
  %v1338 = vunpack.c.l.b16 %v358
  %v1339 = vunpack.c.l.b16 %v359
  %v1340 = vunpack.c.l.b16 %v360
  %v1341 = vunpack.c.l.b16 %v361
  %v1342 = vunpack.c.l.b16 %v362
  %v1343 = vunpack.c.l.b16 %v363
  %v1344 = vunpack.c.l.b16 %v364
  %v1345 = vunpack.c.l.b16 %v365
  %v1346 = vunpack.c.l.b16 %v366
  %v1347 = vunpack.c.l.b16 %v367
  %v1348 = vunpack.c.l.b16 %v368
  %v1349 = vunpack.c.l.b16 %v369
  %v1350 = vunpack.c.l.b16 %v370
  %v1351 = vunpack.c.l.b16 %v371
  %v1352 = vunpack.c.l.b16 %v372
  %v1353 = vunpack.c.l.b16 %v373
  %v1354 = vunpack.c.l.b16 %v374
  %v1355 = vunpack.c.l.b16 %v375
  %v1356 = vunpack.c.l.b16 %v376
  %v1357 = vunpack.c.l.b16 %v377
  %v1358 = vunpack.c.l.b16 %v378
  %v1359 = vunpack.c.l.b16 %v379
  %v1360 = vunpack.c.l.b16 %v380
  %v1361 = vunpack.c.l.b16 %v381
  %v1362 = vunpack.c.l.b16 %v382
  %v1363 = vunpack.c.l.b16 %v383
  %v1364 = vunpack.c.l.b16 %v384
  %v1365 = vunpack.c.l.b16 %v385
  %v1366 = vunpack.c.l.b16 %v386
  %v1367 = vunpack.c.l.b16 %v387
  %v1368 = vunpack.c.l.b16 %v388
  %v1369 = vunpack.c.l.b16 %v389
  %v1370 = vunpack.c.l.b16 %v390
  %v1371 = vunpack.c.l.b16 %v391
  %v1372 = vunpack.c.l.b16 %v392
  %v1373 = vunpack.c.l.b16 %v393
  %v1374 = vunpack.c.l.b16 %v394
  %v1375 = vunpack.c.l.b16 %v395
  %v1376 = vunpack.c.l.b16 %v396
  %v1377 = vunpack.c.l.b16 %v397
  %v1378 = vunpack.c.l.b16 %v398
  %v1379 = vunpack.c.l.b16 %v399
  %v1380 = vunpack.c.l.b16 %v400
  %v1381 = vunpack.c.l.b16 %v401
  %v1382 = vunpack.c.l.b16 %v402
  %v1383 = vunpack.c.l.b16 %v403
  %v1384 = vunpack.c.l.b16 %v404
  %v1385 = vunpack.c.l.b16 %v405
  %v1386 = vunpack.c.l.b16 %v406
  %v1387 = vunpack.c.l.b16 %v407
  %v1388 = vunpack.c.l.b16 %v408
  %v1389 = vunpack.c.l.b16 %v409
  %v1390 = vunpack.c.l.b16 %v410
  %v1391 = vpack.c.b16 %v1000, %v999
  %v1392 = vpack.c.b16 %v1002, %v1001
  %v1393 = vpack.c.b16 %v1004, %v1003
  %v1394 = vpack.c.b16 %v1006, %v1005
  %v1395 = vpack.c.b16 %v1008, %v1007
  %v1396 = vpack.c.b16 %v1010, %v1009
  %v1397 = vpack.c.b16 %v1012, %v1011
  %v1398 = vpack.c.b16 %v1014, %v1013
  %v1399 = vpack.c.b16 %v1016, %v1015
  %v1400 = vpack.c.b16 %v1018, %v1017
  %v1401 = vpack.c.b16 %v1020, %v1019
  %v1402 = vpack.c.b16 %v1022, %v1021
  %v1403 = vpack.c.b16 %v1024, %v1023
  %v1404 = vpack.c.b16 %v1026, %v1025
  %v1405 = vpack.c.b16 %v1028, %v1027
  %v1406 = vpack.c.b16 %v1030, %v1029
  %v1407 = vpack.c.b16 %v1032, %v1031
  %v1408 = vpack.c.b16 %v1034, %v1033
  %v1409 = vpack.c.b16 %v1036, %v1035
  %v1410 = vpack.c.b16 %v1038, %v1037
  %v1411 = vpack.c.b16 %v1040, %v1039
  %v1412 = vpack.c.b16 %v1042, %v1041
  %v1413 = vpack.c.b16 %v1044, %v1043
  %v1414 = vpack.c.b16 %v1046, %v1045
  %v1415 = vpack.c.b16 %v1048, %v1047
  %v1416 = vpack.c.b16 %v1050, %v1049
  %v1417 = vpack.c.b16 %v1052, %v1051
  %v1418 = vpack.c.b16 %v1054, %v1053
  %v1419 = vpack.c.b16 %v1056, %v1055
  %v1420 = vpack.c.b16 %v1058, %v1057
  %v1421 = vpack.c.b16 %v1060, %v1059
  %v1422 = vpack.c.b16 %v1062, %v1061
  %v1423 = vpack.c.b16 %v1064, %v1063
  %v1424 = vpack.c.b16 %v1066, %v1065
  %v1425 = vpack.c.b16 %v1068, %v1067
  %v1426 = vpack.c.b16 %v1070, %v1069
  %v1427 = vpack.c.b16 %v1072, %v1071
  %v1428 = vpack.c.b16 %v1074, %v1073
  %v1429 = vpack.c.b16 %v1076, %v1075
  %v1430 = vpack.c.b16 %v1078, %v1077
  %v1431 = vpack.c.b16 %v1080, %v1079
  %v1432 = vpack.c.b16 %v1082, %v1081
  %v1433 = vpack.c.b16 %v1084, %v1083
  %v1434 = vpack.c.b16 %v1086, %v1085
  %v1435 = vpack.c.b16 %v1088, %v1087
  %v1436 = vpack.c.b16 %v1090, %v1089
  %v1437 = vpack.c.b16 %v1092, %v1091
  %v1438 = vpack.c.b16 %v1094, %v1093
  %v1439 = vpack.c.b16 %v1096, %v1095
  %v1440 = vpack.c.b16 %v1098, %v1097
  %v1441 = vpack.c.b16 %v1100, %v1099
  %v1442 = vpack.c.b16 %v1102, %v1101
  %v1443 = vpack.c.b16 %v1104, %v1103
  %v1444 = vpack.c.b16 %v1106, %v1105
  %v1445 = vpack.c.b16 %v1108, %v1107
  %v1446 = vpack.c.b16 %v1110, %v1109
  %v1447 = vpack.c.b16 %v1112, %v1111
  %v1448 = vpack.c.b16 %v1114, %v1113
  %v1449 = vpack.c.b16 %v1116, %v1115
  %v1450 = vpack.c.b16 %v1118, %v1117
  %v1451 = vpack.c.b16 %v1120, %v1119
  %v1452 = vpack.c.b16 %v1122, %v1121
  %v1453 = vpack.c.b16 %v1124, %v1123
  %v1454 = vpack.c.b16 %v1126, %v1125
  %v1455 = vpack.c.b16 %v1128, %v1127
  %v1456 = vpack.c.b16 %v1130, %v1129
  %v1457 = vpack.c.b16 %v1132, %v1131
  %v1458 = vpack.c.b16 %v1134, %v1133
  %v1459 = vpack.c.b16 %v1136, %v1135
  %v1460 = vpack.c.b16 %v1138, %v1137
  %v1461 = vpack.c.b16 %v1140, %v1139
  %v1462 = vpack.c.b16 %v1142, %v1141
  %v1463 = vpack.c.b16 %v1144, %v1143
  %v1464 = vpack.c.b16 %v1146, %v1145
  %v1465 = vpack.c.b16 %v1148, %v1147
  %v1466 = vpack.c.b16 %v1150, %v1149
  %v1467 = vpack.c.b16 %v1152, %v1151
  %v1468 = vpack.c.b16 %v1154, %v1153
  %v1469 = vpack.c.b16 %v1156, %v1155
  %v1470 = vpack.c.b16 %v1158, %v1157
  %v1471 = vpack.c.b16 %v1160, %v1159
  %v1472 = vpack.c.b16 %v1162, %v1161
  %v1473 = vpack.c.b16 %v1164, %v1163
  %v1474 = vpack.c.b16 %v1166, %v1165
  %v1475 = vpack.c.b16 %v1168, %v1167
  %v1476 = vpack.c.b16 %v1170, %v1169
  %v1477 = vpack.c.b16 %v1172, %v1171
  %v1478 = vpack.c.b16 %v1174, %v1173
  %v1479 = vpack.c.b16 %v1176, %v1175
  %v1480 = vpack.c.b16 %v1178, %v1177
  %v1481 = vpack.c.b16 %v1180, %v1179
  %v1482 = vpack.c.b16 %v1182, %v1181
  %v1483 = vpack.c.b16 %v1184, %v1183
  %v1484 = vpack.c.b16 %v1186, %v1185
  %v1485 = vpack.c.b16 %v1188, %v1187
  %v1486 = vpack.c.b16 %v1190, %v1189
  %v1487 = vpack.c.b16 %v1192, %v1191
  %v1488 = vpack.c.b16 %v1194, %v1193
  %v1489 = vpack.c.b16 %v1196, %v1195
  %v1490 = vpack.c.b16 %v1198, %v1197
  %v1491 = vpack.c.b16 %v1200, %v1199
  %v1492 = vpack.c.b16 %v1202, %v1201
  %v1493 = vpack.c.b16 %v1204, %v1203
  %v1494 = vpack.c.b16 %v1206, %v1205
  %v1495 = vpack.c.b16 %v1208, %v1207
  %v1496 = vpack.c.b16 %v1210, %v1209
  %v1497 = vpack.c.b16 %v1212, %v1211
  %v1498 = vpack.c.b16 %v1214, %v1213
  %v1499 = vpack.c.b16 %v1216, %v1215
  %v1500 = vpack.c.b16 %v1218, %v1217
  %v1501 = vpack.c.b16 %v1220, %v1219
  %v1502 = vpack.c.b16 %v1222, %v1221
  %v1503 = vpack.c.b16 %v1224, %v1223
  %v1504 = vpack.c.b16 %v1226, %v1225
  %v1505 = vpack.c.b16 %v1228, %v1227
  %v1506 = vpack.c.b16 %v1230, %v1229
  %v1507 = vpack.c.b16 %v1232, %v1231
  %v1508 = vpack.c.b16 %v1234, %v1233
  %v1509 = vpack.c.b16 %v1236, %v1235
  %v1510 = vpack.c.b16 %v1238, %v1237
  %v1511 = vpack.c.b16 %v1240, %v1239
  %v1512 = vpack.c.b16 %v1242, %v1241
  %v1513 = vpack.c.b16 %v1244, %v1243
  %v1514 = vpack.c.b16 %v1246, %v1245
  %v1515 = vpack.c.b16 %v1248, %v1247
  %v1516 = vpack.c.b16 %v1250, %v1249
  %v1517 = vpack.c.b16 %v1252, %v1251
  %v1518 = vpack.c.b16 %v1254, %v1253
  %v1519 = vpack.c.b16 %v1256, %v1255
  %v1520 = vpack.c.b16 %v1258, %v1257
  %v1521 = vpack.c.b16 %v1260, %v1259
  %v1522 = vpack.c.b16 %v1262, %v1261
  %v1523 = vpack.c.b16 %v1264, %v1263
  %v1524 = vpack.c.b16 %v1266, %v1265
  %v1525 = vpack.c.b16 %v1268, %v1267
  %v1526 = vpack.c.b16 %v1270, %v1269
  %v1527 = vpack.c.b16 %v1272, %v1271
  %v1528 = vpack.c.b16 %v1274, %v1273
  %v1529 = vpack.c.b16 %v1276, %v1275
  %v1530 = vpack.c.b16 %v1278, %v1277
  %v1531 = vpack.c.b16 %v1280, %v1279
  %v1532 = vpack.c.b16 %v1282, %v1281
  %v1533 = vpack.c.b16 %v1284, %v1283
  %v1534 = vpack.c.b16 %v1286, %v1285
  %v1535 = vpack.c.b16 %v1288, %v1287
  %v1536 = vpack.c.b16 %v1290, %v1289
  %v1537 = vpack.c.b16 %v1292, %v1291
  %v1538 = vpack.c.b16 %v1294, %v1293
  %v1539 = vpack.c.b16 %v1296, %v1295
  %v1540 = vpack.c.b16 %v1298, %v1297
  %v1541 = vpack.c.b16 %v1300, %v1299
  %v1542 = vpack.c.b16 %v1302, %v1301
  %v1543 = vpack.c.b16 %v1304, %v1303
  %v1544 = vpack.c.b16 %v1306, %v1305
  %v1545 = vpack.c.b16 %v1308, %v1307
  %v1546 = vpack.c.b16 %v1310, %v1309
  %v1547 = vpack.c.b16 %v1312, %v1311
  %v1548 = vpack.c.b16 %v1314, %v1313
  %v1549 = vpack.c.b16 %v1316, %v1315
  %v1550 = vpack.c.b16 %v1318, %v1317
  %v1551 = vpack.c.b16 %v1320, %v1319
  %v1552 = vpack.c.b16 %v1322, %v1321
  %v1553 = vpack.c.b16 %v1324, %v1323
  %v1554 = vpack.c.b16 %v1326, %v1325
  %v1555 = vpack.c.b16 %v1328, %v1327
  %v1556 = vpack.c.b16 %v1330, %v1329
  %v1557 = vpack.c.b16 %v1332, %v1331
  %v1558 = vpack.c.b16 %v1334, %v1333
  %v1559 = vpack.c.b16 %v1336, %v1335
  %v1560 = vpack.c.b16 %v1338, %v1337
  %v1561 = vpack.c.b16 %v1340, %v1339
  %v1562 = vpack.c.b16 %v1342, %v1341
  %v1563 = vpack.c.b16 %v1344, %v1343
  %v1564 = vpack.c.b16 %v1346, %v1345
  %v1565 = vpack.c.b16 %v1348, %v1347
  %v1566 = vpack.c.b16 %v1350, %v1349
  %v1567 = vpack.c.b16 %v1352, %v1351
  %v1568 = vpack.c.b16 %v1354, %v1353
  %v1569 = vpack.c.b16 %v1356, %v1355
  %v1570 = vpack.c.b16 %v1358, %v1357
  %v1571 = vpack.c.b16 %v1360, %v1359
  %v1572 = vpack.c.b16 %v1362, %v1361
  %v1573 = vpack.c.b16 %v1364, %v1363
  %v1574 = vpack.c.b16 %v1366, %v1365
  %v1575 = vpack.c.b16 %v1368, %v1367
  %v1576 = vpack.c.b16 %v1370, %v1369
  %v1577 = vpack.c.b16 %v1372, %v1371
  %v1578 = vpack.c.b16 %v1374, %v1373
  %v1579 = vpack.c.b16 %v1376, %v1375
  %v1580 = vpack.c.b16 %v1378, %v1377
  %v1581 = vpack.c.b16 %v1380, %v1379
  %v1582 = vpack.c.b16 %v1382, %v1381
  %v1583 = vpack.c.b16 %v1384, %v1383
  %v1584 = vpack.c.b16 %v1386, %v1385
  %v1585 = vpack.c.b16 %v1388, %v1387
  %v1586 = vpack.c.b16 %v1390, %v1389
  %vm1783 = vcmask 523264
  %v1785 = vsel %vm1783, %v582, 0
  %1787 = vmatprep.subr.bf16.mxu0 0
  %1788 = vmatpush1.bf16.msra.mxu0 %v1391
  %1789 = vmatprep.subr.bf16.mxu0 0
  %1790 = vmatpush1.bf16.msra.mxu0 %v1392
  %1791 = vmatprep.subr.bf16.mxu0 0
  %1792 = vmatpush1.bf16.msra.mxu0 %v1393
  %1793 = vmatprep.subr.bf16.mxu0 0
  %1794 = vmatpush1.bf16.msra.mxu0 %v1394
  %1795 = vmatprep.subr.bf16.mxu0 0
  %1796 = vmatpush1.bf16.msra.mxu0 %v1395
  %1797 = vmatprep.subr.bf16.mxu0 0
  %1798 = vmatpush1.bf16.msra.mxu0 %v1396
  %1799 = vmatprep.subr.bf16.mxu0 0
  %1800 = vmatpush1.bf16.msra.mxu0 %v1397
  %1801 = vmatprep.subr.bf16.mxu0 0
  %1802 = vmatpush1.bf16.msra.mxu0 %v1398
  %1803 = vmatprep.subr.bf16.mxu0 0
  %1804 = vmatpush1.bf16.msra.mxu0 %v1399
  %1805 = vmatprep.subr.bf16.mxu0 0
  %1806 = vmatpush1.bf16.msra.mxu0 %v1400
  %1807 = vmatprep.subr.bf16.mxu0 0
  %1808 = vmatpush1.bf16.msra.mxu0 %v1401
  %1809 = vmatprep.subr.bf16.mxu0 0
  %1810 = vmatpush1.bf16.msra.mxu0 %v1402
  %1811 = vmatprep.subr.bf16.mxu0 0
  %1812 = vmatpush1.bf16.msra.mxu0 %v1403
  %1813 = vmatprep.subr.bf16.mxu0 0
  %1814 = vmatpush1.bf16.msra.mxu0 %v1404
  %1815 = vmatprep.subr.bf16.mxu0 0
  %1816 = vmatpush1.bf16.msra.mxu0 %v1405
  %1817 = vmatprep.subr.bf16.mxu0 0
  %1818 = vmatpush1.bf16.msra.mxu0 %v1406
  %1819 = vmatprep.mubr.bf16.mxu0 %v459
  %1820 = vmatmul.mubr.bf16.gmra.mrb[0].mxu0 %v445
  %v1821 = vpop.f32.mrb[0].mxu0
  %v1822 = vadd.f32 %v416, %v1821
  %v1823 = vpop.f32.mrb[0].mxu0
  %v1824 = vpop.f32.mrb[0].mxu0
  %v1825 = vpop.f32.mrb[0].mxu0
  %1826 = vdwg.mxu0
  %1827 = vmatprep.subr.bf16.mxu0 0
  %1828 = vmatpush1.bf16.msra.mxu0 %v1407
  %1829 = vmatprep.subr.bf16.mxu0 0
  %1830 = vmatpush1.bf16.msra.mxu0 %v1408
  %1831 = vmatprep.subr.bf16.mxu0 0
  %1832 = vmatpush1.bf16.msra.mxu0 %v1409
  %1833 = vmatprep.subr.bf16.mxu0 0
  %1834 = vmatpush1.bf16.msra.mxu0 %v1410
  %1835 = vmatprep.subr.bf16.mxu0 0
  %1836 = vmatpush1.bf16.msra.mxu0 %v1411
  %1837 = vmatprep.subr.bf16.mxu0 0
  %1838 = vmatpush1.bf16.msra.mxu0 %v1412
  %1839 = vmatprep.subr.bf16.mxu0 0
  %1840 = vmatpush1.bf16.msra.mxu0 %v1413
  %1841 = vmatprep.subr.bf16.mxu0 0
  %1842 = vmatpush1.bf16.msra.mxu0 %v1414
  %1843 = vmatprep.subr.bf16.mxu0 0
  %1844 = vmatpush1.bf16.msra.mxu0 %v1415
  %1845 = vmatprep.subr.bf16.mxu0 0
  %1846 = vmatpush1.bf16.msra.mxu0 %v1416
  %1847 = vmatprep.subr.bf16.mxu0 0
  %1848 = vmatpush1.bf16.msra.mxu0 %v1417
  %1849 = vmatprep.subr.bf16.mxu0 0
  %1850 = vmatpush1.bf16.msra.mxu0 %v1418
  %1851 = vmatprep.subr.bf16.mxu0 0
  %1852 = vmatpush1.bf16.msra.mxu0 %v1419
  %1853 = vmatprep.subr.bf16.mxu0 0
  %1854 = vmatpush1.bf16.msra.mxu0 %v1420
  %1855 = vmatprep.subr.bf16.mxu0 0
  %1856 = vmatpush1.bf16.msra.mxu0 %v1421
  %1857 = vmatprep.subr.bf16.mxu0 0
  %1858 = vmatpush1.bf16.msra.mxu0 %v1422
  %1859 = vmatprep.mubr.bf16.mxu0 %v469
  %1860 = vmatmul.mubr.bf16.gmra.mrb[0].mxu0 %v467
  %v1861 = vpop.f32.mrb[0].mxu0
  %v1862 = vadd.f32 %v1822, %v1861
  %v1863 = vpop.f32.mrb[0].mxu0
  %v1864 = vpop.f32.mrb[0].mxu0
  %v1865 = vpop.f32.mrb[0].mxu0
  %1866 = vdwg.mxu0
  %1867 = vmatprep.subr.bf16.mxu0 0
  %1868 = vmatpush1.bf16.msra.mxu0 %v1423
  %1869 = vmatprep.subr.bf16.mxu0 0
  %1870 = vmatpush1.bf16.msra.mxu0 %v1424
  %1871 = vmatprep.subr.bf16.mxu0 0
  %1872 = vmatpush1.bf16.msra.mxu0 %v1425
  %1873 = vmatprep.subr.bf16.mxu0 0
  %1874 = vmatpush1.bf16.msra.mxu0 %v1426
  %1875 = vmatprep.subr.bf16.mxu0 0
  %1876 = vmatpush1.bf16.msra.mxu0 %v1427
  %1877 = vmatprep.subr.bf16.mxu0 0
  %1878 = vmatpush1.bf16.msra.mxu0 %v1428
  %1879 = vmatprep.subr.bf16.mxu0 0
  %1880 = vmatpush1.bf16.msra.mxu0 %v1429
  %1881 = vmatprep.subr.bf16.mxu0 0
  %1882 = vmatpush1.bf16.msra.mxu0 %v1430
  %1883 = vmatprep.subr.bf16.mxu0 0
  %1884 = vmatpush1.bf16.msra.mxu0 %v1431
  %1885 = vmatprep.subr.bf16.mxu0 0
  %1886 = vmatpush1.bf16.msra.mxu0 %v1432
  %1887 = vmatprep.subr.bf16.mxu0 0
  %1888 = vmatpush1.bf16.msra.mxu0 %v1433
  %1889 = vmatprep.subr.bf16.mxu0 0
  %1890 = vmatpush1.bf16.msra.mxu0 %v1434
  %1891 = vmatprep.subr.bf16.mxu0 0
  %1892 = vmatpush1.bf16.msra.mxu0 %v1435
  %1893 = vmatprep.subr.bf16.mxu0 0
  %1894 = vmatpush1.bf16.msra.mxu0 %v1436
  %1895 = vmatprep.subr.bf16.mxu0 0
  %1896 = vmatpush1.bf16.msra.mxu0 %v1437
  %1897 = vmatprep.subr.bf16.mxu0 0
  %1898 = vmatpush1.bf16.msra.mxu0 %v1438
  %1899 = vmatprep.mubr.bf16.mxu0 %v466
  %1900 = vmatmul.mubr.bf16.gmra.mrb[0].mxu0 %v452
  %v1901 = vpop.f32.mrb[0].mxu0
  %v1902 = vadd.f32 %v1862, %v1901
  %v1903 = vpop.f32.mrb[0].mxu0
  %v1904 = vpop.f32.mrb[0].mxu0
  %v1905 = vpop.f32.mrb[0].mxu0
  %1906 = vdwg.mxu0
  %1907 = vmatprep.subr.bf16.mxu0 0
  %1908 = vmatpush1.bf16.msra.mxu0 %v1439
  %1909 = vmatprep.subr.bf16.mxu0 0
  %1910 = vmatpush1.bf16.msra.mxu0 %v1440
  %1911 = vmatprep.subr.bf16.mxu0 0
  %1912 = vmatpush1.bf16.msra.mxu0 %v1441
  %1913 = vmatprep.subr.bf16.mxu0 0
  %1914 = vmatpush1.bf16.msra.mxu0 %v1442
  %1915 = vmatprep.subr.bf16.mxu0 0
  %1916 = vmatpush1.bf16.msra.mxu0 %v1443
  %1917 = vmatprep.subr.bf16.mxu0 0
  %1918 = vmatpush1.bf16.msra.mxu0 %v1444
  %1919 = vmatprep.subr.bf16.mxu0 0
  %1920 = vmatpush1.bf16.msra.mxu0 %v1445
  %1921 = vmatprep.subr.bf16.mxu0 0
  %1922 = vmatpush1.bf16.msra.mxu0 %v1446
  %1923 = vmatprep.subr.bf16.mxu0 0
  %1924 = vmatpush1.bf16.msra.mxu0 %v1447
  %1925 = vmatprep.subr.bf16.mxu0 0
  %1926 = vmatpush1.bf16.msra.mxu0 %v1448
  %1927 = vmatprep.subr.bf16.mxu0 0
  %1928 = vmatpush1.bf16.msra.mxu0 %v1449
  %1929 = vmatprep.subr.bf16.mxu0 0
  %1930 = vmatpush1.bf16.msra.mxu0 %v1450
  %1931 = vmatprep.subr.bf16.mxu0 0
  %1932 = vmatpush1.bf16.msra.mxu0 %v1451
  %1933 = vmatprep.subr.bf16.mxu0 0
  %1934 = vmatpush1.bf16.msra.mxu0 %v1452
  %1935 = vmatprep.subr.bf16.mxu0 0
  %1936 = vmatpush1.bf16.msra.mxu0 %v1453
  %1937 = vmatprep.subr.bf16.mxu0 0
  %1938 = vmatpush1.bf16.msra.mxu0 %v1454
  %1939 = vmatprep.mubr.bf16.mxu0 %v470
  %1940 = vmatmul.mubr.bf16.gmra.mrb[0].mxu0 %v468
  %v1941 = vpop.f32.mrb[0].mxu0
  %v1942 = vadd.f32 %v1902, %v1941
  %v1943 = vpop.f32.mrb[0].mxu0
  %v1944 = vpop.f32.mrb[0].mxu0
  %v1945 = vpop.f32.mrb[0].mxu0
  %1946 = vdwg.mxu0
  %1947 = vmatprep.subr.bf16.mxu0 0
  %1948 = vmatpush1.bf16.msra.mxu0 %v1455
  %1949 = vmatprep.subr.bf16.mxu0 0
  %1950 = vmatpush1.bf16.msra.mxu0 %v1456
  %1951 = vmatprep.subr.bf16.mxu0 0
  %1952 = vmatpush1.bf16.msra.mxu0 %v1457
  %1953 = vmatprep.subr.bf16.mxu0 0
  %1954 = vmatpush1.bf16.msra.mxu0 %v1458
  %1955 = vmatprep.subr.bf16.mxu0 0
  %1956 = vmatpush1.bf16.msra.mxu0 %v1459
  %1957 = vmatprep.subr.bf16.mxu0 0
  %1958 = vmatpush1.bf16.msra.mxu0 %v1460
  %1959 = vmatprep.subr.bf16.mxu0 0
  %1960 = vmatpush1.bf16.msra.mxu0 %v1461
  %1961 = vmatprep.subr.bf16.mxu0 0
  %1962 = vmatpush1.bf16.msra.mxu0 %v1462
  %1963 = vmatprep.subr.bf16.mxu0 0
  %1964 = vmatpush1.bf16.msra.mxu0 %v1463
  %1965 = vmatprep.subr.bf16.mxu0 0
  %1966 = vmatpush1.bf16.msra.mxu0 %v1464
  %1967 = vmatprep.subr.bf16.mxu0 0
  %1968 = vmatpush1.bf16.msra.mxu0 %v1465
  %1969 = vmatprep.subr.bf16.mxu0 0
  %1970 = vmatpush1.bf16.msra.mxu0 %v1466
  %1971 = vmatprep.subr.bf16.mxu0 0
  %1972 = vmatpush1.bf16.msra.mxu0 %v1467
  %1973 = vmatprep.subr.bf16.mxu0 0
  %1974 = vmatpush1.bf16.msra.mxu0 %v1468
  %1975 = vmatprep.subr.bf16.mxu0 0
  %1976 = vmatpush1.bf16.msra.mxu0 %v1469
  %1977 = vmatprep.subr.bf16.mxu0 0
  %1978 = vmatpush1.bf16.msra.mxu0 %v1470
  %1979 = vmatprep.mubr.bf16.mxu0 %v508
  %1980 = vmatmul.mubr.bf16.gmra.mrb[0].mxu0 %v494
  %v1981 = vpop.f32.mrb[0].mxu0
  %v1982 = vadd.f32 %v1942, %v1981
  %v1983 = vpop.f32.mrb[0].mxu0
  %v1984 = vpop.f32.mrb[0].mxu0
  %v1985 = vpop.f32.mrb[0].mxu0
  %1986 = vdwg.mxu0
  %1987 = vmatprep.subr.bf16.mxu0 0
  %1988 = vmatpush1.bf16.msra.mxu0 %v1471
  %1989 = vmatprep.subr.bf16.mxu0 0
  %1990 = vmatpush1.bf16.msra.mxu0 %v1472
  %1991 = vmatprep.subr.bf16.mxu0 0
  %1992 = vmatpush1.bf16.msra.mxu0 %v1473
  %1993 = vmatprep.subr.bf16.mxu0 0
  %1994 = vmatpush1.bf16.msra.mxu0 %v1474
  %1995 = vmatprep.subr.bf16.mxu0 0
  %1996 = vmatpush1.bf16.msra.mxu0 %v1475
  %1997 = vmatprep.subr.bf16.mxu0 0
  %1998 = vmatpush1.bf16.msra.mxu0 %v1476
  %1999 = vmatprep.subr.bf16.mxu0 0
  %2000 = vmatpush1.bf16.msra.mxu0 %v1477
  %2001 = vmatprep.subr.bf16.mxu0 0
  %2002 = vmatpush1.bf16.msra.mxu0 %v1478
  %2003 = vmatprep.subr.bf16.mxu0 0
  %2004 = vmatpush1.bf16.msra.mxu0 %v1479
  %2005 = vmatprep.subr.bf16.mxu0 0
  %2006 = vmatpush1.bf16.msra.mxu0 %v1480
  %2007 = vmatprep.subr.bf16.mxu0 0
  %2008 = vmatpush1.bf16.msra.mxu0 %v1481
  %2009 = vmatprep.subr.bf16.mxu0 0
  %2010 = vmatpush1.bf16.msra.mxu0 %v1482
  %2011 = vmatprep.subr.bf16.mxu0 0
  %2012 = vmatpush1.bf16.msra.mxu0 %v1483
  %2013 = vmatprep.subr.bf16.mxu0 0
  %2014 = vmatpush1.bf16.msra.mxu0 %v1484
  %2015 = vmatprep.subr.bf16.mxu0 0
  %2016 = vmatpush1.bf16.msra.mxu0 %v1485
  %2017 = vmatprep.subr.bf16.mxu0 0
  %2018 = vmatpush1.bf16.msra.mxu0 %v1486
  %2019 = vmatprep.mubr.bf16.mxu0 %v518
  %2020 = vmatmul.mubr.bf16.gmra.mrb[0].mxu0 %v516
  %v2021 = vpop.f32.mrb[0].mxu0
  %v2022 = vadd.f32 %v1982, %v2021
  %v2023 = vpop.f32.mrb[0].mxu0
  %v2024 = vpop.f32.mrb[0].mxu0
  %v2025 = vpop.f32.mrb[0].mxu0
  %2026 = vdwg.mxu0
  %2027 = vmatprep.subr.bf16.mxu0 0
  %2028 = vmatpush1.bf16.msra.mxu0 %v1487
  %2029 = vmatprep.subr.bf16.mxu0 0
  %2030 = vmatpush1.bf16.msra.mxu0 %v1488
  %2031 = vmatprep.subr.bf16.mxu0 0
  %2032 = vmatpush1.bf16.msra.mxu0 %v1489
  %2033 = vmatprep.subr.bf16.mxu0 0
  %2034 = vmatpush1.bf16.msra.mxu0 %v1490
  %2035 = vmatprep.subr.bf16.mxu0 0
  %2036 = vmatpush1.bf16.msra.mxu0 %v1491
  %2037 = vmatprep.subr.bf16.mxu0 0
  %2038 = vmatpush1.bf16.msra.mxu0 %v1492
  %2039 = vmatprep.subr.bf16.mxu0 0
  %2040 = vmatpush1.bf16.msra.mxu0 %v1493
  %2041 = vmatprep.subr.bf16.mxu0 0
  %2042 = vmatpush1.bf16.msra.mxu0 %v1494
  %2043 = vmatprep.subr.bf16.mxu0 0
  %2044 = vmatpush1.bf16.msra.mxu0 %v1495
  %2045 = vmatprep.subr.bf16.mxu0 0
  %2046 = vmatpush1.bf16.msra.mxu0 %v1496
  %2047 = vmatprep.subr.bf16.mxu0 0
  %2048 = vmatpush1.bf16.msra.mxu0 %v1497
  %2049 = vmatprep.subr.bf16.mxu0 0
  %2050 = vmatpush1.bf16.msra.mxu0 %v1498
  %2051 = vmatprep.subr.bf16.mxu0 0
  %2052 = vmatpush1.bf16.msra.mxu0 %v1499
  %2053 = vmatprep.subr.bf16.mxu0 0
  %2054 = vmatpush1.bf16.msra.mxu0 %v1500
  %2055 = vmatprep.subr.bf16.mxu0 0
  %2056 = vmatpush1.bf16.msra.mxu0 %v1501
  %2057 = vmatprep.subr.bf16.mxu0 0
  %2058 = vmatpush1.bf16.msra.mxu0 %v1502
  %2059 = vmatprep.mubr.bf16.mxu0 %v515
  %2060 = vmatmul.mubr.bf16.gmra.mrb[0].mxu0 %v501
  %v2061 = vpop.f32.mrb[0].mxu0
  %v2062 = vadd.f32 %v2022, %v2061
  %v2063 = vpop.f32.mrb[0].mxu0
  %v2064 = vpop.f32.mrb[0].mxu0
  %v2065 = vpop.f32.mrb[0].mxu0
  %2066 = vdwg.mxu0
  %2067 = vmatprep.subr.bf16.mxu0 0
  %2068 = vmatpush1.bf16.msra.mxu0 %v1503
  %2069 = vmatprep.subr.bf16.mxu0 0
  %2070 = vmatpush1.bf16.msra.mxu0 %v1504
  %2071 = vmatprep.subr.bf16.mxu0 0
  %2072 = vmatpush1.bf16.msra.mxu0 %v1505
  %2073 = vmatprep.subr.bf16.mxu0 0
  %2074 = vmatpush1.bf16.msra.mxu0 %v1506
  %2075 = vmatprep.subr.bf16.mxu0 0
  %2076 = vmatpush1.bf16.msra.mxu0 %v1507
  %2077 = vmatprep.subr.bf16.mxu0 0
  %2078 = vmatpush1.bf16.msra.mxu0 %v1508
  %2079 = vmatprep.subr.bf16.mxu0 0
  %2080 = vmatpush1.bf16.msra.mxu0 %v1509
  %2081 = vmatprep.subr.bf16.mxu0 0
  %2082 = vmatpush1.bf16.msra.mxu0 %v1510
  %2083 = vmatprep.subr.bf16.mxu0 0
  %2084 = vmatpush1.bf16.msra.mxu0 %v1511
  %2085 = vmatprep.subr.bf16.mxu0 0
  %2086 = vmatpush1.bf16.msra.mxu0 %v1512
  %2087 = vmatprep.subr.bf16.mxu0 0
  %2088 = vmatpush1.bf16.msra.mxu0 %v1513
  %2089 = vmatprep.subr.bf16.mxu0 0
  %2090 = vmatpush1.bf16.msra.mxu0 %v1514
  %2091 = vmatprep.subr.bf16.mxu0 0
  %2092 = vmatpush1.bf16.msra.mxu0 %v1515
  %2093 = vmatprep.subr.bf16.mxu0 0
  %2094 = vmatpush1.bf16.msra.mxu0 %v1516
  %2095 = vmatprep.subr.bf16.mxu0 0
  %2096 = vmatpush1.bf16.msra.mxu0 %v1517
  %2097 = vmatprep.subr.bf16.mxu0 0
  %2098 = vmatpush1.bf16.msra.mxu0 %v1518
  %2099 = vmatprep.mubr.bf16.mxu0 %v519
  %2100 = vmatmul.mubr.bf16.gmra.mrb[0].mxu0 %v517
  %v2101 = vpop.f32.mrb[0].mxu0
  %v2102 = vadd.f32 %v2062, %v2101
  %v2103 = vpop.f32.mrb[0].mxu0
  %v2104 = vpop.f32.mrb[0].mxu0
  %v2105 = vpop.f32.mrb[0].mxu0
  %2106 = vdwg.mxu0
  %2107 = vmatprep.subr.bf16.mxu0 0
  %2108 = vmatpush1.bf16.msra.mxu0 %v1519
  %2109 = vmatprep.subr.bf16.mxu0 0
  %2110 = vmatpush1.bf16.msra.mxu0 %v1520
  %2111 = vmatprep.subr.bf16.mxu0 0
  %2112 = vmatpush1.bf16.msra.mxu0 %v1521
  %2113 = vmatprep.subr.bf16.mxu0 0
  %2114 = vmatpush1.bf16.msra.mxu0 %v1522
  %2115 = vmatprep.subr.bf16.mxu0 0
  %2116 = vmatpush1.bf16.msra.mxu0 %v1523
  %2117 = vmatprep.subr.bf16.mxu0 0
  %2118 = vmatpush1.bf16.msra.mxu0 %v1524
  %2119 = vmatprep.subr.bf16.mxu0 0
  %2120 = vmatpush1.bf16.msra.mxu0 %v1525
  %2121 = vmatprep.subr.bf16.mxu0 0
  %2122 = vmatpush1.bf16.msra.mxu0 %v1526
  %2123 = vmatprep.subr.bf16.mxu0 0
  %2124 = vmatpush1.bf16.msra.mxu0 %v1527
  %2125 = vmatprep.subr.bf16.mxu0 0
  %2126 = vmatpush1.bf16.msra.mxu0 %v1528
  %2127 = vmatprep.subr.bf16.mxu0 0
  %2128 = vmatpush1.bf16.msra.mxu0 %v1529
  %2129 = vmatprep.subr.bf16.mxu0 0
  %2130 = vmatpush1.bf16.msra.mxu0 %v1530
  %2131 = vmatprep.subr.bf16.mxu0 0
  %2132 = vmatpush1.bf16.msra.mxu0 %v1531
  %2133 = vmatprep.subr.bf16.mxu0 0
  %2134 = vmatpush1.bf16.msra.mxu0 %v1532
  %2135 = vmatprep.subr.bf16.mxu0 0
  %2136 = vmatpush1.bf16.msra.mxu0 %v1533
  %2137 = vmatprep.subr.bf16.mxu0 0
  %2138 = vmatpush1.bf16.msra.mxu0 %v1534
  %2139 = vmatprep.mubr.bf16.mxu0 %v557
  %2140 = vmatmul.mubr.bf16.gmra.mrb[0].mxu0 %v543
  %v2141 = vpop.f32.mrb[0].mxu0
  %v2142 = vadd.f32 %v2102, %v2141
  %v2143 = vpop.f32.mrb[0].mxu0
  %v2144 = vpop.f32.mrb[0].mxu0
  %v2145 = vpop.f32.mrb[0].mxu0
  %2146 = vdwg.mxu0
  %2147 = vmatprep.subr.bf16.mxu0 0
  %2148 = vmatpush1.bf16.msra.mxu0 %v1535
  %2149 = vmatprep.subr.bf16.mxu0 0
  %2150 = vmatpush1.bf16.msra.mxu0 %v1536
  %2151 = vmatprep.subr.bf16.mxu0 0
  %2152 = vmatpush1.bf16.msra.mxu0 %v1537
  %2153 = vmatprep.subr.bf16.mxu0 0
  %2154 = vmatpush1.bf16.msra.mxu0 %v1538
  %2155 = vmatprep.subr.bf16.mxu0 0
  %2156 = vmatpush1.bf16.msra.mxu0 %v1539
  %2157 = vmatprep.subr.bf16.mxu0 0
  %2158 = vmatpush1.bf16.msra.mxu0 %v1540
  %2159 = vmatprep.subr.bf16.mxu0 0
  %2160 = vmatpush1.bf16.msra.mxu0 %v1541
  %2161 = vmatprep.subr.bf16.mxu0 0
  %2162 = vmatpush1.bf16.msra.mxu0 %v1542
  %2163 = vmatprep.subr.bf16.mxu0 0
  %2164 = vmatpush1.bf16.msra.mxu0 %v1543
  %2165 = vmatprep.subr.bf16.mxu0 0
  %2166 = vmatpush1.bf16.msra.mxu0 %v1544
  %2167 = vmatprep.subr.bf16.mxu0 0
  %2168 = vmatpush1.bf16.msra.mxu0 %v1545
  %2169 = vmatprep.subr.bf16.mxu0 0
  %2170 = vmatpush1.bf16.msra.mxu0 %v1546
  %2171 = vmatprep.subr.bf16.mxu0 0
  %2172 = vmatpush1.bf16.msra.mxu0 %v1547
  %2173 = vmatprep.subr.bf16.mxu0 0
  %2174 = vmatpush1.bf16.msra.mxu0 %v1548
  %2175 = vmatprep.subr.bf16.mxu0 0
  %2176 = vmatpush1.bf16.msra.mxu0 %v1549
  %2177 = vmatprep.subr.bf16.mxu0 0
  %2178 = vmatpush1.bf16.msra.mxu0 %v1550
  %2179 = vmatprep.mubr.bf16.mxu0 %v567
  %2180 = vmatmul.mubr.bf16.gmra.mrb[0].mxu0 %v565
  %v2181 = vpop.f32.mrb[0].mxu0
  %v2182 = vadd.f32 %v2142, %v2181
  %v2183 = vpop.f32.mrb[0].mxu0
  %v2184 = vpop.f32.mrb[0].mxu0
  %v2185 = vpop.f32.mrb[0].mxu0
  %2186 = vdwg.mxu0
  %2187 = vmatprep.subr.bf16.mxu0 0
  %2188 = vmatpush1.bf16.msra.mxu0 %v1551
  %2189 = vmatprep.subr.bf16.mxu0 0
  %2190 = vmatpush1.bf16.msra.mxu0 %v1552
  %2191 = vmatprep.subr.bf16.mxu0 0
  %2192 = vmatpush1.bf16.msra.mxu0 %v1553
  %2193 = vmatprep.subr.bf16.mxu0 0
  %2194 = vmatpush1.bf16.msra.mxu0 %v1554
  %2195 = vmatprep.subr.bf16.mxu0 0
  %2196 = vmatpush1.bf16.msra.mxu0 %v1555
  %2197 = vmatprep.subr.bf16.mxu0 0
  %2198 = vmatpush1.bf16.msra.mxu0 %v1556
  %2199 = vmatprep.subr.bf16.mxu0 0
  %2200 = vmatpush1.bf16.msra.mxu0 %v1557
  %2201 = vmatprep.subr.bf16.mxu0 0
  %2202 = vmatpush1.bf16.msra.mxu0 %v1558
  %2203 = vmatprep.subr.bf16.mxu0 0
  %2204 = vmatpush1.bf16.msra.mxu0 %v1559
  %2205 = vmatprep.subr.bf16.mxu0 0
  %2206 = vmatpush1.bf16.msra.mxu0 %v1560
  %2207 = vmatprep.subr.bf16.mxu0 0
  %2208 = vmatpush1.bf16.msra.mxu0 %v1561
  %2209 = vmatprep.subr.bf16.mxu0 0
  %2210 = vmatpush1.bf16.msra.mxu0 %v1562
  %2211 = vmatprep.subr.bf16.mxu0 0
  %2212 = vmatpush1.bf16.msra.mxu0 %v1563
  %2213 = vmatprep.subr.bf16.mxu0 0
  %2214 = vmatpush1.bf16.msra.mxu0 %v1564
  %2215 = vmatprep.subr.bf16.mxu0 0
  %2216 = vmatpush1.bf16.msra.mxu0 %v1565
  %2217 = vmatprep.subr.bf16.mxu0 0
  %2218 = vmatpush1.bf16.msra.mxu0 %v1566
  %2219 = vmatprep.mubr.bf16.mxu0 %v564
  %2220 = vmatmul.mubr.bf16.gmra.mrb[0].mxu0 %v550
  %v2221 = vpop.f32.mrb[0].mxu0
  %v2222 = vadd.f32 %v2182, %v2221
  %v2223 = vpop.f32.mrb[0].mxu0
  %v2224 = vpop.f32.mrb[0].mxu0
  %v2225 = vpop.f32.mrb[0].mxu0
  %2226 = vdwg.mxu0
  %2227 = vmatprep.subr.bf16.mxu0 0
  %2228 = vmatpush1.bf16.msra.mxu0 %v1567
  %2229 = vmatprep.subr.bf16.mxu0 0
  %2230 = vmatpush1.bf16.msra.mxu0 %v1568
  %2231 = vmatprep.subr.bf16.mxu0 0
  %2232 = vmatpush1.bf16.msra.mxu0 %v1569
  %2233 = vmatprep.subr.bf16.mxu0 0
  %2234 = vmatpush1.bf16.msra.mxu0 %v1570
  %2235 = vmatprep.subr.bf16.mxu0 0
  %2236 = vmatpush1.bf16.msra.mxu0 %v1571
  %2237 = vmatprep.subr.bf16.mxu0 0
  %2238 = vmatpush1.bf16.msra.mxu0 %v1572
  %2239 = vmatprep.subr.bf16.mxu0 0
  %2240 = vmatpush1.bf16.msra.mxu0 %v1573
  %2241 = vmatprep.subr.bf16.mxu0 0
  %2242 = vmatpush1.bf16.msra.mxu0 %v1574
  %2243 = vmatprep.subr.bf16.mxu0 0
  %2244 = vmatpush1.bf16.msra.mxu0 %v1575
  %2245 = vmatprep.subr.bf16.mxu0 0
  %2246 = vmatpush1.bf16.msra.mxu0 %v1576
  %2247 = vmatprep.subr.bf16.mxu0 0
  %2248 = vmatpush1.bf16.msra.mxu0 %v1577
  %2249 = vmatprep.subr.bf16.mxu0 0
  %2250 = vmatpush1.bf16.msra.mxu0 %v1578
  %2251 = vmatprep.subr.bf16.mxu0 0
  %2252 = vmatpush1.bf16.msra.mxu0 %v1579
  %2253 = vmatprep.subr.bf16.mxu0 0
  %2254 = vmatpush1.bf16.msra.mxu0 %v1580
  %2255 = vmatprep.subr.bf16.mxu0 0
  %2256 = vmatpush1.bf16.msra.mxu0 %v1581
  %2257 = vmatprep.subr.bf16.mxu0 0
  %2258 = vmatpush1.bf16.msra.mxu0 %v1582
  %2259 = vmatprep.mubr.bf16.mxu0 %v568
  %2260 = vmatmul.mubr.bf16.gmra.mrb[0].mxu0 %v566
  %v2261 = vpop.f32.mrb[0].mxu0
  %v2262 = vadd.f32 %v2222, %v2261
  %v2263 = vpop.f32.mrb[0].mxu0
  %v2264 = vpop.f32.mrb[0].mxu0
  %v2265 = vpop.f32.mrb[0].mxu0
  %2266 = vdwg.mxu0
  %2267 = vmatprep.subr.bf16.mxu0 0
  %2268 = vmatpush1.bf16.msra.mxu0 %v1583
  %2269 = vmatprep.subr.bf16.mxu0 0
  %2270 = vmatpush1.bf16.msra.mxu0 %v1584
  %2271 = vmatprep.subr.bf16.mxu0 0
  %2272 = vmatpush1.bf16.msra.mxu0 %v1585
  %2273 = vmatprep.subr.bf16.mxu0 0
  %2274 = vmatpush1.bf16.msra.mxu0 %v1586
  %2275 = vmatprep.subr.bf16.mxu0 0
  %2276 = vmatpush1.bf16.msra.mxu0 0
  %2277 = vmatprep.subr.bf16.mxu0 0
  %2278 = vmatpush1.bf16.msra.mxu0 0
  %2279 = vmatprep.subr.bf16.mxu0 0
  %2280 = vmatpush1.bf16.msra.mxu0 0
  %2281 = vmatprep.subr.bf16.mxu0 0
  %2282 = vmatpush1.bf16.msra.mxu0 0
  %2283 = vmatprep.subr.bf16.mxu0 0
  %2284 = vmatpush1.bf16.msra.mxu0 0
  %2285 = vmatprep.subr.bf16.mxu0 0
  %2286 = vmatpush1.bf16.msra.mxu0 0
  %2287 = vmatprep.subr.bf16.mxu0 0
  %2288 = vmatpush1.bf16.msra.mxu0 0
  %2289 = vmatprep.subr.bf16.mxu0 0
  %2290 = vmatpush1.bf16.msra.mxu0 0
  %2291 = vmatprep.subr.bf16.mxu0 0
  %2292 = vmatpush1.bf16.msra.mxu0 0
  %2293 = vmatprep.subr.bf16.mxu0 0
  %2294 = vmatpush1.bf16.msra.mxu0 0
  %2295 = vmatprep.subr.bf16.mxu0 0
  %2296 = vmatpush1.bf16.msra.mxu0 0
  %2297 = vmatprep.subr.bf16.mxu0 0
  %2298 = vmatpush1.bf16.msra.mxu0 0
  %2299 = vmatprep.mubr.bf16.mxu0 0
  %2300 = vmatmul.mubr.bf16.gmra.mrb[0].mxu0 %v1785
  %v2301 = vpop.f32.mrb[0].mxu0
  %v2302 = vadd.f32 %v2262, %v2301
  %v2303 = vpop.f32.mrb[0].mxu0
  %v2304 = vpop.f32.mrb[0].mxu0
  %v2305 = vpop.f32.mrb[0].mxu0
  %2306 = vdwg.mxu0
  %v2307 = vmax.f32 %v2302, 0.0
  %v2308 = vpack.c.bf16 %v2307, %v2307
  %2309 = vst [vmem:[%s3] sm:$0x1] %v2308
  // Predicated region
  $region14: #{simple_cnn_forward.10} parent=0 // pred_check
    _
  $region15: #{simple_cnn_forward.10} parent=0 // pred_check_branch
    %2311 = sbr.rel (0) target = $region17
  $region16: #{simple_cnn_forward.10} parent=0 // pred_region
    _
  $region17: #{simple_cnn_forward.10} parent=0 // pred_fallthru
    _
  // Predicated region
  $region18: #{simple_cnn_forward.10} parent=0 // pred_check
    _
  $region19: #{simple_cnn_forward.10} parent=0 // pred_check_branch
    %2313 = sbr.rel (0) target = $region21
  $region20: #{simple_cnn_forward.10} parent=0 // pred_region
    _
  $region21: #{simple_cnn_forward.10} parent=0 // pred_fallthru
    _

</llo_original>
